<compile_context>
chip_gen: v7x
topology: tpu7x:2x2x1
jax: 0.10.0
libtpu: 0.0.40
codegen_flags: <defaults>
</compile_context>

<pallas_src>
import functools

import jax
import jax.numpy as jnp
from jax.experimental import pallas as pl
from jax.experimental.pallas import tpu as pltpu


def _round_up(x, m):
    return (x + m - 1) // m * m


_TAPS = tuple((a, b) for a in (-1, 0, 1) for b in (-1, 0, 1))  # (dh-1, dw-1)


def _cnn_block2_kernel(H, W, NB, x_ref, w1_ref, b1_ref, w2_ref, b2_ref,
                       w3_ref, b3_ref, mask_ref, sel_ref, out_ref):
    """conv->relu->conv->relu->(conv+BN)->relu->maxpool on one (C, NB*H*W) tile."""
    HW = H * W
    P = NB * HW

    # Per-tap border masks, precomputed on the host (identical for every grid
    # step) and hoisted once per step.  Each is (1, P) f32 in {0, 1}.
    masks = [mask_ref[t:t + 1, :] for t in range(9)]

    def shift(x, off):
        # s[:, p] = x[:, (p + off) mod P].  One XLU lane rotation (off the
        # VALU / ld-st slots); the border masks zero every lane where the
        # wrap-around or cross-image bleed would matter, so roll is
        # equivalent to a zero-filled shift here.
        if off == 0:
            return x
        return pltpu.roll(x, shift=(-off) % P, axis=1)

    def conv3x3(x, w_ref, b_ref):
        # "same" 3x3 conv as 9 accumulated per-tap dots: no (9*C, P) im2col
        # tile is ever live (on v7x the MRB accumulates partials in place).
        acc = None
        for t, (a, b) in enumerate(_TAPS):
            tap = shift(x, a * W + b)
            if (a, b) != (0, 0):
                tap = tap * masks[t]
            d = jnp.dot(w_ref[t], tap, preferred_element_type=jnp.float32)
            acc = d if acc is None else acc + d
        return acc + b_ref[...]

    x = x_ref[...]                                            # (cp_in, P) f32

    y = jnp.maximum(conv3x3(x, w1_ref, b1_ref), 0.0)          # conv1 + relu
    y = jnp.maximum(conv3x3(y, w2_ref, b2_ref), 0.0)          # conv2 + relu
    # conv3 has the eval-mode BatchNorm folded into its weights/bias.
    y = jnp.maximum(conv3x3(y, w3_ref, b3_ref), 0.0)          # conv3+BN+relu

    # 2x2 / stride-2 max-pool: two lane-rolled maxes put the full 2x2-window
    # max at every (r, c); a per-image (HW, Hh*Wh) 0/1 selector dot gathers
    # the even-(r, c) windows.  Contaminated lanes (r=H-1, c=W-1, wrap) are
    # never selected.  The per-image lane slices sit on 128-lane boundaries
    # (HW is a multiple of 128), so no relayout is needed.
    m = jnp.maximum(y, shift(y, 1))                           # pair max along W
    m = jnp.maximum(m, shift(m, W))                           # pair max along H
    sel = sel_ref[...]                                        # (HW, Hh*Wh)
    pooled = [jnp.dot(m[:, n * HW:(n + 1) * HW], sel,
                      preferred_element_type=jnp.float32)
              for n in range(NB)]
    out = pooled[0] if NB == 1 else jnp.concatenate(pooled, axis=1)
    out_ref[...] = out.astype(out_ref.dtype)
    # TODO(synk): training-mode dropout and batch-statistic BN not implemented
    # (eval-mode semantics only).


def _pick_images_per_block(N, H, W):
    """Images per lane-block: prefer grid >= 2 (v7x has 2 TensorCores, and a
    grid > 1 buys DMA/compute pipelining on 1-TC chips), then a lane-dense
    output block (NB*Hh*Wh multiple of 128), then the biggest block that stays
    under a few-K-lane cap."""
    Hh, Wh = H // 2, W // 2
    best, best_key = 1, (-1, -1, -1)
    for nb in range(1, N + 1):
        if N % nb:
            continue
        lanes = nb * H * W
        if lanes > 8192:
            continue
        key = (int(N // nb >= 2),                  # grid >= 2
               int((nb * Hh * Wh) % 128 == 0),     # lane-dense output block
               lanes)                              # then biggest block
        if key > best_key:
            best, best_key = nb, key
    return best


def cnn_block2_forward(x_nchw, params):
    """Forward pass of CNN_Block2 (eval mode). Input NCHW, output NCHW."""
    w1, b1, w2, b2, w3, b3, gamma, beta, rmean, rvar = params
    N, C_in, H, W = x_nchw.shape
    C_out = w1.shape[0]
    eps = 1e-5
    Hh, Wh = H // 2, W // 2
    assert H % 2 == 0 and W % 2 == 0

    cp_in = _round_up(C_in, 8)
    cp_out = _round_up(C_out, 8)

    NB = _pick_images_per_block(N, H, W)
    grid = (N // NB,)
    P = NB * H * W
    Qb = NB * Hh * Wh

    # Fold eval-mode BN (running stats) into conv3's weights/bias.
    inv_std = 1.0 / jnp.sqrt(rvar.astype(jnp.float32) + eps)
    scale = gamma.astype(jnp.float32) * inv_std
    shift = beta.astype(jnp.float32) - rmean.astype(jnp.float32) * scale
    w3f = w3.astype(jnp.float32) * scale[:, None, None, None]
    b3f = b3.astype(jnp.float32) * scale + shift

    def pack_w(w, cin, cpin):
        # torch OIHW -> (9, cp_out, cp_in): tap-major so the kernel takes one
        # (cp_out, cp_in) slab per tap (sublane-aligned slices, no relayout).
        co = w.shape[0]
        wp = jnp.zeros((cp_out, cpin, 3, 3), jnp.float32)
        wp = wp.at[:co, :cin].set(w.astype(jnp.float32))
        return jnp.transpose(wp, (2, 3, 0, 1)).reshape(9, cp_out, cpin)

    def pack_b(b):
        return jnp.zeros((cp_out, 1), jnp.float32).at[:C_out, 0].set(
            b.astype(jnp.float32))

    w1k = pack_w(w1, C_in, cp_in)
    w2k = pack_w(w2, C_out, cp_out)
    w3k = pack_w(w3f, C_out, cp_out)
    b1k, b2k, b3k = pack_b(b1), pack_b(b2), pack_b(b3f)

    # NCHW -> (C, N*H*W): channels on sublanes, (image,row,col) on lanes.
    x = jnp.transpose(x_nchw, (1, 0, 2, 3)).astype(jnp.float32)
    x = jnp.pad(x, ((0, cp_in - C_in), (0, 0), (0, 0), (0, 0)))
    x = x.reshape(cp_in, N * H * W)

    # Per-tap 0/1 border masks for one NB-image block (identical for every
    # grid step -> one small constant input; no in-kernel iota/div/mod).
    pos = jnp.arange(P)
    row = (pos // W) % H
    col = pos % W
    mask = jnp.stack(
        [((row + a >= 0) & (row + a < H) & (col + b >= 0) & (col + b < W))
         .astype(jnp.float32) for (a, b) in _TAPS], axis=0)          # (9, P)

    # Per-image pooling selector (batch-size independent, 64 KiB at 16x16):
    # sel[s, q] = 1 iff flat position s == (2*rr)*W + 2*cc for q = rr*Wh + cc.
    q = jnp.arange(Hh * Wh)
    src = (2 * (q // Wh)) * W + 2 * (q % Wh)
    sel = jax.nn.one_hot(src, H * W, dtype=jnp.float32).T            # (HW, Qimg)

    kernel = functools.partial(_cnn_block2_kernel, H, W, NB)

    def const(shape):
        return pl.BlockSpec(shape, lambda *idx: (0,) * len(shape))

    flops = int(2 * 9 * N * H * W * (C_in * C_out + 2 * C_out * C_out)
                + 2 * N * cp_out * H * W * Hh * Wh)
    bytes_accessed = int(4 * (x.size + cp_out * N * Hh * Wh
                              + w1k.size + w2k.size + w3k.size
                              + 3 * cp_out + mask.size + sel.size))

    out = pl.pallas_call(
        kernel,
        out_shape=jax.ShapeDtypeStruct((cp_out, N * Hh * Wh), jnp.float32),
        grid_spec=pltpu.PrefetchScalarGridSpec(
            num_scalar_prefetch=0,
            grid=grid,
            in_specs=[
                pl.BlockSpec((cp_in, P), lambda i: (0, i)),
                const((9, cp_out, cp_in)), const((cp_out, 1)),
                const((9, cp_out, cp_out)), const((cp_out, 1)),
                const((9, cp_out, cp_out)), const((cp_out, 1)),
                const((9, P)),
                const((H * W, Hh * Wh)),
            ],
            out_specs=pl.BlockSpec((cp_out, Qb), lambda i: (0, i)),
        ),
        compiler_params=pltpu.CompilerParams(
            dimension_semantics=("parallel",),
            vmem_limit_bytes=32 * 1024 * 1024),
        cost_estimate=pl.CostEstimate(flops=flops, transcendentals=0,
                                      bytes_accessed=bytes_accessed),
    )(x, w1k, b1k, w2k, b2k, w3k, b3k, mask, sel)

    out = out[:C_out].reshape(C_out, N, Hh, Wh)
    return jnp.transpose(out, (1, 0, 2, 3))                  # -> NCHW


def reference_forward(x, params):
    """Pure-JAX reference (NCHW), mirrors the PyTorch eval-mode forward."""
    w1, b1, w2, b2, w3, b3, gamma, beta, rmean, rvar = params

    def conv(x, w, b):
        y = jax.lax.conv_general_dilated(
            x, w, window_strides=(1, 1), padding=((1, 1), (1, 1)),
            dimension_numbers=('NCHW', 'OIHW', 'NCHW'))
        return y + b.reshape(1, -1, 1, 1)

    y = jax.nn.relu(conv(x, w1, b1))
    y = jax.nn.relu(conv(y, w2, b2))
    y = conv(y, w3, b3)
    y = (y - rmean.reshape(1, -1, 1, 1)) / jnp.sqrt(rvar.reshape(1, -1, 1, 1) + 1e-5)
    y = y * gamma.reshape(1, -1, 1, 1) + beta.reshape(1, -1, 1, 1)
    y = jax.nn.relu(y)
    y = jax.lax.reduce_window(y, -jnp.inf, jax.lax.max,
                              (1, 1, 2, 2), (1, 1, 2, 2), 'VALID')
    return y


if __name__ == "__main__":
    N, C_in, C_out, H, W = 4, 4, 8, 16, 16
    key = jax.random.PRNGKey(0)
    keys = jax.random.split(key, 11)

    def conv_init(kw, kb, cin, cout):
        # Matches PyTorch Conv2d default init: U(-1/sqrt(fan_in), 1/sqrt(fan_in))
        bound = 1.0 / jnp.sqrt(jnp.float32(cin * 9))
        w = jax.random.uniform(kw, (cout, cin, 3, 3), jnp.float32, -bound, bound)
        b = jax.random.uniform(kb, (cout,), jnp.float32, -bound, bound)
        return w, b

    w1, b1 = conv_init(keys[0], keys[1], C_in, C_out)
    w2, b2 = conv_init(keys[2], keys[3], C_out, C_out)
    w3, b3 = conv_init(keys[4], keys[5], C_out, C_out)
    # Non-trivial BN affine params / running stats to exercise the BN fold.
    gamma = jax.random.uniform(keys[6], (C_out,), jnp.float32, 0.5, 1.5)
    beta = 0.1 * jax.random.normal(keys[7], (C_out,), jnp.float32)
    rmean = 0.1 * jax.random.normal(keys[8], (C_out,), jnp.float32)
    rvar = jax.random.uniform(keys[9], (C_out,), jnp.float32, 0.5, 1.5)
    params = (w1, b1, w2, b2, w3, b3, gamma, beta, rmean, rvar)

    x = jax.random.normal(keys[10], (N, C_in, H, W), jnp.float32)

    out = jax.block_until_ready(cnn_block2_forward(x, params))
    ref = reference_forward(x, params)

    assert out.shape == (N, C_out, H // 2, W // 2), out.shape
    err = float(jnp.max(jnp.abs(out - ref)))
    assert err < 1e-3, f"max abs error {err}"
    print("KERNEL_OK")
</pallas_src>

<mosaic_0001>
module attributes {stable_mosaic.version = 11 : i64} {
  func.func @_cnn_block2_kernel(%arg0: i32, %arg1: memref<8x512xf32, #tpu.memory_space<vmem>>, %arg2: memref<9x8x8xf32, #tpu.memory_space<vmem>>, %arg3: memref<8x1xf32, #tpu.memory_space<vmem>>, %arg4: memref<9x8x8xf32, #tpu.memory_space<vmem>>, %arg5: memref<8x1xf32, #tpu.memory_space<vmem>>, %arg6: memref<9x8x8xf32, #tpu.memory_space<vmem>>, %arg7: memref<8x1xf32, #tpu.memory_space<vmem>>, %arg8: memref<9x512xf32, #tpu.memory_space<vmem>>, %arg9: memref<256x64xf32, #tpu.memory_space<vmem>>, %arg10: memref<8x128xf32, #tpu.memory_space<vmem>>) attributes {dimension_semantics = [#tpu.dimension_semantics<parallel>], iteration_bounds = array<i64: 2>, scalar_prefetch = 0 : i64, scratch_operands = 0 : i64, tpu.core_type = #tpu.core_type<tc>, window_params = [{transform_indices = @transform_0, window_bounds = array<i64: 8, 512>}, {pipeline_mode = #tpu.pipeline_mode<synchronous>, transform_indices = @transform_1, window_bounds = array<i64: 9, 8, 8>}, {pipeline_mode = #tpu.pipeline_mode<synchronous>, transform_indices = @transform_2, window_bounds = array<i64: 8, 1>}, {pipeline_mode = #tpu.pipeline_mode<synchronous>, transform_indices = @transform_3, window_bounds = array<i64: 9, 8, 8>}, {pipeline_mode = #tpu.pipeline_mode<synchronous>, transform_indices = @transform_4, window_bounds = array<i64: 8, 1>}, {pipeline_mode = #tpu.pipeline_mode<synchronous>, transform_indices = @transform_5, window_bounds = array<i64: 9, 8, 8>}, {pipeline_mode = #tpu.pipeline_mode<synchronous>, transform_indices = @transform_6, window_bounds = array<i64: 8, 1>}, {pipeline_mode = #tpu.pipeline_mode<synchronous>, transform_indices = @transform_7, window_bounds = array<i64: 9, 512>}, {pipeline_mode = #tpu.pipeline_mode<synchronous>, transform_indices = @transform_8, window_bounds = array<i64: 256, 64>}, {transform_indices = @transform_9, window_bounds = array<i64: 8, 128>}]} {
    %c0 = arith.constant 0 : index
    %c0_0 = arith.constant 0 : index
    %0 = vector.load %arg8[%c0, %c0_0] : memref<9x512xf32, #tpu.memory_space<vmem>>, vector<1x512xf32>
    %c1 = arith.constant 1 : index
    %c0_1 = arith.constant 0 : index
    %1 = vector.load %arg8[%c1, %c0_1] : memref<9x512xf32, #tpu.memory_space<vmem>>, vector<1x512xf32>
    %c2 = arith.constant 2 : index
    %c0_2 = arith.constant 0 : index
    %2 = vector.load %arg8[%c2, %c0_2] : memref<9x512xf32, #tpu.memory_space<vmem>>, vector<1x512xf32>
    %c3 = arith.constant 3 : index
    %c0_3 = arith.constant 0 : index
    %3 = vector.load %arg8[%c3, %c0_3] : memref<9x512xf32, #tpu.memory_space<vmem>>, vector<1x512xf32>
    %c5 = arith.constant 5 : index
    %c0_4 = arith.constant 0 : index
    %4 = vector.load %arg8[%c5, %c0_4] : memref<9x512xf32, #tpu.memory_space<vmem>>, vector<1x512xf32>
    %c6 = arith.constant 6 : index
    %c0_5 = arith.constant 0 : index
    %5 = vector.load %arg8[%c6, %c0_5] : memref<9x512xf32, #tpu.memory_space<vmem>>, vector<1x512xf32>
    %c7 = arith.constant 7 : index
    %c0_6 = arith.constant 0 : index
    %6 = vector.load %arg8[%c7, %c0_6] : memref<9x512xf32, #tpu.memory_space<vmem>>, vector<1x512xf32>
    %c8 = arith.constant 8 : index
    %c0_7 = arith.constant 0 : index
    %7 = vector.load %arg8[%c8, %c0_7] : memref<9x512xf32, #tpu.memory_space<vmem>>, vector<1x512xf32>
    %c0_8 = arith.constant 0 : index
    %c0_9 = arith.constant 0 : index
    %8 = vector.load %arg1[%c0_8, %c0_9] : memref<8x512xf32, #tpu.memory_space<vmem>>, vector<8x512xf32>
    %c17_i32 = arith.constant 17 : i32
    %9 = tpu.dynamic_rotate %8 by %c17_i32 dim 1 : vector<8x512xf32>, i32 -> vector<8x512xf32>
    %10 = vector.broadcast %0 : vector<1x512xf32> to vector<8x512xf32>
    %11 = arith.mulf %9, %10 : vector<8x512xf32>
    %c0_10 = arith.constant 0 : index
    %c0_11 = arith.constant 0 : index
    %c0_12 = arith.constant 0 : index
    %12 = vector.load %arg2[%c0_10, %c0_11, %c0_12] : memref<9x8x8xf32, #tpu.memory_space<vmem>>, vector<1x8x8xf32>
    %13 = vector.shape_cast %12 : vector<1x8x8xf32> to vector<8x8xf32>
    %cst = arith.constant dense<0.000000e+00> : vector<8x512xf32>
    %14 = tpu.matmul %13, %11, %cst {dimension_numbers = #tpu.dot_dimension_numbers<[1], [0], [0], [1], [0, 0, 1, 1], [], []>} : vector<8x8xf32>, vector<8x512xf32>, vector<8x512xf32> -> vector<8x512xf32>
    %c16_i32 = arith.constant 16 : i32
    %15 = tpu.dynamic_rotate %8 by %c16_i32 dim 1 : vector<8x512xf32>, i32 -> vector<8x512xf32>
    %16 = vector.broadcast %1 : vector<1x512xf32> to vector<8x512xf32>
    %17 = arith.mulf %15, %16 : vector<8x512xf32>
    %c1_13 = arith.constant 1 : index
    %c0_14 = arith.constant 0 : index
    %c0_15 = arith.constant 0 : index
    %18 = vector.load %arg2[%c1_13, %c0_14, %c0_15] : memref<9x8x8xf32, #tpu.memory_space<vmem>>, vector<1x8x8xf32>
    %19 = vector.shape_cast %18 : vector<1x8x8xf32> to vector<8x8xf32>
    %cst_16 = arith.constant dense<0.000000e+00> : vector<8x512xf32>
    %20 = tpu.matmul %19, %17, %cst_16 {dimension_numbers = #tpu.dot_dimension_numbers<[1], [0], [0], [1], [0, 0, 1, 1], [], []>} : vector<8x8xf32>, vector<8x512xf32>, vector<8x512xf32> -> vector<8x512xf32>
    %21 = arith.addf %14, %20 : vector<8x512xf32>
    %c15_i32 = arith.constant 15 : i32
    %22 = tpu.dynamic_rotate %8 by %c15_i32 dim 1 : vector<8x512xf32>, i32 -> vector<8x512xf32>
    %23 = vector.broadcast %2 : vector<1x512xf32> to vector<8x512xf32>
    %24 = arith.mulf %22, %23 : vector<8x512xf32>
    %c2_17 = arith.constant 2 : index
    %c0_18 = arith.constant 0 : index
    %c0_19 = arith.constant 0 : index
    %25 = vector.load %arg2[%c2_17, %c0_18, %c0_19] : memref<9x8x8xf32, #tpu.memory_space<vmem>>, vector<1x8x8xf32>
    %26 = vector.shape_cast %25 : vector<1x8x8xf32> to vector<8x8xf32>
    %cst_20 = arith.constant dense<0.000000e+00> : vector<8x512xf32>
    %27 = tpu.matmul %26, %24, %cst_20 {dimension_numbers = #tpu.dot_dimension_numbers<[1], [0], [0], [1], [0, 0, 1, 1], [], []>} : vector<8x8xf32>, vector<8x512xf32>, vector<8x512xf32> -> vector<8x512xf32>
    %28 = arith.addf %21, %27 : vector<8x512xf32>
    %c1_i32 = arith.constant 1 : i32
    %29 = tpu.dynamic_rotate %8 by %c1_i32 dim 1 : vector<8x512xf32>, i32 -> vector<8x512xf32>
    %30 = vector.broadcast %3 : vector<1x512xf32> to vector<8x512xf32>
    %31 = arith.mulf %29, %30 : vector<8x512xf32>
    %c3_21 = arith.constant 3 : index
    %c0_22 = arith.constant 0 : index
    %c0_23 = arith.constant 0 : index
    %32 = vector.load %arg2[%c3_21, %c0_22, %c0_23] : memref<9x8x8xf32, #tpu.memory_space<vmem>>, vector<1x8x8xf32>
    %33 = vector.shape_cast %32 : vector<1x8x8xf32> to vector<8x8xf32>
    %cst_24 = arith.constant dense<0.000000e+00> : vector<8x512xf32>
    %34 = tpu.matmul %33, %31, %cst_24 {dimension_numbers = #tpu.dot_dimension_numbers<[1], [0], [0], [1], [0, 0, 1, 1], [], []>} : vector<8x8xf32>, vector<8x512xf32>, vector<8x512xf32> -> vector<8x512xf32>
    %35 = arith.addf %28, %34 : vector<8x512xf32>
    %c4 = arith.constant 4 : index
    %c0_25 = arith.constant 0 : index
    %c0_26 = arith.constant 0 : index
    %36 = vector.load %arg2[%c4, %c0_25, %c0_26] : memref<9x8x8xf32, #tpu.memory_space<vmem>>, vector<1x8x8xf32>
    %37 = vector.shape_cast %36 : vector<1x8x8xf32> to vector<8x8xf32>
    %cst_27 = arith.constant dense<0.000000e+00> : vector<8x512xf32>
    %38 = tpu.matmul %37, %8, %cst_27 {dimension_numbers = #tpu.dot_dimension_numbers<[1], [0], [0], [1], [0, 0, 1, 1], [], []>} : vector<8x8xf32>, vector<8x512xf32>, vector<8x512xf32> -> vector<8x512xf32>
    %39 = arith.addf %35, %38 : vector<8x512xf32>
    %c511_i32 = arith.constant 511 : i32
    %40 = tpu.dynamic_rotate %8 by %c511_i32 dim 1 : vector<8x512xf32>, i32 -> vector<8x512xf32>
    %41 = vector.broadcast %4 : vector<1x512xf32> to vector<8x512xf32>
    %42 = arith.mulf %40, %41 : vector<8x512xf32>
    %c5_28 = arith.constant 5 : index
    %c0_29 = arith.constant 0 : index
    %c0_30 = arith.constant 0 : index
    %43 = vector.load %arg2[%c5_28, %c0_29, %c0_30] : memref<9x8x8xf32, #tpu.memory_space<vmem>>, vector<1x8x8xf32>
    %44 = vector.shape_cast %43 : vector<1x8x8xf32> to vector<8x8xf32>
    %cst_31 = arith.constant dense<0.000000e+00> : vector<8x512xf32>
    %45 = tpu.matmul %44, %42, %cst_31 {dimension_numbers = #tpu.dot_dimension_numbers<[1], [0], [0], [1], [0, 0, 1, 1], [], []>} : vector<8x8xf32>, vector<8x512xf32>, vector<8x512xf32> -> vector<8x512xf32>
    %46 = arith.addf %39, %45 : vector<8x512xf32>
    %c497_i32 = arith.constant 497 : i32
    %47 = tpu.dynamic_rotate %8 by %c497_i32 dim 1 : vector<8x512xf32>, i32 -> vector<8x512xf32>
    %48 = vector.broadcast %5 : vector<1x512xf32> to vector<8x512xf32>
    %49 = arith.mulf %47, %48 : vector<8x512xf32>
    %c6_32 = arith.constant 6 : index
    %c0_33 = arith.constant 0 : index
    %c0_34 = arith.constant 0 : index
    %50 = vector.load %arg2[%c6_32, %c0_33, %c0_34] : memref<9x8x8xf32, #tpu.memory_space<vmem>>, vector<1x8x8xf32>
    %51 = vector.shape_cast %50 : vector<1x8x8xf32> to vector<8x8xf32>
    %cst_35 = arith.constant dense<0.000000e+00> : vector<8x512xf32>
    %52 = tpu.matmul %51, %49, %cst_35 {dimension_numbers = #tpu.dot_dimension_numbers<[1], [0], [0], [1], [0, 0, 1, 1], [], []>} : vector<8x8xf32>, vector<8x512xf32>, vector<8x512xf32> -> vector<8x512xf32>
    %53 = arith.addf %46, %52 : vector<8x512xf32>
    %c496_i32 = arith.constant 496 : i32
    %54 = tpu.dynamic_rotate %8 by %c496_i32 dim 1 : vector<8x512xf32>, i32 -> vector<8x512xf32>
    %55 = vector.broadcast %6 : vector<1x512xf32> to vector<8x512xf32>
    %56 = arith.mulf %54, %55 : vector<8x512xf32>
    %c7_36 = arith.constant 7 : index
    %c0_37 = arith.constant 0 : index
    %c0_38 = arith.constant 0 : index
    %57 = vector.load %arg2[%c7_36, %c0_37, %c0_38] : memref<9x8x8xf32, #tpu.memory_space<vmem>>, vector<1x8x8xf32>
    %58 = vector.shape_cast %57 : vector<1x8x8xf32> to vector<8x8xf32>
    %cst_39 = arith.constant dense<0.000000e+00> : vector<8x512xf32>
    %59 = tpu.matmul %58, %56, %cst_39 {dimension_numbers = #tpu.dot_dimension_numbers<[1], [0], [0], [1], [0, 0, 1, 1], [], []>} : vector<8x8xf32>, vector<8x512xf32>, vector<8x512xf32> -> vector<8x512xf32>
    %60 = arith.addf %53, %59 : vector<8x512xf32>
    %c495_i32 = arith.constant 495 : i32
    %61 = tpu.dynamic_rotate %8 by %c495_i32 dim 1 : vector<8x512xf32>, i32 -> vector<8x512xf32>
    %62 = vector.broadcast %7 : vector<1x512xf32> to vector<8x512xf32>
    %63 = arith.mulf %61, %62 : vector<8x512xf32>
    %c8_40 = arith.constant 8 : index
    %c0_41 = arith.constant 0 : index
    %c0_42 = arith.constant 0 : index
    %64 = vector.load %arg2[%c8_40, %c0_41, %c0_42] : memref<9x8x8xf32, #tpu.memory_space<vmem>>, vector<1x8x8xf32>
    %65 = vector.shape_cast %64 : vector<1x8x8xf32> to vector<8x8xf32>
    %cst_43 = arith.constant dense<0.000000e+00> : vector<8x512xf32>
    %66 = tpu.matmul %65, %63, %cst_43 {dimension_numbers = #tpu.dot_dimension_numbers<[1], [0], [0], [1], [0, 0, 1, 1], [], []>} : vector<8x8xf32>, vector<8x512xf32>, vector<8x512xf32> -> vector<8x512xf32>
    %67 = arith.addf %60, %66 : vector<8x512xf32>
    %c0_44 = arith.constant 0 : index
    %c0_45 = arith.constant 0 : index
    %68 = vector.load %arg3[%c0_44, %c0_45] : memref<8x1xf32, #tpu.memory_space<vmem>>, vector<8x1xf32>
    %69 = vector.broadcast %68 : vector<8x1xf32> to vector<8x512xf32>
    %70 = arith.addf %67, %69 : vector<8x512xf32>
    %cst_46 = arith.constant 0.000000e+00 : f32
    %71 = vector.broadcast %cst_46 : f32 to vector<8x512xf32>
    %72 = arith.maximumf %70, %71 : vector<8x512xf32>
    %c17_i32_47 = arith.constant 17 : i32
    %73 = tpu.dynamic_rotate %72 by %c17_i32_47 dim 1 : vector<8x512xf32>, i32 -> vector<8x512xf32>
    %74 = vector.broadcast %0 : vector<1x512xf32> to vector<8x512xf32>
    %75 = arith.mulf %73, %74 : vector<8x512xf32>
    %c0_48 = arith.constant 0 : index
    %c0_49 = arith.constant 0 : index
    %c0_50 = arith.constant 0 : index
    %76 = vector.load %arg4[%c0_48, %c0_49, %c0_50] : memref<9x8x8xf32, #tpu.memory_space<vmem>>, vector<1x8x8xf32>
    %77 = vector.shape_cast %76 : vector<1x8x8xf32> to vector<8x8xf32>
    %cst_51 = arith.constant dense<0.000000e+00> : vector<8x512xf32>
    %78 = tpu.matmul %77, %75, %cst_51 {dimension_numbers = #tpu.dot_dimension_numbers<[1], [0], [0], [1], [0, 0, 1, 1], [], []>} : vector<8x8xf32>, vector<8x512xf32>, vector<8x512xf32> -> vector<8x512xf32>
    %c16_i32_52 = arith.constant 16 : i32
    %79 = tpu.dynamic_rotate %72 by %c16_i32_52 dim 1 : vector<8x512xf32>, i32 -> vector<8x512xf32>
    %80 = vector.broadcast %1 : vector<1x512xf32> to vector<8x512xf32>
    %81 = arith.mulf %79, %80 : vector<8x512xf32>
    %c1_53 = arith.constant 1 : index
    %c0_54 = arith.constant 0 : index
    %c0_55 = arith.constant 0 : index
    %82 = vector.load %arg4[%c1_53, %c0_54, %c0_55] : memref<9x8x8xf32, #tpu.memory_space<vmem>>, vector<1x8x8xf32>
    %83 = vector.shape_cast %82 : vector<1x8x8xf32> to vector<8x8xf32>
    %cst_56 = arith.constant dense<0.000000e+00> : vector<8x512xf32>
    %84 = tpu.matmul %83, %81, %cst_56 {dimension_numbers = #tpu.dot_dimension_numbers<[1], [0], [0], [1], [0, 0, 1, 1], [], []>} : vector<8x8xf32>, vector<8x512xf32>, vector<8x512xf32> -> vector<8x512xf32>
    %85 = arith.addf %78, %84 : vector<8x512xf32>
    %c15_i32_57 = arith.constant 15 : i32
    %86 = tpu.dynamic_rotate %72 by %c15_i32_57 dim 1 : vector<8x512xf32>, i32 -> vector<8x512xf32>
    %87 = vector.broadcast %2 : vector<1x512xf32> to vector<8x512xf32>
    %88 = arith.mulf %86, %87 : vector<8x512xf32>
    %c2_58 = arith.constant 2 : index
    %c0_59 = arith.constant 0 : index
    %c0_60 = arith.constant 0 : index
    %89 = vector.load %arg4[%c2_58, %c0_59, %c0_60] : memref<9x8x8xf32, #tpu.memory_space<vmem>>, vector<1x8x8xf32>
    %90 = vector.shape_cast %89 : vector<1x8x8xf32> to vector<8x8xf32>
    %cst_61 = arith.constant dense<0.000000e+00> : vector<8x512xf32>
    %91 = tpu.matmul %90, %88, %cst_61 {dimension_numbers = #tpu.dot_dimension_numbers<[1], [0], [0], [1], [0, 0, 1, 1], [], []>} : vector<8x8xf32>, vector<8x512xf32>, vector<8x512xf32> -> vector<8x512xf32>
    %92 = arith.addf %85, %91 : vector<8x512xf32>
    %c1_i32_62 = arith.constant 1 : i32
    %93 = tpu.dynamic_rotate %72 by %c1_i32_62 dim 1 : vector<8x512xf32>, i32 -> vector<8x512xf32>
    %94 = vector.broadcast %3 : vector<1x512xf32> to vector<8x512xf32>
    %95 = arith.mulf %93, %94 : vector<8x512xf32>
    %c3_63 = arith.constant 3 : index
    %c0_64 = arith.constant 0 : index
    %c0_65 = arith.constant 0 : index
    %96 = vector.load %arg4[%c3_63, %c0_64, %c0_65] : memref<9x8x8xf32, #tpu.memory_space<vmem>>, vector<1x8x8xf32>
    %97 = vector.shape_cast %96 : vector<1x8x8xf32> to vector<8x8xf32>
    %cst_66 = arith.constant dense<0.000000e+00> : vector<8x512xf32>
    %98 = tpu.matmul %97, %95, %cst_66 {dimension_numbers = #tpu.dot_dimension_numbers<[1], [0], [0], [1], [0, 0, 1, 1], [], []>} : vector<8x8xf32>, vector<8x512xf32>, vector<8x512xf32> -> vector<8x512xf32>
    %99 = arith.addf %92, %98 : vector<8x512xf32>
    %c4_67 = arith.constant 4 : index
    %c0_68 = arith.constant 0 : index
    %c0_69 = arith.constant 0 : index
    %100 = vector.load %arg4[%c4_67, %c0_68, %c0_69] : memref<9x8x8xf32, #tpu.memory_space<vmem>>, vector<1x8x8xf32>
    %101 = vector.shape_cast %100 : vector<1x8x8xf32> to vector<8x8xf32>
    %cst_70 = arith.constant dense<0.000000e+00> : vector<8x512xf32>
    %102 = tpu.matmul %101, %72, %cst_70 {dimension_numbers = #tpu.dot_dimension_numbers<[1], [0], [0], [1], [0, 0, 1, 1], [], []>} : vector<8x8xf32>, vector<8x512xf32>, vector<8x512xf32> -> vector<8x512xf32>
    %103 = arith.addf %99, %102 : vector<8x512xf32>
    %c511_i32_71 = arith.constant 511 : i32
    %104 = tpu.dynamic_rotate %72 by %c511_i32_71 dim 1 : vector<8x512xf32>, i32 -> vector<8x512xf32>
    %105 = vector.broadcast %4 : vector<1x512xf32> to vector<8x512xf32>
    %106 = arith.mulf %104, %105 : vector<8x512xf32>
    %c5_72 = arith.constant 5 : index
    %c0_73 = arith.constant 0 : index
    %c0_74 = arith.constant 0 : index
    %107 = vector.load %arg4[%c5_72, %c0_73, %c0_74] : memref<9x8x8xf32, #tpu.memory_space<vmem>>, vector<1x8x8xf32>
    %108 = vector.shape_cast %107 : vector<1x8x8xf32> to vector<8x8xf32>
    %cst_75 = arith.constant dense<0.000000e+00> : vector<8x512xf32>
    %109 = tpu.matmul %108, %106, %cst_75 {dimension_numbers = #tpu.dot_dimension_numbers<[1], [0], [0], [1], [0, 0, 1, 1], [], []>} : vector<8x8xf32>, vector<8x512xf32>, vector<8x512xf32> -> vector<8x512xf32>
    %110 = arith.addf %103, %109 : vector<8x512xf32>
    %c497_i32_76 = arith.constant 497 : i32
    %111 = tpu.dynamic_rotate %72 by %c497_i32_76 dim 1 : vector<8x512xf32>, i32 -> vector<8x512xf32>
    %112 = vector.broadcast %5 : vector<1x512xf32> to vector<8x512xf32>
    %113 = arith.mulf %111, %112 : vector<8x512xf32>
    %c6_77 = arith.constant 6 : index
    %c0_78 = arith.constant 0 : index
    %c0_79 = arith.constant 0 : index
    %114 = vector.load %arg4[%c6_77, %c0_78, %c0_79] : memref<9x8x8xf32, #tpu.memory_space<vmem>>, vector<1x8x8xf32>
    %115 = vector.shape_cast %114 : vector<1x8x8xf32> to vector<8x8xf32>
    %cst_80 = arith.constant dense<0.000000e+00> : vector<8x512xf32>
    %116 = tpu.matmul %115, %113, %cst_80 {dimension_numbers = #tpu.dot_dimension_numbers<[1], [0], [0], [1], [0, 0, 1, 1], [], []>} : vector<8x8xf32>, vector<8x512xf32>, vector<8x512xf32> -> vector<8x512xf32>
    %117 = arith.addf %110, %116 : vector<8x512xf32>
    %c496_i32_81 = arith.constant 496 : i32
    %118 = tpu.dynamic_rotate %72 by %c496_i32_81 dim 1 : vector<8x512xf32>, i32 -> vector<8x512xf32>
    %119 = vector.broadcast %6 : vector<1x512xf32> to vector<8x512xf32>
    %120 = arith.mulf %118, %119 : vector<8x512xf32>
    %c7_82 = arith.constant 7 : index
    %c0_83 = arith.constant 0 : index
    %c0_84 = arith.constant 0 : index
    %121 = vector.load %arg4[%c7_82, %c0_83, %c0_84] : memref<9x8x8xf32, #tpu.memory_space<vmem>>, vector<1x8x8xf32>
    %122 = vector.shape_cast %121 : vector<1x8x8xf32> to vector<8x8xf32>
    %cst_85 = arith.constant dense<0.000000e+00> : vector<8x512xf32>
    %123 = tpu.matmul %122, %120, %cst_85 {dimension_numbers = #tpu.dot_dimension_numbers<[1], [0], [0], [1], [0, 0, 1, 1], [], []>} : vector<8x8xf32>, vector<8x512xf32>, vector<8x512xf32> -> vector<8x512xf32>
    %124 = arith.addf %117, %123 : vector<8x512xf32>
    %c495_i32_86 = arith.constant 495 : i32
    %125 = tpu.dynamic_rotate %72 by %c495_i32_86 dim 1 : vector<8x512xf32>, i32 -> vector<8x512xf32>
    %126 = vector.broadcast %7 : vector<1x512xf32> to vector<8x512xf32>
    %127 = arith.mulf %125, %126 : vector<8x512xf32>
    %c8_87 = arith.constant 8 : index
    %c0_88 = arith.constant 0 : index
    %c0_89 = arith.constant 0 : index
    %128 = vector.load %arg4[%c8_87, %c0_88, %c0_89] : memref<9x8x8xf32, #tpu.memory_space<vmem>>, vector<1x8x8xf32>
    %129 = vector.shape_cast %128 : vector<1x8x8xf32> to vector<8x8xf32>
    %cst_90 = arith.constant dense<0.000000e+00> : vector<8x512xf32>
    %130 = tpu.matmul %129, %127, %cst_90 {dimension_numbers = #tpu.dot_dimension_numbers<[1], [0], [0], [1], [0, 0, 1, 1], [], []>} : vector<8x8xf32>, vector<8x512xf32>, vector<8x512xf32> -> vector<8x512xf32>
    %131 = arith.addf %124, %130 : vector<8x512xf32>
    %c0_91 = arith.constant 0 : index
    %c0_92 = arith.constant 0 : index
    %132 = vector.load %arg5[%c0_91, %c0_92] : memref<8x1xf32, #tpu.memory_space<vmem>>, vector<8x1xf32>
    %133 = vector.broadcast %132 : vector<8x1xf32> to vector<8x512xf32>
    %134 = arith.addf %131, %133 : vector<8x512xf32>
    %cst_93 = arith.constant 0.000000e+00 : f32
    %135 = vector.broadcast %cst_93 : f32 to vector<8x512xf32>
    %136 = arith.maximumf %134, %135 : vector<8x512xf32>
    %c17_i32_94 = arith.constant 17 : i32
    %137 = tpu.dynamic_rotate %136 by %c17_i32_94 dim 1 : vector<8x512xf32>, i32 -> vector<8x512xf32>
    %138 = vector.broadcast %0 : vector<1x512xf32> to vector<8x512xf32>
    %139 = arith.mulf %137, %138 : vector<8x512xf32>
    %c0_95 = arith.constant 0 : index
    %c0_96 = arith.constant 0 : index
    %c0_97 = arith.constant 0 : index
    %140 = vector.load %arg6[%c0_95, %c0_96, %c0_97] : memref<9x8x8xf32, #tpu.memory_space<vmem>>, vector<1x8x8xf32>
    %141 = vector.shape_cast %140 : vector<1x8x8xf32> to vector<8x8xf32>
    %cst_98 = arith.constant dense<0.000000e+00> : vector<8x512xf32>
    %142 = tpu.matmul %141, %139, %cst_98 {dimension_numbers = #tpu.dot_dimension_numbers<[1], [0], [0], [1], [0, 0, 1, 1], [], []>} : vector<8x8xf32>, vector<8x512xf32>, vector<8x512xf32> -> vector<8x512xf32>
    %c16_i32_99 = arith.constant 16 : i32
    %143 = tpu.dynamic_rotate %136 by %c16_i32_99 dim 1 : vector<8x512xf32>, i32 -> vector<8x512xf32>
    %144 = vector.broadcast %1 : vector<1x512xf32> to vector<8x512xf32>
    %145 = arith.mulf %143, %144 : vector<8x512xf32>
    %c1_100 = arith.constant 1 : index
    %c0_101 = arith.constant 0 : index
    %c0_102 = arith.constant 0 : index
    %146 = vector.load %arg6[%c1_100, %c0_101, %c0_102] : memref<9x8x8xf32, #tpu.memory_space<vmem>>, vector<1x8x8xf32>
    %147 = vector.shape_cast %146 : vector<1x8x8xf32> to vector<8x8xf32>
    %cst_103 = arith.constant dense<0.000000e+00> : vector<8x512xf32>
    %148 = tpu.matmul %147, %145, %cst_103 {dimension_numbers = #tpu.dot_dimension_numbers<[1], [0], [0], [1], [0, 0, 1, 1], [], []>} : vector<8x8xf32>, vector<8x512xf32>, vector<8x512xf32> -> vector<8x512xf32>
    %149 = arith.addf %142, %148 : vector<8x512xf32>
    %c15_i32_104 = arith.constant 15 : i32
    %150 = tpu.dynamic_rotate %136 by %c15_i32_104 dim 1 : vector<8x512xf32>, i32 -> vector<8x512xf32>
    %151 = vector.broadcast %2 : vector<1x512xf32> to vector<8x512xf32>
    %152 = arith.mulf %150, %151 : vector<8x512xf32>
    %c2_105 = arith.constant 2 : index
    %c0_106 = arith.constant 0 : index
    %c0_107 = arith.constant 0 : index
    %153 = vector.load %arg6[%c2_105, %c0_106, %c0_107] : memref<9x8x8xf32, #tpu.memory_space<vmem>>, vector<1x8x8xf32>
    %154 = vector.shape_cast %153 : vector<1x8x8xf32> to vector<8x8xf32>
    %cst_108 = arith.constant dense<0.000000e+00> : vector<8x512xf32>
    %155 = tpu.matmul %154, %152, %cst_108 {dimension_numbers = #tpu.dot_dimension_numbers<[1], [0], [0], [1], [0, 0, 1, 1], [], []>} : vector<8x8xf32>, vector<8x512xf32>, vector<8x512xf32> -> vector<8x512xf32>
    %156 = arith.addf %149, %155 : vector<8x512xf32>
    %c1_i32_109 = arith.constant 1 : i32
    %157 = tpu.dynamic_rotate %136 by %c1_i32_109 dim 1 : vector<8x512xf32>, i32 -> vector<8x512xf32>
    %158 = vector.broadcast %3 : vector<1x512xf32> to vector<8x512xf32>
    %159 = arith.mulf %157, %158 : vector<8x512xf32>
    %c3_110 = arith.constant 3 : index
    %c0_111 = arith.constant 0 : index
    %c0_112 = arith.constant 0 : index
    %160 = vector.load %arg6[%c3_110, %c0_111, %c0_112] : memref<9x8x8xf32, #tpu.memory_space<vmem>>, vector<1x8x8xf32>
    %161 = vector.shape_cast %160 : vector<1x8x8xf32> to vector<8x8xf32>
    %cst_113 = arith.constant dense<0.000000e+00> : vector<8x512xf32>
    %162 = tpu.matmul %161, %159, %cst_113 {dimension_numbers = #tpu.dot_dimension_numbers<[1], [0], [0], [1], [0, 0, 1, 1], [], []>} : vector<8x8xf32>, vector<8x512xf32>, vector<8x512xf32> -> vector<8x512xf32>
    %163 = arith.addf %156, %162 : vector<8x512xf32>
    %c4_114 = arith.constant 4 : index
    %c0_115 = arith.constant 0 : index
    %c0_116 = arith.constant 0 : index
    %164 = vector.load %arg6[%c4_114, %c0_115, %c0_116] : memref<9x8x8xf32, #tpu.memory_space<vmem>>, vector<1x8x8xf32>
    %165 = vector.shape_cast %164 : vector<1x8x8xf32> to vector<8x8xf32>
    %cst_117 = arith.constant dense<0.000000e+00> : vector<8x512xf32>
    %166 = tpu.matmul %165, %136, %cst_117 {dimension_numbers = #tpu.dot_dimension_numbers<[1], [0], [0], [1], [0, 0, 1, 1], [], []>} : vector<8x8xf32>, vector<8x512xf32>, vector<8x512xf32> -> vector<8x512xf32>
    %167 = arith.addf %163, %166 : vector<8x512xf32>
    %c511_i32_118 = arith.constant 511 : i32
    %168 = tpu.dynamic_rotate %136 by %c511_i32_118 dim 1 : vector<8x512xf32>, i32 -> vector<8x512xf32>
    %169 = vector.broadcast %4 : vector<1x512xf32> to vector<8x512xf32>
    %170 = arith.mulf %168, %169 : vector<8x512xf32>
    %c5_119 = arith.constant 5 : index
    %c0_120 = arith.constant 0 : index
    %c0_121 = arith.constant 0 : index
    %171 = vector.load %arg6[%c5_119, %c0_120, %c0_121] : memref<9x8x8xf32, #tpu.memory_space<vmem>>, vector<1x8x8xf32>
    %172 = vector.shape_cast %171 : vector<1x8x8xf32> to vector<8x8xf32>
    %cst_122 = arith.constant dense<0.000000e+00> : vector<8x512xf32>
    %173 = tpu.matmul %172, %170, %cst_122 {dimension_numbers = #tpu.dot_dimension_numbers<[1], [0], [0], [1], [0, 0, 1, 1], [], []>} : vector<8x8xf32>, vector<8x512xf32>, vector<8x512xf32> -> vector<8x512xf32>
    %174 = arith.addf %167, %173 : vector<8x512xf32>
    %c497_i32_123 = arith.constant 497 : i32
    %175 = tpu.dynamic_rotate %136 by %c497_i32_123 dim 1 : vector<8x512xf32>, i32 -> vector<8x512xf32>
    %176 = vector.broadcast %5 : vector<1x512xf32> to vector<8x512xf32>
    %177 = arith.mulf %175, %176 : vector<8x512xf32>
    %c6_124 = arith.constant 6 : index
    %c0_125 = arith.constant 0 : index
    %c0_126 = arith.constant 0 : index
    %178 = vector.load %arg6[%c6_124, %c0_125, %c0_126] : memref<9x8x8xf32, #tpu.memory_space<vmem>>, vector<1x8x8xf32>
    %179 = vector.shape_cast %178 : vector<1x8x8xf32> to vector<8x8xf32>
    %cst_127 = arith.constant dense<0.000000e+00> : vector<8x512xf32>
    %180 = tpu.matmul %179, %177, %cst_127 {dimension_numbers = #tpu.dot_dimension_numbers<[1], [0], [0], [1], [0, 0, 1, 1], [], []>} : vector<8x8xf32>, vector<8x512xf32>, vector<8x512xf32> -> vector<8x512xf32>
    %181 = arith.addf %174, %180 : vector<8x512xf32>
    %c496_i32_128 = arith.constant 496 : i32
    %182 = tpu.dynamic_rotate %136 by %c496_i32_128 dim 1 : vector<8x512xf32>, i32 -> vector<8x512xf32>
    %183 = vector.broadcast %6 : vector<1x512xf32> to vector<8x512xf32>
    %184 = arith.mulf %182, %183 : vector<8x512xf32>
    %c7_129 = arith.constant 7 : index
    %c0_130 = arith.constant 0 : index
    %c0_131 = arith.constant 0 : index
    %185 = vector.load %arg6[%c7_129, %c0_130, %c0_131] : memref<9x8x8xf32, #tpu.memory_space<vmem>>, vector<1x8x8xf32>
    %186 = vector.shape_cast %185 : vector<1x8x8xf32> to vector<8x8xf32>
    %cst_132 = arith.constant dense<0.000000e+00> : vector<8x512xf32>
    %187 = tpu.matmul %186, %184, %cst_132 {dimension_numbers = #tpu.dot_dimension_numbers<[1], [0], [0], [1], [0, 0, 1, 1], [], []>} : vector<8x8xf32>, vector<8x512xf32>, vector<8x512xf32> -> vector<8x512xf32>
    %188 = arith.addf %181, %187 : vector<8x512xf32>
    %c495_i32_133 = arith.constant 495 : i32
    %189 = tpu.dynamic_rotate %136 by %c495_i32_133 dim 1 : vector<8x512xf32>, i32 -> vector<8x512xf32>
    %190 = vector.broadcast %7 : vector<1x512xf32> to vector<8x512xf32>
    %191 = arith.mulf %189, %190 : vector<8x512xf32>
    %c8_134 = arith.constant 8 : index
    %c0_135 = arith.constant 0 : index
    %c0_136 = arith.constant 0 : index
    %192 = vector.load %arg6[%c8_134, %c0_135, %c0_136] : memref<9x8x8xf32, #tpu.memory_space<vmem>>, vector<1x8x8xf32>
    %193 = vector.shape_cast %192 : vector<1x8x8xf32> to vector<8x8xf32>
    %cst_137 = arith.constant dense<0.000000e+00> : vector<8x512xf32>
    %194 = tpu.matmul %193, %191, %cst_137 {dimension_numbers = #tpu.dot_dimension_numbers<[1], [0], [0], [1], [0, 0, 1, 1], [], []>} : vector<8x8xf32>, vector<8x512xf32>, vector<8x512xf32> -> vector<8x512xf32>
    %195 = arith.addf %188, %194 : vector<8x512xf32>
    %c0_138 = arith.constant 0 : index
    %c0_139 = arith.constant 0 : index
    %196 = vector.load %arg7[%c0_138, %c0_139] : memref<8x1xf32, #tpu.memory_space<vmem>>, vector<8x1xf32>
    %197 = vector.broadcast %196 : vector<8x1xf32> to vector<8x512xf32>
    %198 = arith.addf %195, %197 : vector<8x512xf32>
    %cst_140 = arith.constant 0.000000e+00 : f32
    %199 = vector.broadcast %cst_140 : f32 to vector<8x512xf32>
    %200 = arith.maximumf %198, %199 : vector<8x512xf32>
    %c511_i32_141 = arith.constant 511 : i32
    %201 = tpu.dynamic_rotate %200 by %c511_i32_141 dim 1 : vector<8x512xf32>, i32 -> vector<8x512xf32>
    %202 = arith.maximumf %200, %201 : vector<8x512xf32>
    %c496_i32_142 = arith.constant 496 : i32
    %203 = tpu.dynamic_rotate %202 by %c496_i32_142 dim 1 : vector<8x512xf32>, i32 -> vector<8x512xf32>
    %204 = arith.maximumf %202, %203 : vector<8x512xf32>
    %c0_143 = arith.constant 0 : index
    %c0_144 = arith.constant 0 : index
    %205 = vector.load %arg9[%c0_143, %c0_144] : memref<256x64xf32, #tpu.memory_space<vmem>>, vector<256x64xf32>
    %206 = vector.extract_strided_slice %204 {offsets = [0, 0], sizes = [8, 256], strides = [1, 1]} : vector<8x512xf32> to vector<8x256xf32>
    %cst_145 = arith.constant dense<0.000000e+00> : vector<8x64xf32>
    %207 = tpu.matmul %206, %205, %cst_145 {dimension_numbers = #tpu.dot_dimension_numbers<[1], [0], [0], [1], [0, 0, 1, 1], [], []>} : vector<8x256xf32>, vector<256x64xf32>, vector<8x64xf32> -> vector<8x64xf32>
    %208 = vector.extract_strided_slice %204 {offsets = [0, 256], sizes = [8, 256], strides = [1, 1]} : vector<8x512xf32> to vector<8x256xf32>
    %cst_146 = arith.constant dense<0.000000e+00> : vector<8x64xf32>
    %209 = tpu.matmul %208, %205, %cst_146 {dimension_numbers = #tpu.dot_dimension_numbers<[1], [0], [0], [1], [0, 0, 1, 1], [], []>} : vector<8x256xf32>, vector<256x64xf32>, vector<8x64xf32> -> vector<8x64xf32>
    %210 = tpu.concatenate %207, %209 in 1 : vector<8x64xf32>, vector<8x64xf32> -> vector<8x128xf32>
    %c0_147 = arith.constant 0 : index
    %c0_148 = arith.constant 0 : index
    %211 = vector.load %arg10[%c0_147, %c0_148] : memref<8x128xf32, #tpu.memory_space<vmem>>, vector<8x128xf32>
    tpu.vector_store %arg10[%c0_147, %c0_148], %210 {strides = array<i32>} : memref<8x128xf32, #tpu.memory_space<vmem>>, vector<8x128xf32>,
    return
  }
  func.func @transform_0(%arg0: i32) -> (i32, i32) {
    %c0_i32 = arith.constant 0 : i32
    %c0_i32_0 = arith.constant 0 : i32
    return %c0_i32, %arg0 : i32, i32
  }
  func.func @transform_1(%arg0: i32) -> (i32, i32, i32) {
    %c0_i32 = arith.constant 0 : i32
    %c0_i32_0 = arith.constant 0 : i32
    %c0_i32_1 = arith.constant 0 : i32
    %c0_i32_2 = arith.constant 0 : i32
    return %c0_i32, %c0_i32_0, %c0_i32_1 : i32, i32, i32
  }
  func.func @transform_2(%arg0: i32) -> (i32, i32) {
    %c0_i32 = arith.constant 0 : i32
    %c0_i32_0 = arith.constant 0 : i32
    %c0_i32_1 = arith.constant 0 : i32
    return %c0_i32, %c0_i32_0 : i32, i32
  }
  func.func @transform_3(%arg0: i32) -> (i32, i32, i32) {
    %c0_i32 = arith.constant 0 : i32
    %c0_i32_0 = arith.constant 0 : i32
    %c0_i32_1 = arith.constant 0 : i32
    %c0_i32_2 = arith.constant 0 : i32
    return %c0_i32, %c0_i32_0, %c0_i32_1 : i32, i32, i32
  }
  func.func @transform_4(%arg0: i32) -> (i32, i32) {
    %c0_i32 = arith.constant 0 : i32
    %c0_i32_0 = arith.constant 0 : i32
    %c0_i32_1 = arith.constant 0 : i32
    return %c0_i32, %c0_i32_0 : i32, i32
  }
  func.func @transform_5(%arg0: i32) -> (i32, i32, i32) {
    %c0_i32 = arith.constant 0 : i32
    %c0_i32_0 = arith.constant 0 : i32
    %c0_i32_1 = arith.constant 0 : i32
    %c0_i32_2 = arith.constant 0 : i32
    return %c0_i32, %c0_i32_0, %c0_i32_1 : i32, i32, i32
  }
  func.func @transform_6(%arg0: i32) -> (i32, i32) {
    %c0_i32 = arith.constant 0 : i32
    %c0_i32_0 = arith.constant 0 : i32
    %c0_i32_1 = arith.constant 0 : i32
    return %c0_i32, %c0_i32_0 : i32, i32
  }
  func.func @transform_7(%arg0: i32) -> (i32, i32) {
    %c0_i32 = arith.constant 0 : i32
    %c0_i32_0 = arith.constant 0 : i32
    %c0_i32_1 = arith.constant 0 : i32
    return %c0_i32, %c0_i32_0 : i32, i32
  }
  func.func @transform_8(%arg0: i32) -> (i32, i32) {
    %c0_i32 = arith.constant 0 : i32
    %c0_i32_0 = arith.constant 0 : i32
    %c0_i32_1 = arith.constant 0 : i32
    return %c0_i32, %c0_i32_0 : i32, i32
  }
  func.func @transform_9(%arg0: i32) -> (i32, i32) {
    %c0_i32 = arith.constant 0 : i32
    %c0_i32_0 = arith.constant 0 : i32
    return %c0_i32, %arg0 : i32, i32
  }
}

</mosaic_0001>

<llo_original>
// kernel: tpu_custom_call.1
$region0: #{tpu_custom_call.1}
  #allocation0 [shape = 'u32[]', space=smem, size = 0x4, offset = 0x4, fixed_abs, tag = 'smem constant byte address 0x4 - core index']
  #allocation1 [shape = 'u32[144,128]{1,0:T(1,128)}', space=vmem, size = 0x12000, scoped, tag = 'internal scratch']
  %s0 = inlined_call_operand.vmem [shape: f32[8,1024], index: 0, kind: input, shape index: {}]
  %s1 = inlined_call_operand.vmem [shape: f32[9,8,8], index: 1, kind: input, shape index: {}]
  %s2 = inlined_call_operand.vmem [shape: f32[8,1], index: 2, kind: input, shape index: {}]
  %s3 = inlined_call_operand.vmem [shape: f32[9,8,8], index: 3, kind: input, shape index: {}]
  %s4 = inlined_call_operand.vmem [shape: f32[8,1], index: 4, kind: input, shape index: {}]
  %s5 = inlined_call_operand.vmem [shape: f32[9,8,8], index: 5, kind: input, shape index: {}]
  %s6 = inlined_call_operand.vmem [shape: f32[8,1], index: 6, kind: input, shape index: {}]
  %s7 = inlined_call_operand.vmem [shape: f32[9,512], index: 7, kind: input, shape index: {}]
  %s8 = inlined_call_operand.vmem [shape: f32[256,64], index: 8, kind: input, shape index: {}]
  %s9 = inlined_call_operand.hbm [shape: f32[8,256], index: 9, kind: output, shape index: {}]
  %s10 = sld [smem:[#allocation0]]
  $region69: #{tpu_custom_call.1} parent=0
    _
  %s12 = ssub.s32 1, %s10
  %s13 = scalar_select 0, %s12, %s10
  $region1: #{tpu_custom_call.1} parent=0
    #allocation2 [shape = 'u8[8192]{0}', space=vmem, size = 0x2000, scoped, tag = 'output window, operand 0']
    #allocation3 [shape = 's32[2]{0}', space=sflag, size = 0x8, scoped, tag = 'scoped memory for tpu_custom_call.1']
    %14 = vsyncpa [#allocation3], 0
    %s15 = scalar_lea.sflag [#allocation3], 1
    %16 = vsyncpa %s15, 0
    loop: start=0, step=1, limit=4
    $region2: #{tpu_custom_call.1} parent=1 // loop_pre_header
      _
    $region3: #{tpu_custom_call.1} parent=1 // loop_header
      %s18 = sphi 0, %s22
      %p19 = scmp.ge.s32.totalorder %s18, 4
      %s28 = sphi 0, %s30
      %s31 = sphi 0, %s28
      %s32 = sphi 0, %s31
      %s48 = sphi 0, %s32
      %s52 = sphi 0, %s52
      %s54 = sphi 0, %s52
      %s55 = sphi 0, %s54
      %s69 = sphi 0, %s55
      %s73 = sphi 0, %s73
      %s75 = sphi 0, %s73
      %s76 = sphi 0, %s75
      %s90 = sphi 0, %s76
      %s94 = sphi 0, %s94
      %s96 = sphi 0, %s94
      %s97 = sphi 0, %s96
      %s111 = sphi 0, %s97
      %s115 = sphi 0, %s115
      %s117 = sphi 0, %s115
      %s118 = sphi 0, %s117
      %s132 = sphi 0, %s118
      %s136 = sphi 0, %s136
      %s138 = sphi 0, %s136
      %s139 = sphi 0, %s138
      %s153 = sphi 0, %s139
      %s157 = sphi 0, %s157
      %s159 = sphi 0, %s157
      %s160 = sphi 0, %s159
      %s174 = sphi 0, %s160
      %s178 = sphi 0, %s178
      %s180 = sphi 0, %s178
      %s181 = sphi 0, %s180
      %s195 = sphi 0, %s181
      %s199 = sphi 0, %s199
      %s201 = sphi 0, %s199
      %s202 = sphi 0, %s201
      %s216 = sphi 0, %s202
      %s222 = sphi 0, %s224
      %s225 = sphi 0, %s222
      %s226 = sphi 0, %s225
      %s242 = sphi 0, %s226
    $region4: #{tpu_custom_call.1} parent=1 // loop_header_branch
      %21 = sbr.rel (%p19) target = $region8
    $region5: #{tpu_custom_call.1} parent=1 // loop_body
      %s23 = ssub.s32 %s18, 1
      %s24 = ssub.s32 %s18, 2
      %s25 = sadd.s32 %s18, 1
      %s26 = ssub.s32 %s18, %s25
      %p27 = scmp.eq.s32.totalorder %s26, 0
      %s29 = sadd.s32 %s28, 1
      %s30 = scalar_select %p27, %s28, %s29
      %p33 = pneg %p27
      %p34 = scmp.eq.s32.totalorder %s18, 1
      %p35 = por %p33, %p34
      %p36 = scmp.ne.s32.totalorder %s28, %s31
      %p37 = scmp.eq.s32.totalorder %s18, 0
      %p38 = por %p36, %p37
      %p39 = scmp.ne.s32.totalorder %s28, %s31
      %p40 = scmp.eq.s32.totalorder %s23, 1
      %p41 = por %p39, %p40
      %p42 = scmp.ne.s32.totalorder %s31, %s32
      %p43 = scmp.eq.s32.totalorder %s23, 0
      %p44 = por %p42, %p43
      %p45 = scmp.ne.s32.totalorder %s31, %s32
      %p46 = scmp.eq.s32.totalorder %s24, 1
      %p47 = por %p45, %p46
      %p49 = scmp.ne.s32.totalorder %s32, %s48
      %p50 = scmp.eq.s32.totalorder %s24, 0
      %p51 = por %p49, %p50
      %s53 = sadd.s32 %s52, 1
      %p56 = scmp.eq.s32.totalorder %s18, 1
      %p57 = scmp.ne.s32.totalorder %s52, %s54
      %p58 = scmp.eq.s32.totalorder %s18, 0
      %p59 = por %p57, %p58
      %p60 = scmp.ne.s32.totalorder %s52, %s54
      %p61 = scmp.eq.s32.totalorder %s23, 1
      %p62 = por %p60, %p61
      %p63 = scmp.ne.s32.totalorder %s54, %s55
      %p64 = scmp.eq.s32.totalorder %s23, 0
      %p65 = por %p63, %p64
      %p66 = scmp.ne.s32.totalorder %s54, %s55
      %p67 = scmp.eq.s32.totalorder %s24, 1
      %p68 = por %p66, %p67
      %p70 = scmp.ne.s32.totalorder %s55, %s69
      %p71 = scmp.eq.s32.totalorder %s24, 0
      %p72 = por %p70, %p71
      %s74 = sadd.s32 %s73, 1
      %p77 = scmp.eq.s32.totalorder %s18, 1
      %p78 = scmp.ne.s32.totalorder %s73, %s75
      %p79 = scmp.eq.s32.totalorder %s18, 0
      %p80 = por %p78, %p79
      %p81 = scmp.ne.s32.totalorder %s73, %s75
      %p82 = scmp.eq.s32.totalorder %s23, 1
      %p83 = por %p81, %p82
      %p84 = scmp.ne.s32.totalorder %s75, %s76
      %p85 = scmp.eq.s32.totalorder %s23, 0
      %p86 = por %p84, %p85
      %p87 = scmp.ne.s32.totalorder %s75, %s76
      %p88 = scmp.eq.s32.totalorder %s24, 1
      %p89 = por %p87, %p88
      %p91 = scmp.ne.s32.totalorder %s76, %s90
      %p92 = scmp.eq.s32.totalorder %s24, 0
      %p93 = por %p91, %p92
      %s95 = sadd.s32 %s94, 1
      %p98 = scmp.eq.s32.totalorder %s18, 1
      %p99 = scmp.ne.s32.totalorder %s94, %s96
      %p100 = scmp.eq.s32.totalorder %s18, 0
      %p101 = por %p99, %p100
      %p102 = scmp.ne.s32.totalorder %s94, %s96
      %p103 = scmp.eq.s32.totalorder %s23, 1
      %p104 = por %p102, %p103
      %p105 = scmp.ne.s32.totalorder %s96, %s97
      %p106 = scmp.eq.s32.totalorder %s23, 0
      %p107 = por %p105, %p106
      %p108 = scmp.ne.s32.totalorder %s96, %s97
      %p109 = scmp.eq.s32.totalorder %s24, 1
      %p110 = por %p108, %p109
      %p112 = scmp.ne.s32.totalorder %s97, %s111
      %p113 = scmp.eq.s32.totalorder %s24, 0
      %p114 = por %p112, %p113
      %s116 = sadd.s32 %s115, 1
      %p119 = scmp.eq.s32.totalorder %s18, 1
      %p120 = scmp.ne.s32.totalorder %s115, %s117
      %p121 = scmp.eq.s32.totalorder %s18, 0
      %p122 = por %p120, %p121
      %p123 = scmp.ne.s32.totalorder %s115, %s117
      %p124 = scmp.eq.s32.totalorder %s23, 1
      %p125 = por %p123, %p124
      %p126 = scmp.ne.s32.totalorder %s117, %s118
      %p127 = scmp.eq.s32.totalorder %s23, 0
      %p128 = por %p126, %p127
      %p129 = scmp.ne.s32.totalorder %s117, %s118
      %p130 = scmp.eq.s32.totalorder %s24, 1
      %p131 = por %p129, %p130
      %p133 = scmp.ne.s32.totalorder %s118, %s132
      %p134 = scmp.eq.s32.totalorder %s24, 0
      %p135 = por %p133, %p134
      %s137 = sadd.s32 %s136, 1
      %p140 = scmp.eq.s32.totalorder %s18, 1
      %p141 = scmp.ne.s32.totalorder %s136, %s138
      %p142 = scmp.eq.s32.totalorder %s18, 0
      %p143 = por %p141, %p142
      %p144 = scmp.ne.s32.totalorder %s136, %s138
      %p145 = scmp.eq.s32.totalorder %s23, 1
      %p146 = por %p144, %p145
      %p147 = scmp.ne.s32.totalorder %s138, %s139
      %p148 = scmp.eq.s32.totalorder %s23, 0
      %p149 = por %p147, %p148
      %p150 = scmp.ne.s32.totalorder %s138, %s139
      %p151 = scmp.eq.s32.totalorder %s24, 1
      %p152 = por %p150, %p151
      %p154 = scmp.ne.s32.totalorder %s139, %s153
      %p155 = scmp.eq.s32.totalorder %s24, 0
      %p156 = por %p154, %p155
      %s158 = sadd.s32 %s157, 1
      %p161 = scmp.eq.s32.totalorder %s18, 1
      %p162 = scmp.ne.s32.totalorder %s157, %s159
      %p163 = scmp.eq.s32.totalorder %s18, 0
      %p164 = por %p162, %p163
      %p165 = scmp.ne.s32.totalorder %s157, %s159
      %p166 = scmp.eq.s32.totalorder %s23, 1
      %p167 = por %p165, %p166
      %p168 = scmp.ne.s32.totalorder %s159, %s160
      %p169 = scmp.eq.s32.totalorder %s23, 0
      %p170 = por %p168, %p169
      %p171 = scmp.ne.s32.totalorder %s159, %s160
      %p172 = scmp.eq.s32.totalorder %s24, 1
      %p173 = por %p171, %p172
      %p175 = scmp.ne.s32.totalorder %s160, %s174
      %p176 = scmp.eq.s32.totalorder %s24, 0
      %p177 = por %p175, %p176
      %s179 = sadd.s32 %s178, 1
      %p182 = scmp.eq.s32.totalorder %s18, 1
      %p183 = scmp.ne.s32.totalorder %s178, %s180
      %p184 = scmp.eq.s32.totalorder %s18, 0
      %p185 = por %p183, %p184
      %p186 = scmp.ne.s32.totalorder %s178, %s180
      %p187 = scmp.eq.s32.totalorder %s23, 1
      %p188 = por %p186, %p187
      %p189 = scmp.ne.s32.totalorder %s180, %s181
      %p190 = scmp.eq.s32.totalorder %s23, 0
      %p191 = por %p189, %p190
      %p192 = scmp.ne.s32.totalorder %s180, %s181
      %p193 = scmp.eq.s32.totalorder %s24, 1
      %p194 = por %p192, %p193
      %p196 = scmp.ne.s32.totalorder %s181, %s195
      %p197 = scmp.eq.s32.totalorder %s24, 0
      %p198 = por %p196, %p197
      %s200 = sadd.s32 %s199, 1
      %p203 = scmp.eq.s32.totalorder %s18, 1
      %p204 = scmp.ne.s32.totalorder %s199, %s201
      %p205 = scmp.eq.s32.totalorder %s18, 0
      %p206 = por %p204, %p205
      %p207 = scmp.ne.s32.totalorder %s199, %s201
      %p208 = scmp.eq.s32.totalorder %s23, 1
      %p209 = por %p207, %p208
      %p210 = scmp.ne.s32.totalorder %s201, %s202
      %p211 = scmp.eq.s32.totalorder %s23, 0
      %p212 = por %p210, %p211
      %p213 = scmp.ne.s32.totalorder %s201, %s202
      %p214 = scmp.eq.s32.totalorder %s24, 1
      %p215 = por %p213, %p214
      %p217 = scmp.ne.s32.totalorder %s202, %s216
      %p218 = scmp.eq.s32.totalorder %s24, 0
      %p219 = por %p217, %p218
      %s220 = ssub.s32 %s18, %s25
      %p221 = scmp.eq.s32.totalorder %s220, 0
      %s223 = sadd.s32 %s222, 1
      %s224 = scalar_select %p221, %s222, %s223
      %p227 = pneg %p221
      %p228 = scmp.eq.s32.totalorder %s18, 1
      %p229 = por %p227, %p228
      %p230 = scmp.ne.s32.totalorder %s222, %s225
      %p231 = scmp.eq.s32.totalorder %s18, 0
      %p232 = por %p230, %p231
      %p233 = scmp.ne.s32.totalorder %s222, %s225
      %p234 = scmp.eq.s32.totalorder %s23, 1
      %p235 = por %p233, %p234
      %p236 = scmp.ne.s32.totalorder %s225, %s226
      %p237 = scmp.eq.s32.totalorder %s23, 0
      %p238 = por %p236, %p237
      %p239 = scmp.ne.s32.totalorder %s225, %s226
      %p240 = scmp.eq.s32.totalorder %s24, 1
      %p241 = por %p239, %p240
      %p243 = scmp.ne.s32.totalorder %s226, %s242
      %p244 = scmp.eq.s32.totalorder %s24, 0
      %p245 = por %p243, %p244
      %p246 = scmp.le.s32.totalorder 1, %s18
      %p247 = scmp.lt.s32.totalorder %s18, 3
      %p248 = pnand %p246, %p247
      %p249 = pneg %p248
      // Predicated region
      $region9: #{tpu_custom_call.1} parent=5 // pred_check
        _
      $region10: #{tpu_custom_call.1} parent=5 // pred_check_branch
        %251 = sbr.rel (%p248) target = $region12
      $region11: #{tpu_custom_call.1} parent=5 // pred_region
        %s252 = ssub.s32 %s18, 1
        // Predicated region
        $region13: #{tpu_custom_call.1} parent=11 // pred_check
          %p253 = pneg %p65
        $region14: #{tpu_custom_call.1} parent=11 // pred_check_branch
          %255 = sbr.rel (%p253) target = $region16
        $region15: #{tpu_custom_call.1} parent=11 // pred_region
          _
        $region16: #{tpu_custom_call.1} parent=11 // pred_fallthru
          _
        // Predicated region
        $region17: #{tpu_custom_call.1} parent=11 // pred_check
          %p256 = pneg %p86
        $region18: #{tpu_custom_call.1} parent=11 // pred_check_branch
          %258 = sbr.rel (%p256) target = $region20
        $region19: #{tpu_custom_call.1} parent=11 // pred_region
          _
        $region20: #{tpu_custom_call.1} parent=11 // pred_fallthru
          _
        // Predicated region
        $region21: #{tpu_custom_call.1} parent=11 // pred_check
          %p259 = pneg %p107
        $region22: #{tpu_custom_call.1} parent=11 // pred_check_branch
          %261 = sbr.rel (%p259) target = $region24
        $region23: #{tpu_custom_call.1} parent=11 // pred_region
          _
        $region24: #{tpu_custom_call.1} parent=11 // pred_fallthru
          _
        // Predicated region
        $region25: #{tpu_custom_call.1} parent=11 // pred_check
          %p262 = pneg %p128
        $region26: #{tpu_custom_call.1} parent=11 // pred_check_branch
          %264 = sbr.rel (%p262) target = $region28
        $region27: #{tpu_custom_call.1} parent=11 // pred_region
          _
        $region28: #{tpu_custom_call.1} parent=11 // pred_fallthru
          _
        // Predicated region
        $region29: #{tpu_custom_call.1} parent=11 // pred_check
          %p265 = pneg %p149
        $region30: #{tpu_custom_call.1} parent=11 // pred_check_branch
          %267 = sbr.rel (%p265) target = $region32
        $region31: #{tpu_custom_call.1} parent=11 // pred_region
          _
        $region32: #{tpu_custom_call.1} parent=11 // pred_fallthru
          _
        // Predicated region
        $region33: #{tpu_custom_call.1} parent=11 // pred_check
          %p268 = pneg %p170
        $region34: #{tpu_custom_call.1} parent=11 // pred_check_branch
          %270 = sbr.rel (%p268) target = $region36
        $region35: #{tpu_custom_call.1} parent=11 // pred_region
          _
        $region36: #{tpu_custom_call.1} parent=11 // pred_fallthru
          _
        // Predicated region
        $region37: #{tpu_custom_call.1} parent=11 // pred_check
          %p271 = pneg %p191
        $region38: #{tpu_custom_call.1} parent=11 // pred_check_branch
          %273 = sbr.rel (%p271) target = $region40
        $region39: #{tpu_custom_call.1} parent=11 // pred_region
          _
        $region40: #{tpu_custom_call.1} parent=11 // pred_fallthru
          _
        // Predicated region
        $region41: #{tpu_custom_call.1} parent=11 // pred_check
          %p274 = pneg %p212
        $region42: #{tpu_custom_call.1} parent=11 // pred_check_branch
          %276 = sbr.rel (%p274) target = $region44
        $region43: #{tpu_custom_call.1} parent=11 // pred_region
          _
        $region44: #{tpu_custom_call.1} parent=11 // pred_fallthru
          _
      $region12: #{tpu_custom_call.1} parent=5 // pred_fallthru
        _
      %p277 = scmp.lt.s32.totalorder %s18, 2
      // Predicated region
      $region45: #{tpu_custom_call.1} parent=5 // pred_check
        %p278 = pneg %p277
      $region46: #{tpu_custom_call.1} parent=5 // pred_check_branch
        %280 = sbr.rel (%p278) target = $region48
      $region47: #{tpu_custom_call.1} parent=5 // pred_region
        // Predicated region
        $region49: #{tpu_custom_call.1} parent=47 // pred_check
          %p281 = pneg %p38
        $region50: #{tpu_custom_call.1} parent=47 // pred_check_branch
          %283 = sbr.rel (%p281) target = $region52
        $region51: #{tpu_custom_call.1} parent=47 // pred_region
          %s284 = smul.u32 4, %s18
          %p285 = scmp.lt.s32.totalorder %s284, 7
          %s286 = scalar_select %p285, %s284, 7
          %s287 = smul.addr %s286, 8
          %s288 = scalar_lea.vmem %s0, %s287
          %s289 = smul.u32 4, %s18
        $region52: #{tpu_custom_call.1} parent=47 // pred_fallthru
          _
      $region48: #{tpu_custom_call.1} parent=5 // pred_fallthru
        _
      %p290 = scmp.le.s32.totalorder 1, %s18
      %p291 = scmp.lt.s32.totalorder %s18, 3
      %p292 = pnand %p290, %p291
      %p293 = pneg %p292
      // Predicated region
      $region53: #{tpu_custom_call.1} parent=5 // pred_check
        _
      $region54: #{tpu_custom_call.1} parent=5 // pred_check_branch
        %295 = sbr.rel (%p292) target = $region56
      $region55: #{tpu_custom_call.1} parent=5 // pred_region
        %s296 = ssub.s32 %s18, 1
        %s297 = smul.u32 4, %s23
        %p298 = scmp.lt.s32.totalorder %s297, 7
        %s299 = scalar_select %p298, %s297, 7
        %s300 = smul.addr %s299, 8
        %s301 = scalar_lea.vmem %s0, %s300
        %p302 = pneg %p44
        %p303 = pneg %p41
        %p304 = pneg %p65
        %p305 = pneg %p62
        %p306 = pneg %p86
        %p307 = pneg %p83
        %p308 = pneg %p107
        %p309 = pneg %p104
        %p310 = pneg %p128
        %p311 = pneg %p125
        %p312 = pneg %p149
        %p313 = pneg %p146
        %p314 = pneg %p170
        %p315 = pneg %p167
        %p316 = pneg %p191
        %p317 = pneg %p188
        %p318 = pneg %p212
        %p319 = pneg %p209
        %p320 = pneg %p238
        %p321 = pneg %p235
        %s322 = sand.u32 %s225, 1
        %s323 = scalar_lea.sflag [#allocation3], %s322
        %s324 = sand.u32 %s225, 1
        %s325 = smul.addr %s324, 8
        %s326 = scalar_lea.vmem [#allocation2], %s325
        %s327 = smul.u32 4, %s23
        %p328 = scmp.lt.s32.totalorder %s327, 7
        %s329 = scalar_select %p328, %s327, 7
        %s330 = smul.addr %s329, 8
        %s331 = scalar_lea.vmem %s0, %s330
        %s332 = smul.u32 4, %s23
        %v333 = vld [vmem:[%s7] ss:$8 sm:$0xf]
        %s334 = scalar_lea.vmem %s7, 1
        %v335 = vld [vmem:[%s334] ss:$8 sm:$0xf]
        %s336 = scalar_lea.vmem %s7, 2
        %v337 = vld [vmem:[%s336] ss:$8 sm:$0xf]
        %s338 = scalar_lea.vmem %s7, 3
        %v339 = vld [vmem:[%s338] ss:$8 sm:$0xf]
        %s340 = scalar_lea.vmem %s7, 5
        %v341 = vld [vmem:[%s340] ss:$8 sm:$0xf]
        %s342 = scalar_lea.vmem %s7, 6
        %v343 = vld [vmem:[%s342] ss:$8 sm:$0xf]
        %s344 = scalar_lea.vmem %s7, 7
        %v345 = vld [vmem:[%s344] ss:$8 sm:$0xf]
        %s346 = scalar_lea.vmem %s7, 32
        %v347 = vld [vmem:[%s346] ss:$8 sm:$0xf]
        %v348 = vld [vmem:[%s331] sm:$0xff]
        %v349 = vld [vmem:[%s331 + $0x8] sm:$0xff]
        %v350 = vld [vmem:[%s331 + $0x10] sm:$0xff]
        %v351 = vld [vmem:[%s331 + $0x18] sm:$0xff]
        %352 = vrot.lane.b32.xlu0 %v348, 17
        %v353 = vpop.permute.xlu0 %352
        %354 = vrot.lane.b32.xlu0 %v349, 17
        %v355 = vpop.permute.xlu0 %354
        %356 = vrot.lane.b32.xlu0 %v350, 17
        %v357 = vpop.permute.xlu0 %356
        %358 = vrot.lane.b32.xlu0 %v351, 17
        %v359 = vpop.permute.xlu0 %358
        %v360 = vlaneseq
        %v361 = vand.u32 %v360, 127
        %vm362 = vcmp.lt.s32.totalorder %v361, 17
        %v363 = vsel %vm362, %v357, %v359
        %v364 = vsel %vm362, %v355, %v357
        %v365 = vsel %vm362, %v353, %v355
        %v366 = vsel %vm362, %v359, %v353
        %v368 = vlaneseq
        %v369 = vshrl.u32 %v368, 7
        %v370 = vsub.s32 0, %v369
        %v371 = vrot.slane %v333, %v370
        %v372 = vlaneseq
        %v373 = vshrl.u32 %v372, 7
        %v374 = vsub.s32 1, %v373
        %v375 = vrot.slane %v333, %v374
        %v376 = vlaneseq
        %v377 = vshrl.u32 %v376, 7
        %v378 = vsub.s32 2, %v377
        %v379 = vrot.slane %v333, %v378
        %v380 = vlaneseq
        %v381 = vshrl.u32 %v380, 7
        %v382 = vsub.s32 3, %v381
        %v383 = vrot.slane %v333, %v382
        %v388 = vmul.f32 %v366, %v371
        %v389 = vmul.f32 %v365, %v375
        %v390 = vmul.f32 %v364, %v379
        %v391 = vmul.f32 %v363, %v383
        %v392 = vld [vmem:[%s1] sm:$0xff]
        %393 = vrot.lane.b32.xlu0 %v348, 16
        %v394 = vpop.permute.xlu0 %393
        %395 = vrot.lane.b32.xlu0 %v349, 16
        %v396 = vpop.permute.xlu0 %395
        %397 = vrot.lane.b32.xlu0 %v350, 16
        %v398 = vpop.permute.xlu0 %397
        %399 = vrot.lane.b32.xlu0 %v351, 16
        %v400 = vpop.permute.xlu0 %399
        %vm401 = vcmp.lt.s32.totalorder %v361, 16
        %v402 = vsel %vm401, %v398, %v400
        %v403 = vsel %vm401, %v396, %v398
        %v404 = vsel %vm401, %v394, %v396
        %v405 = vsel %vm401, %v400, %v394
        %v407 = vlaneseq
        %v408 = vshrl.u32 %v407, 7
        %v409 = vsub.s32 0, %v408
        %v410 = vrot.slane %v335, %v409
        %v411 = vlaneseq
        %v412 = vshrl.u32 %v411, 7
        %v413 = vsub.s32 1, %v412
        %v414 = vrot.slane %v335, %v413
        %v415 = vlaneseq
        %v416 = vshrl.u32 %v415, 7
        %v417 = vsub.s32 2, %v416
        %v418 = vrot.slane %v335, %v417
        %v419 = vlaneseq
        %v420 = vshrl.u32 %v419, 7
        %v421 = vsub.s32 3, %v420
        %v422 = vrot.slane %v335, %v421
        %v427 = vmul.f32 %v405, %v410
        %v428 = vmul.f32 %v404, %v414
        %v429 = vmul.f32 %v403, %v418
        %v430 = vmul.f32 %v402, %v422
        %s431 = scalar_lea.vmem %s1, 8
        %v432 = vld [vmem:[%s431] sm:$0xff]
        %vm433 = vcmask 64512
        %v435 = vsel %vm433, %v432, 0
        %437 = vmatprep.subr.mxu0 %v428
        %438 = vmatpush1.msra.mxu0 %v427
        %439 = vmatprep.subr.mxu0 0.0
        %440 = vmatpush1.msra.mxu0 0.0
        %441 = vmatprep.subr.mxu0 0.0
        %442 = vmatpush1.msra.mxu0 0.0
        %443 = vmatprep.subr.mxu0 0.0
        %444 = vmatpush1.msra.mxu0 0.0
        %445 = vmatprep.subr.mxu0 0.0
        %446 = vmatpush1.msra.mxu0 0.0
        %447 = vmatprep.subr.mxu0 0.0
        %448 = vmatpush1.msra.mxu0 0.0
        %449 = vmatprep.subr.mxu0 0.0
        %450 = vmatpush1.msra.mxu0 0.0
        %451 = vmatprep.subr.mxu0 0.0
        %452 = vmatpush1.msra.mxu0 0.0
        %453 = vmatprep.subr.mxu0 0.0
        %454 = vmatpush1.msra.mxu0 0.0
        %455 = vmatprep.subr.mxu0 0.0
        %456 = vmatpush1.msra.mxu0 0.0
        %457 = vmatprep.subr.mxu0 0.0
        %458 = vmatpush1.msra.mxu0 0.0
        %459 = vmatprep.subr.mxu0 0.0
        %460 = vmatpush1.msra.mxu0 0.0
        %461 = vmatprep.subr.mxu0 0.0
        %462 = vmatpush1.msra.mxu0 0.0
        %463 = vmatprep.subr.mxu0 0.0
        %464 = vmatpush1.msra.mxu0 0.0
        %465 = vmatprep.subr.mxu0 0.0
        %466 = vmatpush1.msra.mxu0 0.0
        %467 = vmatprep.subr.mxu0 0.0
        %468 = vmatpush1.msra.mxu0 0.0
        %469 = vmatprep.subr.mxu0 0.0
        %470 = vmatpush1.msra.mxu0 0.0
        %471 = vmatprep.subr.mxu0 0.0
        %472 = vmatpush1.msra.mxu0 0.0
        %473 = vmatprep.subr.mxu0 0.0
        %474 = vmatpush1.msra.mxu0 0.0
        %475 = vmatprep.subr.mxu0 0.0
        %476 = vmatpush1.msra.mxu0 0.0
        %477 = vmatprep.subr.mxu0 0.0
        %478 = vmatpush1.msra.mxu0 0.0
        %479 = vmatprep.subr.mxu0 0.0
        %480 = vmatpush1.msra.mxu0 0.0
        %481 = vmatprep.subr.mxu0 0.0
        %482 = vmatpush1.msra.mxu0 0.0
        %483 = vmatprep.subr.mxu0 0.0
        %484 = vmatpush1.msra.mxu0 0.0
        %485 = vmatprep.subr.mxu0 0.0
        %486 = vmatpush1.msra.mxu0 0.0
        %487 = vmatprep.subr.mxu0 0.0
        %488 = vmatpush1.msra.mxu0 0.0
        %489 = vmatprep.subr.mxu0 0.0
        %490 = vmatpush1.msra.mxu0 0.0
        %491 = vmatprep.subr.mxu0 0.0
        %492 = vmatpush1.msra.mxu0 0.0
        %493 = vmatprep.subr.mxu0 0.0
        %494 = vmatpush1.msra.mxu0 0.0
        %495 = vmatprep.subr.mxu0 0.0
        %496 = vmatpush1.msra.mxu0 0.0
        %497 = vmatprep.subr.mxu0 0.0
        %498 = vmatpush1.msra.mxu0 0.0
        %499 = vmatprep.subr.mxu0 0.0
        %500 = vmatpush1.msra.mxu0 0.0
        %501 = vmatprep.mubr.f32.mxu0 0.0
        %502 = vmatmul.mubr.f32.gmra.mrb[0].mxu0 %v435
        %v503 = vpop.f32.mrb[0].mxu0
        %v504 = vadd.f32 0.0, %v503
        %v505 = vpop.f32.mrb[0].mxu0
        %v506 = vadd.f32 0.0, %v505
        %507 = vdwg.mxu0
        %508 = vmatprep.subr.mxu0 %v430
        %509 = vmatpush1.msra.mxu0 %v429
        %510 = vmatprep.subr.mxu0 0.0
        %511 = vmatpush1.msra.mxu0 0.0
        %512 = vmatprep.subr.mxu0 0.0
        %513 = vmatpush1.msra.mxu0 0.0
        %514 = vmatprep.subr.mxu0 0.0
        %515 = vmatpush1.msra.mxu0 0.0
        %516 = vmatprep.subr.mxu0 0.0
        %517 = vmatpush1.msra.mxu0 0.0
        %518 = vmatprep.subr.mxu0 0.0
        %519 = vmatpush1.msra.mxu0 0.0
        %520 = vmatprep.subr.mxu0 0.0
        %521 = vmatpush1.msra.mxu0 0.0
        %522 = vmatprep.subr.mxu0 0.0
        %523 = vmatpush1.msra.mxu0 0.0
        %524 = vmatprep.subr.mxu0 0.0
        %525 = vmatpush1.msra.mxu0 0.0
        %526 = vmatprep.subr.mxu0 0.0
        %527 = vmatpush1.msra.mxu0 0.0
        %528 = vmatprep.subr.mxu0 0.0
        %529 = vmatpush1.msra.mxu0 0.0
        %530 = vmatprep.subr.mxu0 0.0
        %531 = vmatpush1.msra.mxu0 0.0
        %532 = vmatprep.subr.mxu0 0.0
        %533 = vmatpush1.msra.mxu0 0.0
        %534 = vmatprep.subr.mxu0 0.0
        %535 = vmatpush1.msra.mxu0 0.0
        %536 = vmatprep.subr.mxu0 0.0
        %537 = vmatpush1.msra.mxu0 0.0
        %538 = vmatprep.subr.mxu0 0.0
        %539 = vmatpush1.msra.mxu0 0.0
        %540 = vmatprep.subr.mxu0 0.0
        %541 = vmatpush1.msra.mxu0 0.0
        %542 = vmatprep.subr.mxu0 0.0
        %543 = vmatpush1.msra.mxu0 0.0
        %544 = vmatprep.subr.mxu0 0.0
        %545 = vmatpush1.msra.mxu0 0.0
        %546 = vmatprep.subr.mxu0 0.0
        %547 = vmatpush1.msra.mxu0 0.0
        %548 = vmatprep.subr.mxu0 0.0
        %549 = vmatpush1.msra.mxu0 0.0
        %550 = vmatprep.subr.mxu0 0.0
        %551 = vmatpush1.msra.mxu0 0.0
        %552 = vmatprep.subr.mxu0 0.0
        %553 = vmatpush1.msra.mxu0 0.0
        %554 = vmatprep.subr.mxu0 0.0
        %555 = vmatpush1.msra.mxu0 0.0
        %556 = vmatprep.subr.mxu0 0.0
        %557 = vmatpush1.msra.mxu0 0.0
        %558 = vmatprep.subr.mxu0 0.0
        %559 = vmatpush1.msra.mxu0 0.0
        %560 = vmatprep.subr.mxu0 0.0
        %561 = vmatpush1.msra.mxu0 0.0
        %562 = vmatprep.subr.mxu0 0.0
        %563 = vmatpush1.msra.mxu0 0.0
        %564 = vmatprep.subr.mxu0 0.0
        %565 = vmatpush1.msra.mxu0 0.0
        %566 = vmatprep.subr.mxu0 0.0
        %567 = vmatpush1.msra.mxu0 0.0
        %568 = vmatprep.subr.mxu0 0.0
        %569 = vmatpush1.msra.mxu0 0.0
        %570 = vmatprep.subr.mxu0 0.0
        %571 = vmatpush1.msra.mxu0 0.0
        %572 = vmatprep.mubr.f32.mxu0 0.0
        %573 = vmatmul.mubr.f32.gmra.mrb[0].mxu0 %v435
        %v574 = vpop.f32.mrb[0].mxu0
        %v575 = vadd.f32 0.0, %v574
        %v576 = vpop.f32.mrb[0].mxu0
        %v577 = vadd.f32 0.0, %v576
        %578 = vdwg.mxu0
        %v580 = vsel %vm433, %v392, 0
        %582 = vmatprep.subr.mxu0 %v389
        %583 = vmatpush1.msra.mxu0 %v388
        %584 = vmatprep.subr.mxu0 0.0
        %585 = vmatpush1.msra.mxu0 0.0
        %586 = vmatprep.subr.mxu0 0.0
        %587 = vmatpush1.msra.mxu0 0.0
        %588 = vmatprep.subr.mxu0 0.0
        %589 = vmatpush1.msra.mxu0 0.0
        %590 = vmatprep.subr.mxu0 0.0
        %591 = vmatpush1.msra.mxu0 0.0
        %592 = vmatprep.subr.mxu0 0.0
        %593 = vmatpush1.msra.mxu0 0.0
        %594 = vmatprep.subr.mxu0 0.0
        %595 = vmatpush1.msra.mxu0 0.0
        %596 = vmatprep.subr.mxu0 0.0
        %597 = vmatpush1.msra.mxu0 0.0
        %598 = vmatprep.subr.mxu0 0.0
        %599 = vmatpush1.msra.mxu0 0.0
        %600 = vmatprep.subr.mxu0 0.0
        %601 = vmatpush1.msra.mxu0 0.0
        %602 = vmatprep.subr.mxu0 0.0
        %603 = vmatpush1.msra.mxu0 0.0
        %604 = vmatprep.subr.mxu0 0.0
        %605 = vmatpush1.msra.mxu0 0.0
        %606 = vmatprep.subr.mxu0 0.0
        %607 = vmatpush1.msra.mxu0 0.0
        %608 = vmatprep.subr.mxu0 0.0
        %609 = vmatpush1.msra.mxu0 0.0
        %610 = vmatprep.subr.mxu0 0.0
        %611 = vmatpush1.msra.mxu0 0.0
        %612 = vmatprep.subr.mxu0 0.0
        %613 = vmatpush1.msra.mxu0 0.0
        %614 = vmatprep.subr.mxu0 0.0
        %615 = vmatpush1.msra.mxu0 0.0
        %616 = vmatprep.subr.mxu0 0.0
        %617 = vmatpush1.msra.mxu0 0.0
        %618 = vmatprep.subr.mxu0 0.0
        %619 = vmatpush1.msra.mxu0 0.0
        %620 = vmatprep.subr.mxu0 0.0
        %621 = vmatpush1.msra.mxu0 0.0
        %622 = vmatprep.subr.mxu0 0.0
        %623 = vmatpush1.msra.mxu0 0.0
        %624 = vmatprep.subr.mxu0 0.0
        %625 = vmatpush1.msra.mxu0 0.0
        %626 = vmatprep.subr.mxu0 0.0
        %627 = vmatpush1.msra.mxu0 0.0
        %628 = vmatprep.subr.mxu0 0.0
        %629 = vmatpush1.msra.mxu0 0.0
        %630 = vmatprep.subr.mxu0 0.0
        %631 = vmatpush1.msra.mxu0 0.0
        %632 = vmatprep.subr.mxu0 0.0
        %633 = vmatpush1.msra.mxu0 0.0
        %634 = vmatprep.subr.mxu0 0.0
        %635 = vmatpush1.msra.mxu0 0.0
        %636 = vmatprep.subr.mxu0 0.0
        %637 = vmatpush1.msra.mxu0 0.0
        %638 = vmatprep.subr.mxu0 0.0
        %639 = vmatpush1.msra.mxu0 0.0
        %640 = vmatprep.subr.mxu0 0.0
        %641 = vmatpush1.msra.mxu0 0.0
        %642 = vmatprep.subr.mxu0 0.0
        %643 = vmatpush1.msra.mxu0 0.0
        %644 = vmatprep.subr.mxu0 0.0
        %645 = vmatpush1.msra.mxu0 0.0
        %646 = vmatprep.mubr.f32.mxu0 0.0
        %647 = vmatmul.mubr.f32.gmra.mrb[0].mxu0 %v580
        %v648 = vpop.f32.mrb[0].mxu0
        %v649 = vadd.f32 %v504, %v648
        %v650 = vpop.f32.mrb[0].mxu0
        %v651 = vadd.f32 %v506, %v650
        %652 = vdwg.mxu0
        %653 = vmatprep.subr.mxu0 %v391
        %654 = vmatpush1.msra.mxu0 %v390
        %655 = vmatprep.subr.mxu0 0.0
        %656 = vmatpush1.msra.mxu0 0.0
        %657 = vmatprep.subr.mxu0 0.0
        %658 = vmatpush1.msra.mxu0 0.0
        %659 = vmatprep.subr.mxu0 0.0
        %660 = vmatpush1.msra.mxu0 0.0
        %661 = vmatprep.subr.mxu0 0.0
        %662 = vmatpush1.msra.mxu0 0.0
        %663 = vmatprep.subr.mxu0 0.0
        %664 = vmatpush1.msra.mxu0 0.0
        %665 = vmatprep.subr.mxu0 0.0
        %666 = vmatpush1.msra.mxu0 0.0
        %667 = vmatprep.subr.mxu0 0.0
        %668 = vmatpush1.msra.mxu0 0.0
        %669 = vmatprep.subr.mxu0 0.0
        %670 = vmatpush1.msra.mxu0 0.0
        %671 = vmatprep.subr.mxu0 0.0
        %672 = vmatpush1.msra.mxu0 0.0
        %673 = vmatprep.subr.mxu0 0.0
        %674 = vmatpush1.msra.mxu0 0.0
        %675 = vmatprep.subr.mxu0 0.0
        %676 = vmatpush1.msra.mxu0 0.0
        %677 = vmatprep.subr.mxu0 0.0
        %678 = vmatpush1.msra.mxu0 0.0
        %679 = vmatprep.subr.mxu0 0.0
        %680 = vmatpush1.msra.mxu0 0.0
        %681 = vmatprep.subr.mxu0 0.0
        %682 = vmatpush1.msra.mxu0 0.0
        %683 = vmatprep.subr.mxu0 0.0
        %684 = vmatpush1.msra.mxu0 0.0
        %685 = vmatprep.subr.mxu0 0.0
        %686 = vmatpush1.msra.mxu0 0.0
        %687 = vmatprep.subr.mxu0 0.0
        %688 = vmatpush1.msra.mxu0 0.0
        %689 = vmatprep.subr.mxu0 0.0
        %690 = vmatpush1.msra.mxu0 0.0
        %691 = vmatprep.subr.mxu0 0.0
        %692 = vmatpush1.msra.mxu0 0.0
        %693 = vmatprep.subr.mxu0 0.0
        %694 = vmatpush1.msra.mxu0 0.0
        %695 = vmatprep.subr.mxu0 0.0
        %696 = vmatpush1.msra.mxu0 0.0
        %697 = vmatprep.subr.mxu0 0.0
        %698 = vmatpush1.msra.mxu0 0.0
        %699 = vmatprep.subr.mxu0 0.0
        %700 = vmatpush1.msra.mxu0 0.0
        %701 = vmatprep.subr.mxu0 0.0
        %702 = vmatpush1.msra.mxu0 0.0
        %703 = vmatprep.subr.mxu0 0.0
        %704 = vmatpush1.msra.mxu0 0.0
        %705 = vmatprep.subr.mxu0 0.0
        %706 = vmatpush1.msra.mxu0 0.0
        %707 = vmatprep.subr.mxu0 0.0
        %708 = vmatpush1.msra.mxu0 0.0
        %709 = vmatprep.subr.mxu0 0.0
        %710 = vmatpush1.msra.mxu0 0.0
        %711 = vmatprep.subr.mxu0 0.0
        %712 = vmatpush1.msra.mxu0 0.0
        %713 = vmatprep.subr.mxu0 0.0
        %714 = vmatpush1.msra.mxu0 0.0
        %715 = vmatprep.subr.mxu0 0.0
        %716 = vmatpush1.msra.mxu0 0.0
        %717 = vmatprep.mubr.f32.mxu0 0.0
        %718 = vmatmul.mubr.f32.gmra.mrb[0].mxu0 %v580
        %v719 = vpop.f32.mrb[0].mxu0
        %v720 = vadd.f32 %v575, %v719
        %v721 = vpop.f32.mrb[0].mxu0
        %v722 = vadd.f32 %v577, %v721
        %723 = vdwg.mxu0
        %724 = vrot.lane.b32.xlu0 %v348, 15
        %v725 = vpop.permute.xlu0 %724
        %726 = vrot.lane.b32.xlu0 %v349, 15
        %v727 = vpop.permute.xlu0 %726
        %728 = vrot.lane.b32.xlu0 %v350, 15
        %v729 = vpop.permute.xlu0 %728
        %730 = vrot.lane.b32.xlu0 %v351, 15
        %v731 = vpop.permute.xlu0 %730
        %vm732 = vcmp.lt.s32.totalorder %v361, 15
        %v733 = vsel %vm732, %v729, %v731
        %v734 = vsel %vm732, %v727, %v729
        %v735 = vsel %vm732, %v725, %v727
        %v736 = vsel %vm732, %v731, %v725
        %v738 = vlaneseq
        %v739 = vshrl.u32 %v738, 7
        %v740 = vsub.s32 0, %v739
        %v741 = vrot.slane %v337, %v740
        %v742 = vlaneseq
        %v743 = vshrl.u32 %v742, 7
        %v744 = vsub.s32 1, %v743
        %v745 = vrot.slane %v337, %v744
        %v746 = vlaneseq
        %v747 = vshrl.u32 %v746, 7
        %v748 = vsub.s32 2, %v747
        %v749 = vrot.slane %v337, %v748
        %v750 = vlaneseq
        %v751 = vshrl.u32 %v750, 7
        %v752 = vsub.s32 3, %v751
        %v753 = vrot.slane %v337, %v752
        %v758 = vmul.f32 %v736, %v741
        %v759 = vmul.f32 %v735, %v745
        %v760 = vmul.f32 %v734, %v749
        %v761 = vmul.f32 %v733, %v753
        %s762 = scalar_lea.vmem %s1, 16
        %v763 = vld [vmem:[%s762] sm:$0xff]
        %v765 = vsel %vm433, %v763, 0
        %767 = vmatprep.subr.mxu0 %v759
        %768 = vmatpush1.msra.mxu0 %v758
        %769 = vmatprep.subr.mxu0 0.0
        %770 = vmatpush1.msra.mxu0 0.0
        %771 = vmatprep.subr.mxu0 0.0
        %772 = vmatpush1.msra.mxu0 0.0
        %773 = vmatprep.subr.mxu0 0.0
        %774 = vmatpush1.msra.mxu0 0.0
        %775 = vmatprep.subr.mxu0 0.0
        %776 = vmatpush1.msra.mxu0 0.0
        %777 = vmatprep.subr.mxu0 0.0
        %778 = vmatpush1.msra.mxu0 0.0
        %779 = vmatprep.subr.mxu0 0.0
        %780 = vmatpush1.msra.mxu0 0.0
        %781 = vmatprep.subr.mxu0 0.0
        %782 = vmatpush1.msra.mxu0 0.0
        %783 = vmatprep.subr.mxu0 0.0
        %784 = vmatpush1.msra.mxu0 0.0
        %785 = vmatprep.subr.mxu0 0.0
        %786 = vmatpush1.msra.mxu0 0.0
        %787 = vmatprep.subr.mxu0 0.0
        %788 = vmatpush1.msra.mxu0 0.0
        %789 = vmatprep.subr.mxu0 0.0
        %790 = vmatpush1.msra.mxu0 0.0
        %791 = vmatprep.subr.mxu0 0.0
        %792 = vmatpush1.msra.mxu0 0.0
        %793 = vmatprep.subr.mxu0 0.0
        %794 = vmatpush1.msra.mxu0 0.0
        %795 = vmatprep.subr.mxu0 0.0
        %796 = vmatpush1.msra.mxu0 0.0
        %797 = vmatprep.subr.mxu0 0.0
        %798 = vmatpush1.msra.mxu0 0.0
        %799 = vmatprep.subr.mxu0 0.0
        %800 = vmatpush1.msra.mxu0 0.0
        %801 = vmatprep.subr.mxu0 0.0
        %802 = vmatpush1.msra.mxu0 0.0
        %803 = vmatprep.subr.mxu0 0.0
        %804 = vmatpush1.msra.mxu0 0.0
        %805 = vmatprep.subr.mxu0 0.0
        %806 = vmatpush1.msra.mxu0 0.0
        %807 = vmatprep.subr.mxu0 0.0
        %808 = vmatpush1.msra.mxu0 0.0
        %809 = vmatprep.subr.mxu0 0.0
        %810 = vmatpush1.msra.mxu0 0.0
        %811 = vmatprep.subr.mxu0 0.0
        %812 = vmatpush1.msra.mxu0 0.0
        %813 = vmatprep.subr.mxu0 0.0
        %814 = vmatpush1.msra.mxu0 0.0
        %815 = vmatprep.subr.mxu0 0.0
        %816 = vmatpush1.msra.mxu0 0.0
        %817 = vmatprep.subr.mxu0 0.0
        %818 = vmatpush1.msra.mxu0 0.0
        %819 = vmatprep.subr.mxu0 0.0
        %820 = vmatpush1.msra.mxu0 0.0
        %821 = vmatprep.subr.mxu0 0.0
        %822 = vmatpush1.msra.mxu0 0.0
        %823 = vmatprep.subr.mxu0 0.0
        %824 = vmatpush1.msra.mxu0 0.0
        %825 = vmatprep.subr.mxu0 0.0
        %826 = vmatpush1.msra.mxu0 0.0
        %827 = vmatprep.subr.mxu0 0.0
        %828 = vmatpush1.msra.mxu0 0.0
        %829 = vmatprep.subr.mxu0 0.0
        %830 = vmatpush1.msra.mxu0 0.0
        %831 = vmatprep.mubr.f32.mxu0 0.0
        %832 = vmatmul.mubr.f32.gmra.mrb[0].mxu0 %v765
        %v833 = vpop.f32.mrb[0].mxu0
        %v834 = vadd.f32 0.0, %v833
        %v835 = vpop.f32.mrb[0].mxu0
        %v836 = vadd.f32 0.0, %v835
        %837 = vdwg.mxu0
        %838 = vmatprep.subr.mxu0 %v761
        %839 = vmatpush1.msra.mxu0 %v760
        %840 = vmatprep.subr.mxu0 0.0
        %841 = vmatpush1.msra.mxu0 0.0
        %842 = vmatprep.subr.mxu0 0.0
        %843 = vmatpush1.msra.mxu0 0.0
        %844 = vmatprep.subr.mxu0 0.0
        %845 = vmatpush1.msra.mxu0 0.0
        %846 = vmatprep.subr.mxu0 0.0
        %847 = vmatpush1.msra.mxu0 0.0
        %848 = vmatprep.subr.mxu0 0.0
        %849 = vmatpush1.msra.mxu0 0.0
        %850 = vmatprep.subr.mxu0 0.0
        %851 = vmatpush1.msra.mxu0 0.0
        %852 = vmatprep.subr.mxu0 0.0
        %853 = vmatpush1.msra.mxu0 0.0
        %854 = vmatprep.subr.mxu0 0.0
        %855 = vmatpush1.msra.mxu0 0.0
        %856 = vmatprep.subr.mxu0 0.0
        %857 = vmatpush1.msra.mxu0 0.0
        %858 = vmatprep.subr.mxu0 0.0
        %859 = vmatpush1.msra.mxu0 0.0
        %860 = vmatprep.subr.mxu0 0.0
        %861 = vmatpush1.msra.mxu0 0.0
        %862 = vmatprep.subr.mxu0 0.0
        %863 = vmatpush1.msra.mxu0 0.0
        %864 = vmatprep.subr.mxu0 0.0
        %865 = vmatpush1.msra.mxu0 0.0
        %866 = vmatprep.subr.mxu0 0.0
        %867 = vmatpush1.msra.mxu0 0.0
        %868 = vmatprep.subr.mxu0 0.0
        %869 = vmatpush1.msra.mxu0 0.0
        %870 = vmatprep.subr.mxu0 0.0
        %871 = vmatpush1.msra.mxu0 0.0
        %872 = vmatprep.subr.mxu0 0.0
        %873 = vmatpush1.msra.mxu0 0.0
        %874 = vmatprep.subr.mxu0 0.0
        %875 = vmatpush1.msra.mxu0 0.0
        %876 = vmatprep.subr.mxu0 0.0
        %877 = vmatpush1.msra.mxu0 0.0
        %878 = vmatprep.subr.mxu0 0.0
        %879 = vmatpush1.msra.mxu0 0.0
        %880 = vmatprep.subr.mxu0 0.0
        %881 = vmatpush1.msra.mxu0 0.0
        %882 = vmatprep.subr.mxu0 0.0
        %883 = vmatpush1.msra.mxu0 0.0
        %884 = vmatprep.subr.mxu0 0.0
        %885 = vmatpush1.msra.mxu0 0.0
        %886 = vmatprep.subr.mxu0 0.0
        %887 = vmatpush1.msra.mxu0 0.0
        %888 = vmatprep.subr.mxu0 0.0
        %889 = vmatpush1.msra.mxu0 0.0
        %890 = vmatprep.subr.mxu0 0.0
        %891 = vmatpush1.msra.mxu0 0.0
        %892 = vmatprep.subr.mxu0 0.0
        %893 = vmatpush1.msra.mxu0 0.0
        %894 = vmatprep.subr.mxu0 0.0
        %895 = vmatpush1.msra.mxu0 0.0
        %896 = vmatprep.subr.mxu0 0.0
        %897 = vmatpush1.msra.mxu0 0.0
        %898 = vmatprep.subr.mxu0 0.0
        %899 = vmatpush1.msra.mxu0 0.0
        %900 = vmatprep.subr.mxu0 0.0
        %901 = vmatpush1.msra.mxu0 0.0
        %902 = vmatprep.mubr.f32.mxu0 0.0
        %903 = vmatmul.mubr.f32.gmra.mrb[0].mxu0 %v765
        %v904 = vpop.f32.mrb[0].mxu0
        %v905 = vadd.f32 0.0, %v904
        %v906 = vpop.f32.mrb[0].mxu0
        %v907 = vadd.f32 0.0, %v906
        %908 = vdwg.mxu0
        %v909 = vadd.f32 %v649, %v834
        %v910 = vadd.f32 %v651, %v836
        %v911 = vadd.f32 %v720, %v905
        %v912 = vadd.f32 %v722, %v907
        %913 = vrot.lane.b32.xlu0 %v348, 1
        %v914 = vpop.permute.xlu0 %913
        %915 = vrot.lane.b32.xlu0 %v349, 1
        %v916 = vpop.permute.xlu0 %915
        %917 = vrot.lane.b32.xlu0 %v350, 1
        %v918 = vpop.permute.xlu0 %917
        %919 = vrot.lane.b32.xlu0 %v351, 1
        %v920 = vpop.permute.xlu0 %919
        %vm921 = vcmp.lt.s32.totalorder %v361, 1
        %v922 = vsel %vm921, %v918, %v920
        %v923 = vsel %vm921, %v916, %v918
        %v924 = vsel %vm921, %v914, %v916
        %v925 = vsel %vm921, %v920, %v914
        %v927 = vlaneseq
        %v928 = vshrl.u32 %v927, 7
        %v929 = vsub.s32 0, %v928
        %v930 = vrot.slane %v339, %v929
        %v931 = vlaneseq
        %v932 = vshrl.u32 %v931, 7
        %v933 = vsub.s32 1, %v932
        %v934 = vrot.slane %v339, %v933
        %v935 = vlaneseq
        %v936 = vshrl.u32 %v935, 7
        %v937 = vsub.s32 2, %v936
        %v938 = vrot.slane %v339, %v937
        %v939 = vlaneseq
        %v940 = vshrl.u32 %v939, 7
        %v941 = vsub.s32 3, %v940
        %v942 = vrot.slane %v339, %v941
        %v947 = vmul.f32 %v925, %v930
        %v948 = vmul.f32 %v924, %v934
        %v949 = vmul.f32 %v923, %v938
        %v950 = vmul.f32 %v922, %v942
        %s951 = scalar_lea.vmem %s1, 24
        %v952 = vld [vmem:[%s951] sm:$0xff]
        %v954 = vsel %vm433, %v952, 0
        %956 = vmatprep.subr.mxu0 %v948
        %957 = vmatpush1.msra.mxu0 %v947
        %958 = vmatprep.subr.mxu0 0.0
        %959 = vmatpush1.msra.mxu0 0.0
        %960 = vmatprep.subr.mxu0 0.0
        %961 = vmatpush1.msra.mxu0 0.0
        %962 = vmatprep.subr.mxu0 0.0
        %963 = vmatpush1.msra.mxu0 0.0
        %964 = vmatprep.subr.mxu0 0.0
        %965 = vmatpush1.msra.mxu0 0.0
        %966 = vmatprep.subr.mxu0 0.0
        %967 = vmatpush1.msra.mxu0 0.0
        %968 = vmatprep.subr.mxu0 0.0
        %969 = vmatpush1.msra.mxu0 0.0
        %970 = vmatprep.subr.mxu0 0.0
        %971 = vmatpush1.msra.mxu0 0.0
        %972 = vmatprep.subr.mxu0 0.0
        %973 = vmatpush1.msra.mxu0 0.0
        %974 = vmatprep.subr.mxu0 0.0
        %975 = vmatpush1.msra.mxu0 0.0
        %976 = vmatprep.subr.mxu0 0.0
        %977 = vmatpush1.msra.mxu0 0.0
        %978 = vmatprep.subr.mxu0 0.0
        %979 = vmatpush1.msra.mxu0 0.0
        %980 = vmatprep.subr.mxu0 0.0
        %981 = vmatpush1.msra.mxu0 0.0
        %982 = vmatprep.subr.mxu0 0.0
        %983 = vmatpush1.msra.mxu0 0.0
        %984 = vmatprep.subr.mxu0 0.0
        %985 = vmatpush1.msra.mxu0 0.0
        %986 = vmatprep.subr.mxu0 0.0
        %987 = vmatpush1.msra.mxu0 0.0
        %988 = vmatprep.subr.mxu0 0.0
        %989 = vmatpush1.msra.mxu0 0.0
        %990 = vmatprep.subr.mxu0 0.0
        %991 = vmatpush1.msra.mxu0 0.0
        %992 = vmatprep.subr.mxu0 0.0
        %993 = vmatpush1.msra.mxu0 0.0
        %994 = vmatprep.subr.mxu0 0.0
        %995 = vmatpush1.msra.mxu0 0.0
        %996 = vmatprep.subr.mxu0 0.0
        %997 = vmatpush1.msra.mxu0 0.0
        %998 = vmatprep.subr.mxu0 0.0
        %999 = vmatpush1.msra.mxu0 0.0
        %1000 = vmatprep.subr.mxu0 0.0
        %1001 = vmatpush1.msra.mxu0 0.0
        %1002 = vmatprep.subr.mxu0 0.0
        %1003 = vmatpush1.msra.mxu0 0.0
        %1004 = vmatprep.subr.mxu0 0.0
        %1005 = vmatpush1.msra.mxu0 0.0
        %1006 = vmatprep.subr.mxu0 0.0
        %1007 = vmatpush1.msra.mxu0 0.0
        %1008 = vmatprep.subr.mxu0 0.0
        %1009 = vmatpush1.msra.mxu0 0.0
        %1010 = vmatprep.subr.mxu0 0.0
        %1011 = vmatpush1.msra.mxu0 0.0
        %1012 = vmatprep.subr.mxu0 0.0
        %1013 = vmatpush1.msra.mxu0 0.0
        %1014 = vmatprep.subr.mxu0 0.0
        %1015 = vmatpush1.msra.mxu0 0.0
        %1016 = vmatprep.subr.mxu0 0.0
        %1017 = vmatpush1.msra.mxu0 0.0
        %1018 = vmatprep.subr.mxu0 0.0
        %1019 = vmatpush1.msra.mxu0 0.0
        %1020 = vmatprep.mubr.f32.mxu0 0.0
        %1021 = vmatmul.mubr.f32.gmra.mrb[0].mxu0 %v954
        %v1022 = vpop.f32.mrb[0].mxu0
        %v1023 = vadd.f32 0.0, %v1022
        %v1024 = vpop.f32.mrb[0].mxu0
        %v1025 = vadd.f32 0.0, %v1024
        %1026 = vdwg.mxu0
        %1027 = vmatprep.subr.mxu0 %v950
        %1028 = vmatpush1.msra.mxu0 %v949
        %1029 = vmatprep.subr.mxu0 0.0
        %1030 = vmatpush1.msra.mxu0 0.0
        %1031 = vmatprep.subr.mxu0 0.0
        %1032 = vmatpush1.msra.mxu0 0.0
        %1033 = vmatprep.subr.mxu0 0.0
        %1034 = vmatpush1.msra.mxu0 0.0
        %1035 = vmatprep.subr.mxu0 0.0
        %1036 = vmatpush1.msra.mxu0 0.0
        %1037 = vmatprep.subr.mxu0 0.0
        %1038 = vmatpush1.msra.mxu0 0.0
        %1039 = vmatprep.subr.mxu0 0.0
        %1040 = vmatpush1.msra.mxu0 0.0
        %1041 = vmatprep.subr.mxu0 0.0
        %1042 = vmatpush1.msra.mxu0 0.0
        %1043 = vmatprep.subr.mxu0 0.0
        %1044 = vmatpush1.msra.mxu0 0.0
        %1045 = vmatprep.subr.mxu0 0.0
        %1046 = vmatpush1.msra.mxu0 0.0
        %1047 = vmatprep.subr.mxu0 0.0
        %1048 = vmatpush1.msra.mxu0 0.0
        %1049 = vmatprep.subr.mxu0 0.0
        %1050 = vmatpush1.msra.mxu0 0.0
        %1051 = vmatprep.subr.mxu0 0.0
        %1052 = vmatpush1.msra.mxu0 0.0
        %1053 = vmatprep.subr.mxu0 0.0
        %1054 = vmatpush1.msra.mxu0 0.0
        %1055 = vmatprep.subr.mxu0 0.0
        %1056 = vmatpush1.msra.mxu0 0.0
        %1057 = vmatprep.subr.mxu0 0.0
        %1058 = vmatpush1.msra.mxu0 0.0
        %1059 = vmatprep.subr.mxu0 0.0
        %1060 = vmatpush1.msra.mxu0 0.0
        %1061 = vmatprep.subr.mxu0 0.0
        %1062 = vmatpush1.msra.mxu0 0.0
        %1063 = vmatprep.subr.mxu0 0.0
        %1064 = vmatpush1.msra.mxu0 0.0
        %1065 = vmatprep.subr.mxu0 0.0
        %1066 = vmatpush1.msra.mxu0 0.0
        %1067 = vmatprep.subr.mxu0 0.0
        %1068 = vmatpush1.msra.mxu0 0.0
        %1069 = vmatprep.subr.mxu0 0.0
        %1070 = vmatpush1.msra.mxu0 0.0
        %1071 = vmatprep.subr.mxu0 0.0
        %1072 = vmatpush1.msra.mxu0 0.0
        %1073 = vmatprep.subr.mxu0 0.0
        %1074 = vmatpush1.msra.mxu0 0.0
        %1075 = vmatprep.subr.mxu0 0.0
        %1076 = vmatpush1.msra.mxu0 0.0
        %1077 = vmatprep.subr.mxu0 0.0
        %1078 = vmatpush1.msra.mxu0 0.0
        %1079 = vmatprep.subr.mxu0 0.0
        %1080 = vmatpush1.msra.mxu0 0.0
        %1081 = vmatprep.subr.mxu0 0.0
        %1082 = vmatpush1.msra.mxu0 0.0
        %1083 = vmatprep.subr.mxu0 0.0
        %1084 = vmatpush1.msra.mxu0 0.0
        %1085 = vmatprep.subr.mxu0 0.0
        %1086 = vmatpush1.msra.mxu0 0.0
        %1087 = vmatprep.subr.mxu0 0.0
        %1088 = vmatpush1.msra.mxu0 0.0
        %1089 = vmatprep.subr.mxu0 0.0
        %1090 = vmatpush1.msra.mxu0 0.0
        %1091 = vmatprep.mubr.f32.mxu0 0.0
        %1092 = vmatmul.mubr.f32.gmra.mrb[0].mxu0 %v954
        %v1093 = vpop.f32.mrb[0].mxu0
        %v1094 = vadd.f32 0.0, %v1093
        %v1095 = vpop.f32.mrb[0].mxu0
        %v1096 = vadd.f32 0.0, %v1095
        %1097 = vdwg.mxu0
        %v1098 = vadd.f32 %v909, %v1023
        %v1099 = vadd.f32 %v910, %v1025
        %v1100 = vadd.f32 %v911, %v1094
        %v1101 = vadd.f32 %v912, %v1096
        %s1102 = scalar_lea.vmem %s1, 32
        %v1103 = vld [vmem:[%s1102] sm:$0xff]
        %v1105 = vsel %vm433, %v1103, 0
        %1107 = vmatprep.subr.mxu0 %v349
        %1108 = vmatpush1.msra.mxu0 %v348
        %1109 = vmatprep.subr.mxu0 0.0
        %1110 = vmatpush1.msra.mxu0 0.0
        %1111 = vmatprep.subr.mxu0 0.0
        %1112 = vmatpush1.msra.mxu0 0.0
        %1113 = vmatprep.subr.mxu0 0.0
        %1114 = vmatpush1.msra.mxu0 0.0
        %1115 = vmatprep.subr.mxu0 0.0
        %1116 = vmatpush1.msra.mxu0 0.0
        %1117 = vmatprep.subr.mxu0 0.0
        %1118 = vmatpush1.msra.mxu0 0.0
        %1119 = vmatprep.subr.mxu0 0.0
        %1120 = vmatpush1.msra.mxu0 0.0
        %1121 = vmatprep.subr.mxu0 0.0
        %1122 = vmatpush1.msra.mxu0 0.0
        %1123 = vmatprep.subr.mxu0 0.0
        %1124 = vmatpush1.msra.mxu0 0.0
        %1125 = vmatprep.subr.mxu0 0.0
        %1126 = vmatpush1.msra.mxu0 0.0
        %1127 = vmatprep.subr.mxu0 0.0
        %1128 = vmatpush1.msra.mxu0 0.0
        %1129 = vmatprep.subr.mxu0 0.0
        %1130 = vmatpush1.msra.mxu0 0.0
        %1131 = vmatprep.subr.mxu0 0.0
        %1132 = vmatpush1.msra.mxu0 0.0
        %1133 = vmatprep.subr.mxu0 0.0
        %1134 = vmatpush1.msra.mxu0 0.0
        %1135 = vmatprep.subr.mxu0 0.0
        %1136 = vmatpush1.msra.mxu0 0.0
        %1137 = vmatprep.subr.mxu0 0.0
        %1138 = vmatpush1.msra.mxu0 0.0
        %1139 = vmatprep.subr.mxu0 0.0
        %1140 = vmatpush1.msra.mxu0 0.0
        %1141 = vmatprep.subr.mxu0 0.0
        %1142 = vmatpush1.msra.mxu0 0.0
        %1143 = vmatprep.subr.mxu0 0.0
        %1144 = vmatpush1.msra.mxu0 0.0
        %1145 = vmatprep.subr.mxu0 0.0
        %1146 = vmatpush1.msra.mxu0 0.0
        %1147 = vmatprep.subr.mxu0 0.0
        %1148 = vmatpush1.msra.mxu0 0.0
        %1149 = vmatprep.subr.mxu0 0.0
        %1150 = vmatpush1.msra.mxu0 0.0
        %1151 = vmatprep.subr.mxu0 0.0
        %1152 = vmatpush1.msra.mxu0 0.0
        %1153 = vmatprep.subr.mxu0 0.0
        %1154 = vmatpush1.msra.mxu0 0.0
        %1155 = vmatprep.subr.mxu0 0.0
        %1156 = vmatpush1.msra.mxu0 0.0
        %1157 = vmatprep.subr.mxu0 0.0
        %1158 = vmatpush1.msra.mxu0 0.0
        %1159 = vmatprep.subr.mxu0 0.0
        %1160 = vmatpush1.msra.mxu0 0.0
        %1161 = vmatprep.subr.mxu0 0.0
        %1162 = vmatpush1.msra.mxu0 0.0
        %1163 = vmatprep.subr.mxu0 0.0
        %1164 = vmatpush1.msra.mxu0 0.0
        %1165 = vmatprep.subr.mxu0 0.0
        %1166 = vmatpush1.msra.mxu0 0.0
        %1167 = vmatprep.subr.mxu0 0.0
        %1168 = vmatpush1.msra.mxu0 0.0
        %1169 = vmatprep.subr.mxu0 0.0
        %1170 = vmatpush1.msra.mxu0 0.0
        %1171 = vmatprep.mubr.f32.mxu0 0.0
        %1172 = vmatmul.mubr.f32.gmra.mrb[0].mxu0 %v1105
        %v1173 = vpop.f32.mrb[0].mxu0
        %v1174 = vadd.f32 0.0, %v1173
        %v1175 = vpop.f32.mrb[0].mxu0
        %v1176 = vadd.f32 0.0, %v1175
        %1177 = vdwg.mxu0
        %1178 = vmatprep.subr.mxu0 %v351
        %1179 = vmatpush1.msra.mxu0 %v350
        %1180 = vmatprep.subr.mxu0 0.0
        %1181 = vmatpush1.msra.mxu0 0.0
        %1182 = vmatprep.subr.mxu0 0.0
        %1183 = vmatpush1.msra.mxu0 0.0
        %1184 = vmatprep.subr.mxu0 0.0
        %1185 = vmatpush1.msra.mxu0 0.0
        %1186 = vmatprep.subr.mxu0 0.0
        %1187 = vmatpush1.msra.mxu0 0.0
        %1188 = vmatprep.subr.mxu0 0.0
        %1189 = vmatpush1.msra.mxu0 0.0
        %1190 = vmatprep.subr.mxu0 0.0
        %1191 = vmatpush1.msra.mxu0 0.0
        %1192 = vmatprep.subr.mxu0 0.0
        %1193 = vmatpush1.msra.mxu0 0.0
        %1194 = vmatprep.subr.mxu0 0.0
        %1195 = vmatpush1.msra.mxu0 0.0
        %1196 = vmatprep.subr.mxu0 0.0
        %1197 = vmatpush1.msra.mxu0 0.0
        %1198 = vmatprep.subr.mxu0 0.0
        %1199 = vmatpush1.msra.mxu0 0.0
        %1200 = vmatprep.subr.mxu0 0.0
        %1201 = vmatpush1.msra.mxu0 0.0
        %1202 = vmatprep.subr.mxu0 0.0
        %1203 = vmatpush1.msra.mxu0 0.0
        %1204 = vmatprep.subr.mxu0 0.0
        %1205 = vmatpush1.msra.mxu0 0.0
        %1206 = vmatprep.subr.mxu0 0.0
        %1207 = vmatpush1.msra.mxu0 0.0
        %1208 = vmatprep.subr.mxu0 0.0
        %1209 = vmatpush1.msra.mxu0 0.0
        %1210 = vmatprep.subr.mxu0 0.0
        %1211 = vmatpush1.msra.mxu0 0.0
        %1212 = vmatprep.subr.mxu0 0.0
        %1213 = vmatpush1.msra.mxu0 0.0
        %1214 = vmatprep.subr.mxu0 0.0
        %1215 = vmatpush1.msra.mxu0 0.0
        %1216 = vmatprep.subr.mxu0 0.0
        %1217 = vmatpush1.msra.mxu0 0.0
        %1218 = vmatprep.subr.mxu0 0.0
        %1219 = vmatpush1.msra.mxu0 0.0
        %1220 = vmatprep.subr.mxu0 0.0
        %1221 = vmatpush1.msra.mxu0 0.0
        %1222 = vmatprep.subr.mxu0 0.0
        %1223 = vmatpush1.msra.mxu0 0.0
        %1224 = vmatprep.subr.mxu0 0.0
        %1225 = vmatpush1.msra.mxu0 0.0
        %1226 = vmatprep.subr.mxu0 0.0
        %1227 = vmatpush1.msra.mxu0 0.0
        %1228 = vmatprep.subr.mxu0 0.0
        %1229 = vmatpush1.msra.mxu0 0.0
        %1230 = vmatprep.subr.mxu0 0.0
        %1231 = vmatpush1.msra.mxu0 0.0
        %1232 = vmatprep.subr.mxu0 0.0
        %1233 = vmatpush1.msra.mxu0 0.0
        %1234 = vmatprep.subr.mxu0 0.0
        %1235 = vmatpush1.msra.mxu0 0.0
        %1236 = vmatprep.subr.mxu0 0.0
        %1237 = vmatpush1.msra.mxu0 0.0
        %1238 = vmatprep.subr.mxu0 0.0
        %1239 = vmatpush1.msra.mxu0 0.0
        %1240 = vmatprep.subr.mxu0 0.0
        %1241 = vmatpush1.msra.mxu0 0.0
        %1242 = vmatprep.mubr.f32.mxu0 0.0
        %1243 = vmatmul.mubr.f32.gmra.mrb[0].mxu0 %v1105
        %v1244 = vpop.f32.mrb[0].mxu0
        %v1245 = vadd.f32 0.0, %v1244
        %v1246 = vpop.f32.mrb[0].mxu0
        %v1247 = vadd.f32 0.0, %v1246
        %1248 = vdwg.mxu0
        %v1249 = vadd.f32 %v1098, %v1174
        %v1250 = vadd.f32 %v1099, %v1176
        %v1251 = vadd.f32 %v1100, %v1245
        %v1252 = vadd.f32 %v1101, %v1247
        %1253 = vrot.lane.b32.xlu0 %v348, 127
        %v1254 = vpop.permute.xlu0 %1253
        %1255 = vrot.lane.b32.xlu0 %v349, 127
        %v1256 = vpop.permute.xlu0 %1255
        %1257 = vrot.lane.b32.xlu0 %v350, 127
        %v1258 = vpop.permute.xlu0 %1257
        %1259 = vrot.lane.b32.xlu0 %v351, 127
        %v1260 = vpop.permute.xlu0 %1259
        %vm1261 = vcmp.lt.s32.totalorder %v361, 127
        %v1262 = vsel %vm1261, %v1258, %v1260
        %v1263 = vsel %vm1261, %v1256, %v1258
        %v1264 = vsel %vm1261, %v1254, %v1256
        %v1265 = vsel %vm1261, %v1260, %v1254
        %v1267 = vlaneseq
        %v1268 = vshrl.u32 %v1267, 7
        %v1269 = vsub.s32 0, %v1268
        %v1270 = vrot.slane %v341, %v1269
        %v1271 = vlaneseq
        %v1272 = vshrl.u32 %v1271, 7
        %v1273 = vsub.s32 1, %v1272
        %v1274 = vrot.slane %v341, %v1273
        %v1275 = vlaneseq
        %v1276 = vshrl.u32 %v1275, 7
        %v1277 = vsub.s32 2, %v1276
        %v1278 = vrot.slane %v341, %v1277
        %v1279 = vlaneseq
        %v1280 = vshrl.u32 %v1279, 7
        %v1281 = vsub.s32 3, %v1280
        %v1282 = vrot.slane %v341, %v1281
        %v1287 = vmul.f32 %v1264, %v1270
        %v1288 = vmul.f32 %v1263, %v1274
        %v1289 = vmul.f32 %v1262, %v1278
        %v1290 = vmul.f32 %v1265, %v1282
        %s1291 = scalar_lea.vmem %s1, 40
        %v1292 = vld [vmem:[%s1291] sm:$0xff]
        %v1294 = vsel %vm433, %v1292, 0
        %1296 = vmatprep.subr.mxu0 %v1288
        %1297 = vmatpush1.msra.mxu0 %v1287
        %1298 = vmatprep.subr.mxu0 0.0
        %1299 = vmatpush1.msra.mxu0 0.0
        %1300 = vmatprep.subr.mxu0 0.0
        %1301 = vmatpush1.msra.mxu0 0.0
        %1302 = vmatprep.subr.mxu0 0.0
        %1303 = vmatpush1.msra.mxu0 0.0
        %1304 = vmatprep.subr.mxu0 0.0
        %1305 = vmatpush1.msra.mxu0 0.0
        %1306 = vmatprep.subr.mxu0 0.0
        %1307 = vmatpush1.msra.mxu0 0.0
        %1308 = vmatprep.subr.mxu0 0.0
        %1309 = vmatpush1.msra.mxu0 0.0
        %1310 = vmatprep.subr.mxu0 0.0
        %1311 = vmatpush1.msra.mxu0 0.0
        %1312 = vmatprep.subr.mxu0 0.0
        %1313 = vmatpush1.msra.mxu0 0.0
        %1314 = vmatprep.subr.mxu0 0.0
        %1315 = vmatpush1.msra.mxu0 0.0
        %1316 = vmatprep.subr.mxu0 0.0
        %1317 = vmatpush1.msra.mxu0 0.0
        %1318 = vmatprep.subr.mxu0 0.0
        %1319 = vmatpush1.msra.mxu0 0.0
        %1320 = vmatprep.subr.mxu0 0.0
        %1321 = vmatpush1.msra.mxu0 0.0
        %1322 = vmatprep.subr.mxu0 0.0
        %1323 = vmatpush1.msra.mxu0 0.0
        %1324 = vmatprep.subr.mxu0 0.0
        %1325 = vmatpush1.msra.mxu0 0.0
        %1326 = vmatprep.subr.mxu0 0.0
        %1327 = vmatpush1.msra.mxu0 0.0
        %1328 = vmatprep.subr.mxu0 0.0
        %1329 = vmatpush1.msra.mxu0 0.0
        %1330 = vmatprep.subr.mxu0 0.0
        %1331 = vmatpush1.msra.mxu0 0.0
        %1332 = vmatprep.subr.mxu0 0.0
        %1333 = vmatpush1.msra.mxu0 0.0
        %1334 = vmatprep.subr.mxu0 0.0
        %1335 = vmatpush1.msra.mxu0 0.0
        %1336 = vmatprep.subr.mxu0 0.0
        %1337 = vmatpush1.msra.mxu0 0.0
        %1338 = vmatprep.subr.mxu0 0.0
        %1339 = vmatpush1.msra.mxu0 0.0
        %1340 = vmatprep.subr.mxu0 0.0
        %1341 = vmatpush1.msra.mxu0 0.0
        %1342 = vmatprep.subr.mxu0 0.0
        %1343 = vmatpush1.msra.mxu0 0.0
        %1344 = vmatprep.subr.mxu0 0.0
        %1345 = vmatpush1.msra.mxu0 0.0
        %1346 = vmatprep.subr.mxu0 0.0
        %1347 = vmatpush1.msra.mxu0 0.0
        %1348 = vmatprep.subr.mxu0 0.0
        %1349 = vmatpush1.msra.mxu0 0.0
        %1350 = vmatprep.subr.mxu0 0.0
        %1351 = vmatpush1.msra.mxu0 0.0
        %1352 = vmatprep.subr.mxu0 0.0
        %1353 = vmatpush1.msra.mxu0 0.0
        %1354 = vmatprep.subr.mxu0 0.0
        %1355 = vmatpush1.msra.mxu0 0.0
        %1356 = vmatprep.subr.mxu0 0.0
        %1357 = vmatpush1.msra.mxu0 0.0
        %1358 = vmatprep.subr.mxu0 0.0
        %1359 = vmatpush1.msra.mxu0 0.0
        %1360 = vmatprep.mubr.f32.mxu0 0.0
        %1361 = vmatmul.mubr.f32.gmra.mrb[0].mxu0 %v1294
        %v1362 = vpop.f32.mrb[0].mxu0
        %v1363 = vadd.f32 0.0, %v1362
        %v1364 = vpop.f32.mrb[0].mxu0
        %v1365 = vadd.f32 0.0, %v1364
        %1366 = vdwg.mxu0
        %1367 = vmatprep.subr.mxu0 %v1290
        %1368 = vmatpush1.msra.mxu0 %v1289
        %1369 = vmatprep.subr.mxu0 0.0
        %1370 = vmatpush1.msra.mxu0 0.0
        %1371 = vmatprep.subr.mxu0 0.0
        %1372 = vmatpush1.msra.mxu0 0.0
        %1373 = vmatprep.subr.mxu0 0.0
        %1374 = vmatpush1.msra.mxu0 0.0
        %1375 = vmatprep.subr.mxu0 0.0
        %1376 = vmatpush1.msra.mxu0 0.0
        %1377 = vmatprep.subr.mxu0 0.0
        %1378 = vmatpush1.msra.mxu0 0.0
        %1379 = vmatprep.subr.mxu0 0.0
        %1380 = vmatpush1.msra.mxu0 0.0
        %1381 = vmatprep.subr.mxu0 0.0
        %1382 = vmatpush1.msra.mxu0 0.0
        %1383 = vmatprep.subr.mxu0 0.0
        %1384 = vmatpush1.msra.mxu0 0.0
        %1385 = vmatprep.subr.mxu0 0.0
        %1386 = vmatpush1.msra.mxu0 0.0
        %1387 = vmatprep.subr.mxu0 0.0
        %1388 = vmatpush1.msra.mxu0 0.0
        %1389 = vmatprep.subr.mxu0 0.0
        %1390 = vmatpush1.msra.mxu0 0.0
        %1391 = vmatprep.subr.mxu0 0.0
        %1392 = vmatpush1.msra.mxu0 0.0
        %1393 = vmatprep.subr.mxu0 0.0
        %1394 = vmatpush1.msra.mxu0 0.0
        %1395 = vmatprep.subr.mxu0 0.0
        %1396 = vmatpush1.msra.mxu0 0.0
        %1397 = vmatprep.subr.mxu0 0.0
        %1398 = vmatpush1.msra.mxu0 0.0
        %1399 = vmatprep.subr.mxu0 0.0
        %1400 = vmatpush1.msra.mxu0 0.0
        %1401 = vmatprep.subr.mxu0 0.0
        %1402 = vmatpush1.msra.mxu0 0.0
        %1403 = vmatprep.subr.mxu0 0.0
        %1404 = vmatpush1.msra.mxu0 0.0
        %1405 = vmatprep.subr.mxu0 0.0
        %1406 = vmatpush1.msra.mxu0 0.0
        %1407 = vmatprep.subr.mxu0 0.0
        %1408 = vmatpush1.msra.mxu0 0.0
        %1409 = vmatprep.subr.mxu0 0.0
        %1410 = vmatpush1.msra.mxu0 0.0
        %1411 = vmatprep.subr.mxu0 0.0
        %1412 = vmatpush1.msra.mxu0 0.0
        %1413 = vmatprep.subr.mxu0 0.0
        %1414 = vmatpush1.msra.mxu0 0.0
        %1415 = vmatprep.subr.mxu0 0.0
        %1416 = vmatpush1.msra.mxu0 0.0
        %1417 = vmatprep.subr.mxu0 0.0
        %1418 = vmatpush1.msra.mxu0 0.0
        %1419 = vmatprep.subr.mxu0 0.0
        %1420 = vmatpush1.msra.mxu0 0.0
        %1421 = vmatprep.subr.mxu0 0.0
        %1422 = vmatpush1.msra.mxu0 0.0
        %1423 = vmatprep.subr.mxu0 0.0
        %1424 = vmatpush1.msra.mxu0 0.0
        %1425 = vmatprep.subr.mxu0 0.0
        %1426 = vmatpush1.msra.mxu0 0.0
        %1427 = vmatprep.subr.mxu0 0.0
        %1428 = vmatpush1.msra.mxu0 0.0
        %1429 = vmatprep.subr.mxu0 0.0
        %1430 = vmatpush1.msra.mxu0 0.0
        %1431 = vmatprep.mubr.f32.mxu0 0.0
        %1432 = vmatmul.mubr.f32.gmra.mrb[0].mxu0 %v1294
        %v1433 = vpop.f32.mrb[0].mxu0
        %v1434 = vadd.f32 0.0, %v1433
        %v1435 = vpop.f32.mrb[0].mxu0
        %v1436 = vadd.f32 0.0, %v1435
        %1437 = vdwg.mxu0
        %v1438 = vadd.f32 %v1249, %v1363
        %v1439 = vadd.f32 %v1250, %v1365
        %v1440 = vadd.f32 %v1251, %v1434
        %v1441 = vadd.f32 %v1252, %v1436
        %1442 = vrot.lane.b32.xlu0 %v348, 113
        %v1443 = vpop.permute.xlu0 %1442
        %1444 = vrot.lane.b32.xlu0 %v349, 113
        %v1445 = vpop.permute.xlu0 %1444
        %1446 = vrot.lane.b32.xlu0 %v350, 113
        %v1447 = vpop.permute.xlu0 %1446
        %1448 = vrot.lane.b32.xlu0 %v351, 113
        %v1449 = vpop.permute.xlu0 %1448
        %vm1450 = vcmp.lt.s32.totalorder %v361, 113
        %v1451 = vsel %vm1450, %v1447, %v1449
        %v1452 = vsel %vm1450, %v1445, %v1447
        %v1453 = vsel %vm1450, %v1443, %v1445
        %v1454 = vsel %vm1450, %v1449, %v1443
        %v1456 = vlaneseq
        %v1457 = vshrl.u32 %v1456, 7
        %v1458 = vsub.s32 0, %v1457
        %v1459 = vrot.slane %v343, %v1458
        %v1460 = vlaneseq
        %v1461 = vshrl.u32 %v1460, 7
        %v1462 = vsub.s32 1, %v1461
        %v1463 = vrot.slane %v343, %v1462
        %v1464 = vlaneseq
        %v1465 = vshrl.u32 %v1464, 7
        %v1466 = vsub.s32 2, %v1465
        %v1467 = vrot.slane %v343, %v1466
        %v1468 = vlaneseq
        %v1469 = vshrl.u32 %v1468, 7
        %v1470 = vsub.s32 3, %v1469
        %v1471 = vrot.slane %v343, %v1470
        %v1476 = vmul.f32 %v1453, %v1459
        %v1477 = vmul.f32 %v1452, %v1463
        %v1478 = vmul.f32 %v1451, %v1467
        %v1479 = vmul.f32 %v1454, %v1471
        %s1480 = scalar_lea.vmem %s1, 48
        %v1481 = vld [vmem:[%s1480] sm:$0xff]
        %v1483 = vsel %vm433, %v1481, 0
        %1485 = vmatprep.subr.mxu0 %v1477
        %1486 = vmatpush1.msra.mxu0 %v1476
        %1487 = vmatprep.subr.mxu0 0.0
        %1488 = vmatpush1.msra.mxu0 0.0
        %1489 = vmatprep.subr.mxu0 0.0
        %1490 = vmatpush1.msra.mxu0 0.0
        %1491 = vmatprep.subr.mxu0 0.0
        %1492 = vmatpush1.msra.mxu0 0.0
        %1493 = vmatprep.subr.mxu0 0.0
        %1494 = vmatpush1.msra.mxu0 0.0
        %1495 = vmatprep.subr.mxu0 0.0
        %1496 = vmatpush1.msra.mxu0 0.0
        %1497 = vmatprep.subr.mxu0 0.0
        %1498 = vmatpush1.msra.mxu0 0.0
        %1499 = vmatprep.subr.mxu0 0.0
        %1500 = vmatpush1.msra.mxu0 0.0
        %1501 = vmatprep.subr.mxu0 0.0
        %1502 = vmatpush1.msra.mxu0 0.0
        %1503 = vmatprep.subr.mxu0 0.0
        %1504 = vmatpush1.msra.mxu0 0.0
        %1505 = vmatprep.subr.mxu0 0.0
        %1506 = vmatpush1.msra.mxu0 0.0
        %1507 = vmatprep.subr.mxu0 0.0
        %1508 = vmatpush1.msra.mxu0 0.0
        %1509 = vmatprep.subr.mxu0 0.0
        %1510 = vmatpush1.msra.mxu0 0.0
        %1511 = vmatprep.subr.mxu0 0.0
        %1512 = vmatpush1.msra.mxu0 0.0
        %1513 = vmatprep.subr.mxu0 0.0
        %1514 = vmatpush1.msra.mxu0 0.0
        %1515 = vmatprep.subr.mxu0 0.0
        %1516 = vmatpush1.msra.mxu0 0.0
        %1517 = vmatprep.subr.mxu0 0.0
        %1518 = vmatpush1.msra.mxu0 0.0
        %1519 = vmatprep.subr.mxu0 0.0
        %1520 = vmatpush1.msra.mxu0 0.0
        %1521 = vmatprep.subr.mxu0 0.0
        %1522 = vmatpush1.msra.mxu0 0.0
        %1523 = vmatprep.subr.mxu0 0.0
        %1524 = vmatpush1.msra.mxu0 0.0
        %1525 = vmatprep.subr.mxu0 0.0
        %1526 = vmatpush1.msra.mxu0 0.0
        %1527 = vmatprep.subr.mxu0 0.0
        %1528 = vmatpush1.msra.mxu0 0.0
        %1529 = vmatprep.subr.mxu0 0.0
        %1530 = vmatpush1.msra.mxu0 0.0
        %1531 = vmatprep.subr.mxu0 0.0
        %1532 = vmatpush1.msra.mxu0 0.0
        %1533 = vmatprep.subr.mxu0 0.0
        %1534 = vmatpush1.msra.mxu0 0.0
        %1535 = vmatprep.subr.mxu0 0.0
        %1536 = vmatpush1.msra.mxu0 0.0
        %1537 = vmatprep.subr.mxu0 0.0
        %1538 = vmatpush1.msra.mxu0 0.0
        %1539 = vmatprep.subr.mxu0 0.0
        %1540 = vmatpush1.msra.mxu0 0.0
        %1541 = vmatprep.subr.mxu0 0.0
        %1542 = vmatpush1.msra.mxu0 0.0
        %1543 = vmatprep.subr.mxu0 0.0
        %1544 = vmatpush1.msra.mxu0 0.0
        %1545 = vmatprep.subr.mxu0 0.0
        %1546 = vmatpush1.msra.mxu0 0.0
        %1547 = vmatprep.subr.mxu0 0.0
        %1548 = vmatpush1.msra.mxu0 0.0
        %1549 = vmatprep.mubr.f32.mxu0 0.0
        %1550 = vmatmul.mubr.f32.gmra.mrb[0].mxu0 %v1483
        %v1551 = vpop.f32.mrb[0].mxu0
        %v1552 = vadd.f32 0.0, %v1551
        %v1553 = vpop.f32.mrb[0].mxu0
        %v1554 = vadd.f32 0.0, %v1553
        %1555 = vdwg.mxu0
        %1556 = vmatprep.subr.mxu0 %v1479
        %1557 = vmatpush1.msra.mxu0 %v1478
        %1558 = vmatprep.subr.mxu0 0.0
        %1559 = vmatpush1.msra.mxu0 0.0
        %1560 = vmatprep.subr.mxu0 0.0
        %1561 = vmatpush1.msra.mxu0 0.0
        %1562 = vmatprep.subr.mxu0 0.0
        %1563 = vmatpush1.msra.mxu0 0.0
        %1564 = vmatprep.subr.mxu0 0.0
        %1565 = vmatpush1.msra.mxu0 0.0
        %1566 = vmatprep.subr.mxu0 0.0
        %1567 = vmatpush1.msra.mxu0 0.0
        %1568 = vmatprep.subr.mxu0 0.0
        %1569 = vmatpush1.msra.mxu0 0.0
        %1570 = vmatprep.subr.mxu0 0.0
        %1571 = vmatpush1.msra.mxu0 0.0
        %1572 = vmatprep.subr.mxu0 0.0
        %1573 = vmatpush1.msra.mxu0 0.0
        %1574 = vmatprep.subr.mxu0 0.0
        %1575 = vmatpush1.msra.mxu0 0.0
        %1576 = vmatprep.subr.mxu0 0.0
        %1577 = vmatpush1.msra.mxu0 0.0
        %1578 = vmatprep.subr.mxu0 0.0
        %1579 = vmatpush1.msra.mxu0 0.0
        %1580 = vmatprep.subr.mxu0 0.0
        %1581 = vmatpush1.msra.mxu0 0.0
        %1582 = vmatprep.subr.mxu0 0.0
        %1583 = vmatpush1.msra.mxu0 0.0
        %1584 = vmatprep.subr.mxu0 0.0
        %1585 = vmatpush1.msra.mxu0 0.0
        %1586 = vmatprep.subr.mxu0 0.0
        %1587 = vmatpush1.msra.mxu0 0.0
        %1588 = vmatprep.subr.mxu0 0.0
        %1589 = vmatpush1.msra.mxu0 0.0
        %1590 = vmatprep.subr.mxu0 0.0
        %1591 = vmatpush1.msra.mxu0 0.0
        %1592 = vmatprep.subr.mxu0 0.0
        %1593 = vmatpush1.msra.mxu0 0.0
        %1594 = vmatprep.subr.mxu0 0.0
        %1595 = vmatpush1.msra.mxu0 0.0
        %1596 = vmatprep.subr.mxu0 0.0
        %1597 = vmatpush1.msra.mxu0 0.0
        %1598 = vmatprep.subr.mxu0 0.0
        %1599 = vmatpush1.msra.mxu0 0.0
        %1600 = vmatprep.subr.mxu0 0.0
        %1601 = vmatpush1.msra.mxu0 0.0
        %1602 = vmatprep.subr.mxu0 0.0
        %1603 = vmatpush1.msra.mxu0 0.0
        %1604 = vmatprep.subr.mxu0 0.0
        %1605 = vmatpush1.msra.mxu0 0.0
        %1606 = vmatprep.subr.mxu0 0.0
        %1607 = vmatpush1.msra.mxu0 0.0
        %1608 = vmatprep.subr.mxu0 0.0
        %1609 = vmatpush1.msra.mxu0 0.0
        %1610 = vmatprep.subr.mxu0 0.0
        %1611 = vmatpush1.msra.mxu0 0.0
        %1612 = vmatprep.subr.mxu0 0.0
        %1613 = vmatpush1.msra.mxu0 0.0
        %1614 = vmatprep.subr.mxu0 0.0
        %1615 = vmatpush1.msra.mxu0 0.0
        %1616 = vmatprep.subr.mxu0 0.0
        %1617 = vmatpush1.msra.mxu0 0.0
        %1618 = vmatprep.subr.mxu0 0.0
        %1619 = vmatpush1.msra.mxu0 0.0
        %1620 = vmatprep.mubr.f32.mxu0 0.0
        %1621 = vmatmul.mubr.f32.gmra.mrb[0].mxu0 %v1483
        %v1622 = vpop.f32.mrb[0].mxu0
        %v1623 = vadd.f32 0.0, %v1622
        %v1624 = vpop.f32.mrb[0].mxu0
        %v1625 = vadd.f32 0.0, %v1624
        %1626 = vdwg.mxu0
        %v1627 = vadd.f32 %v1438, %v1552
        %v1628 = vadd.f32 %v1439, %v1554
        %v1629 = vadd.f32 %v1440, %v1623
        %v1630 = vadd.f32 %v1441, %v1625
        %1631 = vrot.lane.b32.xlu0 %v348, 112
        %v1632 = vpop.permute.xlu0 %1631
        %1633 = vrot.lane.b32.xlu0 %v349, 112
        %v1634 = vpop.permute.xlu0 %1633
        %1635 = vrot.lane.b32.xlu0 %v350, 112
        %v1636 = vpop.permute.xlu0 %1635
        %1637 = vrot.lane.b32.xlu0 %v351, 112
        %v1638 = vpop.permute.xlu0 %1637
        %vm1639 = vcmp.lt.s32.totalorder %v361, 112
        %v1640 = vsel %vm1639, %v1636, %v1638
        %v1641 = vsel %vm1639, %v1634, %v1636
        %v1642 = vsel %vm1639, %v1632, %v1634
        %v1643 = vsel %vm1639, %v1638, %v1632
        %v1645 = vlaneseq
        %v1646 = vshrl.u32 %v1645, 7
        %v1647 = vsub.s32 0, %v1646
        %v1648 = vrot.slane %v345, %v1647
        %v1649 = vlaneseq
        %v1650 = vshrl.u32 %v1649, 7
        %v1651 = vsub.s32 1, %v1650
        %v1652 = vrot.slane %v345, %v1651
        %v1653 = vlaneseq
        %v1654 = vshrl.u32 %v1653, 7
        %v1655 = vsub.s32 2, %v1654
        %v1656 = vrot.slane %v345, %v1655
        %v1657 = vlaneseq
        %v1658 = vshrl.u32 %v1657, 7
        %v1659 = vsub.s32 3, %v1658
        %v1660 = vrot.slane %v345, %v1659
        %v1665 = vmul.f32 %v1642, %v1648
        %v1666 = vmul.f32 %v1641, %v1652
        %v1667 = vmul.f32 %v1640, %v1656
        %v1668 = vmul.f32 %v1643, %v1660
        %s1669 = scalar_lea.vmem %s1, 56
        %v1670 = vld [vmem:[%s1669] sm:$0xff]
        %v1672 = vsel %vm433, %v1670, 0
        %1674 = vmatprep.subr.mxu0 %v1666
        %1675 = vmatpush1.msra.mxu0 %v1665
        %1676 = vmatprep.subr.mxu0 0.0
        %1677 = vmatpush1.msra.mxu0 0.0
        %1678 = vmatprep.subr.mxu0 0.0
        %1679 = vmatpush1.msra.mxu0 0.0
        %1680 = vmatprep.subr.mxu0 0.0
        %1681 = vmatpush1.msra.mxu0 0.0
        %1682 = vmatprep.subr.mxu0 0.0
        %1683 = vmatpush1.msra.mxu0 0.0
        %1684 = vmatprep.subr.mxu0 0.0
        %1685 = vmatpush1.msra.mxu0 0.0
        %1686 = vmatprep.subr.mxu0 0.0
        %1687 = vmatpush1.msra.mxu0 0.0
        %1688 = vmatprep.subr.mxu0 0.0
        %1689 = vmatpush1.msra.mxu0 0.0
        %1690 = vmatprep.subr.mxu0 0.0
        %1691 = vmatpush1.msra.mxu0 0.0
        %1692 = vmatprep.subr.mxu0 0.0
        %1693 = vmatpush1.msra.mxu0 0.0
        %1694 = vmatprep.subr.mxu0 0.0
        %1695 = vmatpush1.msra.mxu0 0.0
        %1696 = vmatprep.subr.mxu0 0.0
        %1697 = vmatpush1.msra.mxu0 0.0
        %1698 = vmatprep.subr.mxu0 0.0
        %1699 = vmatpush1.msra.mxu0 0.0
        %1700 = vmatprep.subr.mxu0 0.0
        %1701 = vmatpush1.msra.mxu0 0.0
        %1702 = vmatprep.subr.mxu0 0.0
        %1703 = vmatpush1.msra.mxu0 0.0
        %1704 = vmatprep.subr.mxu0 0.0
        %1705 = vmatpush1.msra.mxu0 0.0
        %1706 = vmatprep.subr.mxu0 0.0
        %1707 = vmatpush1.msra.mxu0 0.0
        %1708 = vmatprep.subr.mxu0 0.0
        %1709 = vmatpush1.msra.mxu0 0.0
        %1710 = vmatprep.subr.mxu0 0.0
        %1711 = vmatpush1.msra.mxu0 0.0
        %1712 = vmatprep.subr.mxu0 0.0
        %1713 = vmatpush1.msra.mxu0 0.0
        %1714 = vmatprep.subr.mxu0 0.0
        %1715 = vmatpush1.msra.mxu0 0.0
        %1716 = vmatprep.subr.mxu0 0.0
        %1717 = vmatpush1.msra.mxu0 0.0
        %1718 = vmatprep.subr.mxu0 0.0
        %1719 = vmatpush1.msra.mxu0 0.0
        %1720 = vmatprep.subr.mxu0 0.0
        %1721 = vmatpush1.msra.mxu0 0.0
        %1722 = vmatprep.subr.mxu0 0.0
        %1723 = vmatpush1.msra.mxu0 0.0
        %1724 = vmatprep.subr.mxu0 0.0
        %1725 = vmatpush1.msra.mxu0 0.0
        %1726 = vmatprep.subr.mxu0 0.0
        %1727 = vmatpush1.msra.mxu0 0.0
        %1728 = vmatprep.subr.mxu0 0.0
        %1729 = vmatpush1.msra.mxu0 0.0
        %1730 = vmatprep.subr.mxu0 0.0
        %1731 = vmatpush1.msra.mxu0 0.0
        %1732 = vmatprep.subr.mxu0 0.0
        %1733 = vmatpush1.msra.mxu0 0.0
        %1734 = vmatprep.subr.mxu0 0.0
        %1735 = vmatpush1.msra.mxu0 0.0
        %1736 = vmatprep.subr.mxu0 0.0
        %1737 = vmatpush1.msra.mxu0 0.0
        %1738 = vmatprep.mubr.f32.mxu0 0.0
        %1739 = vmatmul.mubr.f32.gmra.mrb[0].mxu0 %v1672
        %v1740 = vpop.f32.mrb[0].mxu0
        %v1741 = vadd.f32 0.0, %v1740
        %v1742 = vpop.f32.mrb[0].mxu0
        %v1743 = vadd.f32 0.0, %v1742
        %1744 = vdwg.mxu0
        %1745 = vmatprep.subr.mxu0 %v1668
        %1746 = vmatpush1.msra.mxu0 %v1667
        %1747 = vmatprep.subr.mxu0 0.0
        %1748 = vmatpush1.msra.mxu0 0.0
        %1749 = vmatprep.subr.mxu0 0.0
        %1750 = vmatpush1.msra.mxu0 0.0
        %1751 = vmatprep.subr.mxu0 0.0
        %1752 = vmatpush1.msra.mxu0 0.0
        %1753 = vmatprep.subr.mxu0 0.0
        %1754 = vmatpush1.msra.mxu0 0.0
        %1755 = vmatprep.subr.mxu0 0.0
        %1756 = vmatpush1.msra.mxu0 0.0
        %1757 = vmatprep.subr.mxu0 0.0
        %1758 = vmatpush1.msra.mxu0 0.0
        %1759 = vmatprep.subr.mxu0 0.0
        %1760 = vmatpush1.msra.mxu0 0.0
        %1761 = vmatprep.subr.mxu0 0.0
        %1762 = vmatpush1.msra.mxu0 0.0
        %1763 = vmatprep.subr.mxu0 0.0
        %1764 = vmatpush1.msra.mxu0 0.0
        %1765 = vmatprep.subr.mxu0 0.0
        %1766 = vmatpush1.msra.mxu0 0.0
        %1767 = vmatprep.subr.mxu0 0.0
        %1768 = vmatpush1.msra.mxu0 0.0
        %1769 = vmatprep.subr.mxu0 0.0
        %1770 = vmatpush1.msra.mxu0 0.0
        %1771 = vmatprep.subr.mxu0 0.0
        %1772 = vmatpush1.msra.mxu0 0.0
        %1773 = vmatprep.subr.mxu0 0.0
        %1774 = vmatpush1.msra.mxu0 0.0
        %1775 = vmatprep.subr.mxu0 0.0
        %1776 = vmatpush1.msra.mxu0 0.0
        %1777 = vmatprep.subr.mxu0 0.0
        %1778 = vmatpush1.msra.mxu0 0.0
        %1779 = vmatprep.subr.mxu0 0.0
        %1780 = vmatpush1.msra.mxu0 0.0
        %1781 = vmatprep.subr.mxu0 0.0
        %1782 = vmatpush1.msra.mxu0 0.0
        %1783 = vmatprep.subr.mxu0 0.0
        %1784 = vmatpush1.msra.mxu0 0.0
        %1785 = vmatprep.subr.mxu0 0.0
        %1786 = vmatpush1.msra.mxu0 0.0
        %1787 = vmatprep.subr.mxu0 0.0
        %1788 = vmatpush1.msra.mxu0 0.0
        %1789 = vmatprep.subr.mxu0 0.0
        %1790 = vmatpush1.msra.mxu0 0.0
        %1791 = vmatprep.subr.mxu0 0.0
        %1792 = vmatpush1.msra.mxu0 0.0
        %1793 = vmatprep.subr.mxu0 0.0
        %1794 = vmatpush1.msra.mxu0 0.0
        %1795 = vmatprep.subr.mxu0 0.0
        %1796 = vmatpush1.msra.mxu0 0.0
        %1797 = vmatprep.subr.mxu0 0.0
        %1798 = vmatpush1.msra.mxu0 0.0
        %1799 = vmatprep.subr.mxu0 0.0
        %1800 = vmatpush1.msra.mxu0 0.0
        %1801 = vmatprep.subr.mxu0 0.0
        %1802 = vmatpush1.msra.mxu0 0.0
        %1803 = vmatprep.subr.mxu0 0.0
        %1804 = vmatpush1.msra.mxu0 0.0
        %1805 = vmatprep.subr.mxu0 0.0
        %1806 = vmatpush1.msra.mxu0 0.0
        %1807 = vmatprep.subr.mxu0 0.0
        %1808 = vmatpush1.msra.mxu0 0.0
        %1809 = vmatprep.mubr.f32.mxu0 0.0
        %1810 = vmatmul.mubr.f32.gmra.mrb[0].mxu0 %v1672
        %v1811 = vpop.f32.mrb[0].mxu0
        %v1812 = vadd.f32 0.0, %v1811
        %v1813 = vpop.f32.mrb[0].mxu0
        %v1814 = vadd.f32 0.0, %v1813
        %1815 = vdwg.mxu0
        %v1816 = vadd.f32 %v1627, %v1741
        %v1817 = vadd.f32 %v1628, %v1743
        %v1818 = vadd.f32 %v1629, %v1812
        %v1819 = vadd.f32 %v1630, %v1814
        %1820 = vrot.lane.b32.xlu0 %v348, 111
        %v1821 = vpop.permute.xlu0 %1820
        %1822 = vrot.lane.b32.xlu0 %v349, 111
        %v1823 = vpop.permute.xlu0 %1822
        %1824 = vrot.lane.b32.xlu0 %v350, 111
        %v1825 = vpop.permute.xlu0 %1824
        %1826 = vrot.lane.b32.xlu0 %v351, 111
        %v1827 = vpop.permute.xlu0 %1826
        %vm1828 = vcmp.lt.s32.totalorder %v361, 111
        %v1829 = vsel %vm1828, %v1825, %v1827
        %v1830 = vsel %vm1828, %v1823, %v1825
        %v1831 = vsel %vm1828, %v1821, %v1823
        %v1832 = vsel %vm1828, %v1827, %v1821
        %v1834 = vlaneseq
        %v1835 = vshrl.u32 %v1834, 7
        %v1836 = vsub.s32 0, %v1835
        %v1837 = vrot.slane %v347, %v1836
        %v1838 = vlaneseq
        %v1839 = vshrl.u32 %v1838, 7
        %v1840 = vsub.s32 1, %v1839
        %v1841 = vrot.slane %v347, %v1840
        %v1842 = vlaneseq
        %v1843 = vshrl.u32 %v1842, 7
        %v1844 = vsub.s32 2, %v1843
        %v1845 = vrot.slane %v347, %v1844
        %v1846 = vlaneseq
        %v1847 = vshrl.u32 %v1846, 7
        %v1848 = vsub.s32 3, %v1847
        %v1849 = vrot.slane %v347, %v1848
        %v1854 = vmul.f32 %v1831, %v1837
        %v1855 = vmul.f32 %v1830, %v1841
        %v1856 = vmul.f32 %v1829, %v1845
        %v1857 = vmul.f32 %v1832, %v1849
        %s1858 = scalar_lea.vmem %s1, 64
        %v1859 = vld [vmem:[%s1858] sm:$0xff]
        %v1861 = vsel %vm433, %v1859, 0
        %1863 = vmatprep.subr.mxu0 %v1855
        %1864 = vmatpush1.msra.mxu0 %v1854
        %1865 = vmatprep.subr.mxu0 0.0
        %1866 = vmatpush1.msra.mxu0 0.0
        %1867 = vmatprep.subr.mxu0 0.0
        %1868 = vmatpush1.msra.mxu0 0.0
        %1869 = vmatprep.subr.mxu0 0.0
        %1870 = vmatpush1.msra.mxu0 0.0
        %1871 = vmatprep.subr.mxu0 0.0
        %1872 = vmatpush1.msra.mxu0 0.0
        %1873 = vmatprep.subr.mxu0 0.0
        %1874 = vmatpush1.msra.mxu0 0.0
        %1875 = vmatprep.subr.mxu0 0.0
        %1876 = vmatpush1.msra.mxu0 0.0
        %1877 = vmatprep.subr.mxu0 0.0
        %1878 = vmatpush1.msra.mxu0 0.0
        %1879 = vmatprep.subr.mxu0 0.0
        %1880 = vmatpush1.msra.mxu0 0.0
        %1881 = vmatprep.subr.mxu0 0.0
        %1882 = vmatpush1.msra.mxu0 0.0
        %1883 = vmatprep.subr.mxu0 0.0
        %1884 = vmatpush1.msra.mxu0 0.0
        %1885 = vmatprep.subr.mxu0 0.0
        %1886 = vmatpush1.msra.mxu0 0.0
        %1887 = vmatprep.subr.mxu0 0.0
        %1888 = vmatpush1.msra.mxu0 0.0
        %1889 = vmatprep.subr.mxu0 0.0
        %1890 = vmatpush1.msra.mxu0 0.0
        %1891 = vmatprep.subr.mxu0 0.0
        %1892 = vmatpush1.msra.mxu0 0.0
        %1893 = vmatprep.subr.mxu0 0.0
        %1894 = vmatpush1.msra.mxu0 0.0
        %1895 = vmatprep.subr.mxu0 0.0
        %1896 = vmatpush1.msra.mxu0 0.0
        %1897 = vmatprep.subr.mxu0 0.0
        %1898 = vmatpush1.msra.mxu0 0.0
        %1899 = vmatprep.subr.mxu0 0.0
        %1900 = vmatpush1.msra.mxu0 0.0
        %1901 = vmatprep.subr.mxu0 0.0
        %1902 = vmatpush1.msra.mxu0 0.0
        %1903 = vmatprep.subr.mxu0 0.0
        %1904 = vmatpush1.msra.mxu0 0.0
        %1905 = vmatprep.subr.mxu0 0.0
        %1906 = vmatpush1.msra.mxu0 0.0
        %1907 = vmatprep.subr.mxu0 0.0
        %1908 = vmatpush1.msra.mxu0 0.0
        %1909 = vmatprep.subr.mxu0 0.0
        %1910 = vmatpush1.msra.mxu0 0.0
        %1911 = vmatprep.subr.mxu0 0.0
        %1912 = vmatpush1.msra.mxu0 0.0
        %1913 = vmatprep.subr.mxu0 0.0
        %1914 = vmatpush1.msra.mxu0 0.0
        %1915 = vmatprep.subr.mxu0 0.0
        %1916 = vmatpush1.msra.mxu0 0.0
        %1917 = vmatprep.subr.mxu0 0.0
        %1918 = vmatpush1.msra.mxu0 0.0
        %1919 = vmatprep.subr.mxu0 0.0
        %1920 = vmatpush1.msra.mxu0 0.0
        %1921 = vmatprep.subr.mxu0 0.0
        %1922 = vmatpush1.msra.mxu0 0.0
        %1923 = vmatprep.subr.mxu0 0.0
        %1924 = vmatpush1.msra.mxu0 0.0
        %1925 = vmatprep.subr.mxu0 0.0
        %1926 = vmatpush1.msra.mxu0 0.0
        %1927 = vmatprep.mubr.f32.mxu0 0.0
        %1928 = vmatmul.mubr.f32.gmra.mrb[0].mxu0 %v1861
        %v1929 = vpop.f32.mrb[0].mxu0
        %v1930 = vadd.f32 0.0, %v1929
        %v1931 = vpop.f32.mrb[0].mxu0
        %v1932 = vadd.f32 0.0, %v1931
        %1933 = vdwg.mxu0
        %1934 = vmatprep.subr.mxu0 %v1857
        %1935 = vmatpush1.msra.mxu0 %v1856
        %1936 = vmatprep.subr.mxu0 0.0
        %1937 = vmatpush1.msra.mxu0 0.0
        %1938 = vmatprep.subr.mxu0 0.0
        %1939 = vmatpush1.msra.mxu0 0.0
        %1940 = vmatprep.subr.mxu0 0.0
        %1941 = vmatpush1.msra.mxu0 0.0
        %1942 = vmatprep.subr.mxu0 0.0
        %1943 = vmatpush1.msra.mxu0 0.0
        %1944 = vmatprep.subr.mxu0 0.0
        %1945 = vmatpush1.msra.mxu0 0.0
        %1946 = vmatprep.subr.mxu0 0.0
        %1947 = vmatpush1.msra.mxu0 0.0
        %1948 = vmatprep.subr.mxu0 0.0
        %1949 = vmatpush1.msra.mxu0 0.0
        %1950 = vmatprep.subr.mxu0 0.0
        %1951 = vmatpush1.msra.mxu0 0.0
        %1952 = vmatprep.subr.mxu0 0.0
        %1953 = vmatpush1.msra.mxu0 0.0
        %1954 = vmatprep.subr.mxu0 0.0
        %1955 = vmatpush1.msra.mxu0 0.0
        %1956 = vmatprep.subr.mxu0 0.0
        %1957 = vmatpush1.msra.mxu0 0.0
        %1958 = vmatprep.subr.mxu0 0.0
        %1959 = vmatpush1.msra.mxu0 0.0
        %1960 = vmatprep.subr.mxu0 0.0
        %1961 = vmatpush1.msra.mxu0 0.0
        %1962 = vmatprep.subr.mxu0 0.0
        %1963 = vmatpush1.msra.mxu0 0.0
        %1964 = vmatprep.subr.mxu0 0.0
        %1965 = vmatpush1.msra.mxu0 0.0
        %1966 = vmatprep.subr.mxu0 0.0
        %1967 = vmatpush1.msra.mxu0 0.0
        %1968 = vmatprep.subr.mxu0 0.0
        %1969 = vmatpush1.msra.mxu0 0.0
        %1970 = vmatprep.subr.mxu0 0.0
        %1971 = vmatpush1.msra.mxu0 0.0
        %1972 = vmatprep.subr.mxu0 0.0
        %1973 = vmatpush1.msra.mxu0 0.0
        %1974 = vmatprep.subr.mxu0 0.0
        %1975 = vmatpush1.msra.mxu0 0.0
        %1976 = vmatprep.subr.mxu0 0.0
        %1977 = vmatpush1.msra.mxu0 0.0
        %1978 = vmatprep.subr.mxu0 0.0
        %1979 = vmatpush1.msra.mxu0 0.0
        %1980 = vmatprep.subr.mxu0 0.0
        %1981 = vmatpush1.msra.mxu0 0.0
        %1982 = vmatprep.subr.mxu0 0.0
        %1983 = vmatpush1.msra.mxu0 0.0
        %1984 = vmatprep.subr.mxu0 0.0
        %1985 = vmatpush1.msra.mxu0 0.0
        %1986 = vmatprep.subr.mxu0 0.0
        %1987 = vmatpush1.msra.mxu0 0.0
        %1988 = vmatprep.subr.mxu0 0.0
        %1989 = vmatpush1.msra.mxu0 0.0
        %1990 = vmatprep.subr.mxu0 0.0
        %1991 = vmatpush1.msra.mxu0 0.0
        %1992 = vmatprep.subr.mxu0 0.0
        %1993 = vmatpush1.msra.mxu0 0.0
        %1994 = vmatprep.subr.mxu0 0.0
        %1995 = vmatpush1.msra.mxu0 0.0
        %1996 = vmatprep.subr.mxu0 0.0
        %1997 = vmatpush1.msra.mxu0 0.0
        %1998 = vmatprep.mubr.f32.mxu0 0.0
        %1999 = vmatmul.mubr.f32.gmra.mrb[0].mxu0 %v1861
        %v2000 = vpop.f32.mrb[0].mxu0
        %v2001 = vadd.f32 0.0, %v2000
        %v2002 = vpop.f32.mrb[0].mxu0
        %v2003 = vadd.f32 0.0, %v2002
        %2004 = vdwg.mxu0
        %v2005 = vadd.f32 %v1816, %v1930
        %v2006 = vadd.f32 %v1817, %v1932
        %v2007 = vadd.f32 %v1818, %v2001
        %v2008 = vadd.f32 %v1819, %v2003
        %v2009 = vld [vmem:[%s2] sm:$0xff]
        %2011 = vset.pattern.permute.xlu0 0
        %2012 = vperm.xlu0 %2011, %v2009
        %v2013 = vpop.permute.xlu0 %2012
        %v2015 = vadd.f32 %v2005, %v2013
        %v2016 = vadd.f32 %v2006, %v2013
        %v2017 = vadd.f32 %v2007, %v2013
        %v2018 = vadd.f32 %v2008, %v2013
        %v2019 = vmax.f32 %v2015, 0.0
        %v2020 = vmax.f32 %v2016, 0.0
        %v2021 = vmax.f32 %v2017, 0.0
        %v2022 = vmax.f32 %v2018, 0.0
        %2023 = vrot.lane.b32.xlu0 %v2019, 17
        %v2024 = vpop.permute.xlu0 %2023
        %2025 = vrot.lane.b32.xlu0 %v2020, 17
        %v2026 = vpop.permute.xlu0 %2025
        %2027 = vrot.lane.b32.xlu0 %v2021, 17
        %v2028 = vpop.permute.xlu0 %2027
        %2029 = vrot.lane.b32.xlu0 %v2022, 17
        %v2030 = vpop.permute.xlu0 %2029
        %v2031 = vsel %vm362, %v2028, %v2030
        %v2032 = vsel %vm362, %v2026, %v2028
        %v2033 = vsel %vm362, %v2024, %v2026
        %v2034 = vsel %vm362, %v2030, %v2024
        %v2035 = vmul.f32 %v2034, %v371
        %v2036 = vmul.f32 %v2033, %v375
        %v2037 = vmul.f32 %v2032, %v379
        %v2038 = vmul.f32 %v2031, %v383
        %v2039 = vld [vmem:[%s3] sm:$0xff]
        %2040 = vrot.lane.b32.xlu0 %v2019, 16
        %v2041 = vpop.permute.xlu0 %2040
        %2042 = vrot.lane.b32.xlu0 %v2020, 16
        %v2043 = vpop.permute.xlu0 %2042
        %2044 = vrot.lane.b32.xlu0 %v2021, 16
        %v2045 = vpop.permute.xlu0 %2044
        %2046 = vrot.lane.b32.xlu0 %v2022, 16
        %v2047 = vpop.permute.xlu0 %2046
        %v2048 = vsel %vm401, %v2045, %v2047
        %v2049 = vsel %vm401, %v2043, %v2045
        %v2050 = vsel %vm401, %v2041, %v2043
        %v2051 = vsel %vm401, %v2047, %v2041
        %v2052 = vmul.f32 %v2051, %v410
        %v2053 = vmul.f32 %v2050, %v414
        %v2054 = vmul.f32 %v2049, %v418
        %v2055 = vmul.f32 %v2048, %v422
        %s2056 = scalar_lea.vmem %s3, 8
        %v2057 = vld [vmem:[%s2056] sm:$0xff]
        %v2059 = vsel %vm433, %v2057, 0
        %2061 = vmatprep.subr.mxu0 %v2053
        %2062 = vmatpush1.msra.mxu0 %v2052
        %2063 = vmatprep.subr.mxu0 0.0
        %2064 = vmatpush1.msra.mxu0 0.0
        %2065 = vmatprep.subr.mxu0 0.0
        %2066 = vmatpush1.msra.mxu0 0.0
        %2067 = vmatprep.subr.mxu0 0.0
        %2068 = vmatpush1.msra.mxu0 0.0
        %2069 = vmatprep.subr.mxu0 0.0
        %2070 = vmatpush1.msra.mxu0 0.0
        %2071 = vmatprep.subr.mxu0 0.0
        %2072 = vmatpush1.msra.mxu0 0.0
        %2073 = vmatprep.subr.mxu0 0.0
        %2074 = vmatpush1.msra.mxu0 0.0
        %2075 = vmatprep.subr.mxu0 0.0
        %2076 = vmatpush1.msra.mxu0 0.0
        %2077 = vmatprep.subr.mxu0 0.0
        %2078 = vmatpush1.msra.mxu0 0.0
        %2079 = vmatprep.subr.mxu0 0.0
        %2080 = vmatpush1.msra.mxu0 0.0
        %2081 = vmatprep.subr.mxu0 0.0
        %2082 = vmatpush1.msra.mxu0 0.0
        %2083 = vmatprep.subr.mxu0 0.0
        %2084 = vmatpush1.msra.mxu0 0.0
        %2085 = vmatprep.subr.mxu0 0.0
        %2086 = vmatpush1.msra.mxu0 0.0
        %2087 = vmatprep.subr.mxu0 0.0
        %2088 = vmatpush1.msra.mxu0 0.0
        %2089 = vmatprep.subr.mxu0 0.0
        %2090 = vmatpush1.msra.mxu0 0.0
        %2091 = vmatprep.subr.mxu0 0.0
        %2092 = vmatpush1.msra.mxu0 0.0
        %2093 = vmatprep.subr.mxu0 0.0
        %2094 = vmatpush1.msra.mxu0 0.0
        %2095 = vmatprep.subr.mxu0 0.0
        %2096 = vmatpush1.msra.mxu0 0.0
        %2097 = vmatprep.subr.mxu0 0.0
        %2098 = vmatpush1.msra.mxu0 0.0
        %2099 = vmatprep.subr.mxu0 0.0
        %2100 = vmatpush1.msra.mxu0 0.0
        %2101 = vmatprep.subr.mxu0 0.0
        %2102 = vmatpush1.msra.mxu0 0.0
        %2103 = vmatprep.subr.mxu0 0.0
        %2104 = vmatpush1.msra.mxu0 0.0
        %2105 = vmatprep.subr.mxu0 0.0
        %2106 = vmatpush1.msra.mxu0 0.0
        %2107 = vmatprep.subr.mxu0 0.0
        %2108 = vmatpush1.msra.mxu0 0.0
        %2109 = vmatprep.subr.mxu0 0.0
        %2110 = vmatpush1.msra.mxu0 0.0
        %2111 = vmatprep.subr.mxu0 0.0
        %2112 = vmatpush1.msra.mxu0 0.0
        %2113 = vmatprep.subr.mxu0 0.0
        %2114 = vmatpush1.msra.mxu0 0.0
        %2115 = vmatprep.subr.mxu0 0.0
        %2116 = vmatpush1.msra.mxu0 0.0
        %2117 = vmatprep.subr.mxu0 0.0
        %2118 = vmatpush1.msra.mxu0 0.0
        %2119 = vmatprep.subr.mxu0 0.0
        %2120 = vmatpush1.msra.mxu0 0.0
        %2121 = vmatprep.subr.mxu0 0.0
        %2122 = vmatpush1.msra.mxu0 0.0
        %2123 = vmatprep.subr.mxu0 0.0
        %2124 = vmatpush1.msra.mxu0 0.0
        %2125 = vmatprep.mubr.f32.mxu0 0.0
        %2126 = vmatmul.mubr.f32.gmra.mrb[0].mxu0 %v2059
        %v2127 = vpop.f32.mrb[0].mxu0
        %v2128 = vadd.f32 0.0, %v2127
        %v2129 = vpop.f32.mrb[0].mxu0
        %v2130 = vadd.f32 0.0, %v2129
        %2131 = vdwg.mxu0
        %2132 = vmatprep.subr.mxu0 %v2055
        %2133 = vmatpush1.msra.mxu0 %v2054
        %2134 = vmatprep.subr.mxu0 0.0
        %2135 = vmatpush1.msra.mxu0 0.0
        %2136 = vmatprep.subr.mxu0 0.0
        %2137 = vmatpush1.msra.mxu0 0.0
        %2138 = vmatprep.subr.mxu0 0.0
        %2139 = vmatpush1.msra.mxu0 0.0
        %2140 = vmatprep.subr.mxu0 0.0
        %2141 = vmatpush1.msra.mxu0 0.0
        %2142 = vmatprep.subr.mxu0 0.0
        %2143 = vmatpush1.msra.mxu0 0.0
        %2144 = vmatprep.subr.mxu0 0.0
        %2145 = vmatpush1.msra.mxu0 0.0
        %2146 = vmatprep.subr.mxu0 0.0
        %2147 = vmatpush1.msra.mxu0 0.0
        %2148 = vmatprep.subr.mxu0 0.0
        %2149 = vmatpush1.msra.mxu0 0.0
        %2150 = vmatprep.subr.mxu0 0.0
        %2151 = vmatpush1.msra.mxu0 0.0
        %2152 = vmatprep.subr.mxu0 0.0
        %2153 = vmatpush1.msra.mxu0 0.0
        %2154 = vmatprep.subr.mxu0 0.0
        %2155 = vmatpush1.msra.mxu0 0.0
        %2156 = vmatprep.subr.mxu0 0.0
        %2157 = vmatpush1.msra.mxu0 0.0
        %2158 = vmatprep.subr.mxu0 0.0
        %2159 = vmatpush1.msra.mxu0 0.0
        %2160 = vmatprep.subr.mxu0 0.0
        %2161 = vmatpush1.msra.mxu0 0.0
        %2162 = vmatprep.subr.mxu0 0.0
        %2163 = vmatpush1.msra.mxu0 0.0
        %2164 = vmatprep.subr.mxu0 0.0
        %2165 = vmatpush1.msra.mxu0 0.0
        %2166 = vmatprep.subr.mxu0 0.0
        %2167 = vmatpush1.msra.mxu0 0.0
        %2168 = vmatprep.subr.mxu0 0.0
        %2169 = vmatpush1.msra.mxu0 0.0
        %2170 = vmatprep.subr.mxu0 0.0
        %2171 = vmatpush1.msra.mxu0 0.0
        %2172 = vmatprep.subr.mxu0 0.0
        %2173 = vmatpush1.msra.mxu0 0.0
        %2174 = vmatprep.subr.mxu0 0.0
        %2175 = vmatpush1.msra.mxu0 0.0
        %2176 = vmatprep.subr.mxu0 0.0
        %2177 = vmatpush1.msra.mxu0 0.0
        %2178 = vmatprep.subr.mxu0 0.0
        %2179 = vmatpush1.msra.mxu0 0.0
        %2180 = vmatprep.subr.mxu0 0.0
        %2181 = vmatpush1.msra.mxu0 0.0
        %2182 = vmatprep.subr.mxu0 0.0
        %2183 = vmatpush1.msra.mxu0 0.0
        %2184 = vmatprep.subr.mxu0 0.0
        %2185 = vmatpush1.msra.mxu0 0.0
        %2186 = vmatprep.subr.mxu0 0.0
        %2187 = vmatpush1.msra.mxu0 0.0
        %2188 = vmatprep.subr.mxu0 0.0
        %2189 = vmatpush1.msra.mxu0 0.0
        %2190 = vmatprep.subr.mxu0 0.0
        %2191 = vmatpush1.msra.mxu0 0.0
        %2192 = vmatprep.subr.mxu0 0.0
        %2193 = vmatpush1.msra.mxu0 0.0
        %2194 = vmatprep.subr.mxu0 0.0
        %2195 = vmatpush1.msra.mxu0 0.0
        %2196 = vmatprep.mubr.f32.mxu0 0.0
        %2197 = vmatmul.mubr.f32.gmra.mrb[0].mxu0 %v2059
        %v2198 = vpop.f32.mrb[0].mxu0
        %v2199 = vadd.f32 0.0, %v2198
        %v2200 = vpop.f32.mrb[0].mxu0
        %v2201 = vadd.f32 0.0, %v2200
        %2202 = vdwg.mxu0
        %v2204 = vsel %vm433, %v2039, 0
        %2206 = vmatprep.subr.mxu0 %v2036
        %2207 = vmatpush1.msra.mxu0 %v2035
        %2208 = vmatprep.subr.mxu0 0.0
        %2209 = vmatpush1.msra.mxu0 0.0
        %2210 = vmatprep.subr.mxu0 0.0
        %2211 = vmatpush1.msra.mxu0 0.0
        %2212 = vmatprep.subr.mxu0 0.0
        %2213 = vmatpush1.msra.mxu0 0.0
        %2214 = vmatprep.subr.mxu0 0.0
        %2215 = vmatpush1.msra.mxu0 0.0
        %2216 = vmatprep.subr.mxu0 0.0
        %2217 = vmatpush1.msra.mxu0 0.0
        %2218 = vmatprep.subr.mxu0 0.0
        %2219 = vmatpush1.msra.mxu0 0.0
        %2220 = vmatprep.subr.mxu0 0.0
        %2221 = vmatpush1.msra.mxu0 0.0
        %2222 = vmatprep.subr.mxu0 0.0
        %2223 = vmatpush1.msra.mxu0 0.0
        %2224 = vmatprep.subr.mxu0 0.0
        %2225 = vmatpush1.msra.mxu0 0.0
        %2226 = vmatprep.subr.mxu0 0.0
        %2227 = vmatpush1.msra.mxu0 0.0
        %2228 = vmatprep.subr.mxu0 0.0
        %2229 = vmatpush1.msra.mxu0 0.0
        %2230 = vmatprep.subr.mxu0 0.0
        %2231 = vmatpush1.msra.mxu0 0.0
        %2232 = vmatprep.subr.mxu0 0.0
        %2233 = vmatpush1.msra.mxu0 0.0
        %2234 = vmatprep.subr.mxu0 0.0
        %2235 = vmatpush1.msra.mxu0 0.0
        %2236 = vmatprep.subr.mxu0 0.0
        %2237 = vmatpush1.msra.mxu0 0.0
        %2238 = vmatprep.subr.mxu0 0.0
        %2239 = vmatpush1.msra.mxu0 0.0
        %2240 = vmatprep.subr.mxu0 0.0
        %2241 = vmatpush1.msra.mxu0 0.0
        %2242 = vmatprep.subr.mxu0 0.0
        %2243 = vmatpush1.msra.mxu0 0.0
        %2244 = vmatprep.subr.mxu0 0.0
        %2245 = vmatpush1.msra.mxu0 0.0
        %2246 = vmatprep.subr.mxu0 0.0
        %2247 = vmatpush1.msra.mxu0 0.0
        %2248 = vmatprep.subr.mxu0 0.0
        %2249 = vmatpush1.msra.mxu0 0.0
        %2250 = vmatprep.subr.mxu0 0.0
        %2251 = vmatpush1.msra.mxu0 0.0
        %2252 = vmatprep.subr.mxu0 0.0
        %2253 = vmatpush1.msra.mxu0 0.0
        %2254 = vmatprep.subr.mxu0 0.0
        %2255 = vmatpush1.msra.mxu0 0.0
        %2256 = vmatprep.subr.mxu0 0.0
        %2257 = vmatpush1.msra.mxu0 0.0
        %2258 = vmatprep.subr.mxu0 0.0
        %2259 = vmatpush1.msra.mxu0 0.0
        %2260 = vmatprep.subr.mxu0 0.0
        %2261 = vmatpush1.msra.mxu0 0.0
        %2262 = vmatprep.subr.mxu0 0.0
        %2263 = vmatpush1.msra.mxu0 0.0
        %2264 = vmatprep.subr.mxu0 0.0
        %2265 = vmatpush1.msra.mxu0 0.0
        %2266 = vmatprep.subr.mxu0 0.0
        %2267 = vmatpush1.msra.mxu0 0.0
        %2268 = vmatprep.subr.mxu0 0.0
        %2269 = vmatpush1.msra.mxu0 0.0
        %2270 = vmatprep.mubr.f32.mxu0 0.0
        %2271 = vmatmul.mubr.f32.gmra.mrb[0].mxu0 %v2204
        %v2272 = vpop.f32.mrb[0].mxu0
        %v2273 = vadd.f32 %v2128, %v2272
        %v2274 = vpop.f32.mrb[0].mxu0
        %v2275 = vadd.f32 %v2130, %v2274
        %2276 = vdwg.mxu0
        %2277 = vmatprep.subr.mxu0 %v2038
        %2278 = vmatpush1.msra.mxu0 %v2037
        %2279 = vmatprep.subr.mxu0 0.0
        %2280 = vmatpush1.msra.mxu0 0.0
        %2281 = vmatprep.subr.mxu0 0.0
        %2282 = vmatpush1.msra.mxu0 0.0
        %2283 = vmatprep.subr.mxu0 0.0
        %2284 = vmatpush1.msra.mxu0 0.0
        %2285 = vmatprep.subr.mxu0 0.0
        %2286 = vmatpush1.msra.mxu0 0.0
        %2287 = vmatprep.subr.mxu0 0.0
        %2288 = vmatpush1.msra.mxu0 0.0
        %2289 = vmatprep.subr.mxu0 0.0
        %2290 = vmatpush1.msra.mxu0 0.0
        %2291 = vmatprep.subr.mxu0 0.0
        %2292 = vmatpush1.msra.mxu0 0.0
        %2293 = vmatprep.subr.mxu0 0.0
        %2294 = vmatpush1.msra.mxu0 0.0
        %2295 = vmatprep.subr.mxu0 0.0
        %2296 = vmatpush1.msra.mxu0 0.0
        %2297 = vmatprep.subr.mxu0 0.0
        %2298 = vmatpush1.msra.mxu0 0.0
        %2299 = vmatprep.subr.mxu0 0.0
        %2300 = vmatpush1.msra.mxu0 0.0
        %2301 = vmatprep.subr.mxu0 0.0
        %2302 = vmatpush1.msra.mxu0 0.0
        %2303 = vmatprep.subr.mxu0 0.0
        %2304 = vmatpush1.msra.mxu0 0.0
        %2305 = vmatprep.subr.mxu0 0.0
        %2306 = vmatpush1.msra.mxu0 0.0
        %2307 = vmatprep.subr.mxu0 0.0
        %2308 = vmatpush1.msra.mxu0 0.0
        %2309 = vmatprep.subr.mxu0 0.0
        %2310 = vmatpush1.msra.mxu0 0.0
        %2311 = vmatprep.subr.mxu0 0.0
        %2312 = vmatpush1.msra.mxu0 0.0
        %2313 = vmatprep.subr.mxu0 0.0
        %2314 = vmatpush1.msra.mxu0 0.0
        %2315 = vmatprep.subr.mxu0 0.0
        %2316 = vmatpush1.msra.mxu0 0.0
        %2317 = vmatprep.subr.mxu0 0.0
        %2318 = vmatpush1.msra.mxu0 0.0
        %2319 = vmatprep.subr.mxu0 0.0
        %2320 = vmatpush1.msra.mxu0 0.0
        %2321 = vmatprep.subr.mxu0 0.0
        %2322 = vmatpush1.msra.mxu0 0.0
        %2323 = vmatprep.subr.mxu0 0.0
        %2324 = vmatpush1.msra.mxu0 0.0
        %2325 = vmatprep.subr.mxu0 0.0
        %2326 = vmatpush1.msra.mxu0 0.0
        %2327 = vmatprep.subr.mxu0 0.0
        %2328 = vmatpush1.msra.mxu0 0.0
        %2329 = vmatprep.subr.mxu0 0.0
        %2330 = vmatpush1.msra.mxu0 0.0
        %2331 = vmatprep.subr.mxu0 0.0
        %2332 = vmatpush1.msra.mxu0 0.0
        %2333 = vmatprep.subr.mxu0 0.0
        %2334 = vmatpush1.msra.mxu0 0.0
        %2335 = vmatprep.subr.mxu0 0.0
        %2336 = vmatpush1.msra.mxu0 0.0
        %2337 = vmatprep.subr.mxu0 0.0
        %2338 = vmatpush1.msra.mxu0 0.0
        %2339 = vmatprep.subr.mxu0 0.0
        %2340 = vmatpush1.msra.mxu0 0.0
        %2341 = vmatprep.mubr.f32.mxu0 0.0
        %2342 = vmatmul.mubr.f32.gmra.mrb[0].mxu0 %v2204
        %v2343 = vpop.f32.mrb[0].mxu0
        %v2344 = vadd.f32 %v2199, %v2343
        %v2345 = vpop.f32.mrb[0].mxu0
        %v2346 = vadd.f32 %v2201, %v2345
        %2347 = vdwg.mxu0
        %2348 = vrot.lane.b32.xlu0 %v2019, 15
        %v2349 = vpop.permute.xlu0 %2348
        %2350 = vrot.lane.b32.xlu0 %v2020, 15
        %v2351 = vpop.permute.xlu0 %2350
        %2352 = vrot.lane.b32.xlu0 %v2021, 15
        %v2353 = vpop.permute.xlu0 %2352
        %2354 = vrot.lane.b32.xlu0 %v2022, 15
        %v2355 = vpop.permute.xlu0 %2354
        %v2356 = vsel %vm732, %v2353, %v2355
        %v2357 = vsel %vm732, %v2351, %v2353
        %v2358 = vsel %vm732, %v2349, %v2351
        %v2359 = vsel %vm732, %v2355, %v2349
        %v2360 = vmul.f32 %v2359, %v741
        %v2361 = vmul.f32 %v2358, %v745
        %v2362 = vmul.f32 %v2357, %v749
        %v2363 = vmul.f32 %v2356, %v753
        %s2364 = scalar_lea.vmem %s3, 16
        %v2365 = vld [vmem:[%s2364] sm:$0xff]
        %v2367 = vsel %vm433, %v2365, 0
        %2369 = vmatprep.subr.mxu0 %v2361
        %2370 = vmatpush1.msra.mxu0 %v2360
        %2371 = vmatprep.subr.mxu0 0.0
        %2372 = vmatpush1.msra.mxu0 0.0
        %2373 = vmatprep.subr.mxu0 0.0
        %2374 = vmatpush1.msra.mxu0 0.0
        %2375 = vmatprep.subr.mxu0 0.0
        %2376 = vmatpush1.msra.mxu0 0.0
        %2377 = vmatprep.subr.mxu0 0.0
        %2378 = vmatpush1.msra.mxu0 0.0
        %2379 = vmatprep.subr.mxu0 0.0
        %2380 = vmatpush1.msra.mxu0 0.0
        %2381 = vmatprep.subr.mxu0 0.0
        %2382 = vmatpush1.msra.mxu0 0.0
        %2383 = vmatprep.subr.mxu0 0.0
        %2384 = vmatpush1.msra.mxu0 0.0
        %2385 = vmatprep.subr.mxu0 0.0
        %2386 = vmatpush1.msra.mxu0 0.0
        %2387 = vmatprep.subr.mxu0 0.0
        %2388 = vmatpush1.msra.mxu0 0.0
        %2389 = vmatprep.subr.mxu0 0.0
        %2390 = vmatpush1.msra.mxu0 0.0
        %2391 = vmatprep.subr.mxu0 0.0
        %2392 = vmatpush1.msra.mxu0 0.0
        %2393 = vmatprep.subr.mxu0 0.0
        %2394 = vmatpush1.msra.mxu0 0.0
        %2395 = vmatprep.subr.mxu0 0.0
        %2396 = vmatpush1.msra.mxu0 0.0
        %2397 = vmatprep.subr.mxu0 0.0
        %2398 = vmatpush1.msra.mxu0 0.0
        %2399 = vmatprep.subr.mxu0 0.0
        %2400 = vmatpush1.msra.mxu0 0.0
        %2401 = vmatprep.subr.mxu0 0.0
        %2402 = vmatpush1.msra.mxu0 0.0
        %2403 = vmatprep.subr.mxu0 0.0
        %2404 = vmatpush1.msra.mxu0 0.0
        %2405 = vmatprep.subr.mxu0 0.0
        %2406 = vmatpush1.msra.mxu0 0.0
        %2407 = vmatprep.subr.mxu0 0.0
        %2408 = vmatpush1.msra.mxu0 0.0
        %2409 = vmatprep.subr.mxu0 0.0
        %2410 = vmatpush1.msra.mxu0 0.0
        %2411 = vmatprep.subr.mxu0 0.0
        %2412 = vmatpush1.msra.mxu0 0.0
        %2413 = vmatprep.subr.mxu0 0.0
        %2414 = vmatpush1.msra.mxu0 0.0
        %2415 = vmatprep.subr.mxu0 0.0
        %2416 = vmatpush1.msra.mxu0 0.0
        %2417 = vmatprep.subr.mxu0 0.0
        %2418 = vmatpush1.msra.mxu0 0.0
        %2419 = vmatprep.subr.mxu0 0.0
        %2420 = vmatpush1.msra.mxu0 0.0
        %2421 = vmatprep.subr.mxu0 0.0
        %2422 = vmatpush1.msra.mxu0 0.0
        %2423 = vmatprep.subr.mxu0 0.0
        %2424 = vmatpush1.msra.mxu0 0.0
        %2425 = vmatprep.subr.mxu0 0.0
        %2426 = vmatpush1.msra.mxu0 0.0
        %2427 = vmatprep.subr.mxu0 0.0
        %2428 = vmatpush1.msra.mxu0 0.0
        %2429 = vmatprep.subr.mxu0 0.0
        %2430 = vmatpush1.msra.mxu0 0.0
        %2431 = vmatprep.subr.mxu0 0.0
        %2432 = vmatpush1.msra.mxu0 0.0
        %2433 = vmatprep.mubr.f32.mxu0 0.0
        %2434 = vmatmul.mubr.f32.gmra.mrb[0].mxu0 %v2367
        %v2435 = vpop.f32.mrb[0].mxu0
        %v2436 = vadd.f32 0.0, %v2435
        %v2437 = vpop.f32.mrb[0].mxu0
        %v2438 = vadd.f32 0.0, %v2437
        %2439 = vdwg.mxu0
        %2440 = vmatprep.subr.mxu0 %v2363
        %2441 = vmatpush1.msra.mxu0 %v2362
        %2442 = vmatprep.subr.mxu0 0.0
        %2443 = vmatpush1.msra.mxu0 0.0
        %2444 = vmatprep.subr.mxu0 0.0
        %2445 = vmatpush1.msra.mxu0 0.0
        %2446 = vmatprep.subr.mxu0 0.0
        %2447 = vmatpush1.msra.mxu0 0.0
        %2448 = vmatprep.subr.mxu0 0.0
        %2449 = vmatpush1.msra.mxu0 0.0
        %2450 = vmatprep.subr.mxu0 0.0
        %2451 = vmatpush1.msra.mxu0 0.0
        %2452 = vmatprep.subr.mxu0 0.0
        %2453 = vmatpush1.msra.mxu0 0.0
        %2454 = vmatprep.subr.mxu0 0.0
        %2455 = vmatpush1.msra.mxu0 0.0
        %2456 = vmatprep.subr.mxu0 0.0
        %2457 = vmatpush1.msra.mxu0 0.0
        %2458 = vmatprep.subr.mxu0 0.0
        %2459 = vmatpush1.msra.mxu0 0.0
        %2460 = vmatprep.subr.mxu0 0.0
        %2461 = vmatpush1.msra.mxu0 0.0
        %2462 = vmatprep.subr.mxu0 0.0
        %2463 = vmatpush1.msra.mxu0 0.0
        %2464 = vmatprep.subr.mxu0 0.0
        %2465 = vmatpush1.msra.mxu0 0.0
        %2466 = vmatprep.subr.mxu0 0.0
        %2467 = vmatpush1.msra.mxu0 0.0
        %2468 = vmatprep.subr.mxu0 0.0
        %2469 = vmatpush1.msra.mxu0 0.0
        %2470 = vmatprep.subr.mxu0 0.0
        %2471 = vmatpush1.msra.mxu0 0.0
        %2472 = vmatprep.subr.mxu0 0.0
        %2473 = vmatpush1.msra.mxu0 0.0
        %2474 = vmatprep.subr.mxu0 0.0
        %2475 = vmatpush1.msra.mxu0 0.0
        %2476 = vmatprep.subr.mxu0 0.0
        %2477 = vmatpush1.msra.mxu0 0.0
        %2478 = vmatprep.subr.mxu0 0.0
        %2479 = vmatpush1.msra.mxu0 0.0
        %2480 = vmatprep.subr.mxu0 0.0
        %2481 = vmatpush1.msra.mxu0 0.0
        %2482 = vmatprep.subr.mxu0 0.0
        %2483 = vmatpush1.msra.mxu0 0.0
        %2484 = vmatprep.subr.mxu0 0.0
        %2485 = vmatpush1.msra.mxu0 0.0
        %2486 = vmatprep.subr.mxu0 0.0
        %2487 = vmatpush1.msra.mxu0 0.0
        %2488 = vmatprep.subr.mxu0 0.0
        %2489 = vmatpush1.msra.mxu0 0.0
        %2490 = vmatprep.subr.mxu0 0.0
        %2491 = vmatpush1.msra.mxu0 0.0
        %2492 = vmatprep.subr.mxu0 0.0
        %2493 = vmatpush1.msra.mxu0 0.0
        %2494 = vmatprep.subr.mxu0 0.0
        %2495 = vmatpush1.msra.mxu0 0.0
        %2496 = vmatprep.subr.mxu0 0.0
        %2497 = vmatpush1.msra.mxu0 0.0
        %2498 = vmatprep.subr.mxu0 0.0
        %2499 = vmatpush1.msra.mxu0 0.0
        %2500 = vmatprep.subr.mxu0 0.0
        %2501 = vmatpush1.msra.mxu0 0.0
        %2502 = vmatprep.subr.mxu0 0.0
        %2503 = vmatpush1.msra.mxu0 0.0
        %2504 = vmatprep.mubr.f32.mxu0 0.0
        %2505 = vmatmul.mubr.f32.gmra.mrb[0].mxu0 %v2367
        %v2506 = vpop.f32.mrb[0].mxu0
        %v2507 = vadd.f32 0.0, %v2506
        %v2508 = vpop.f32.mrb[0].mxu0
        %v2509 = vadd.f32 0.0, %v2508
        %2510 = vdwg.mxu0
        %v2511 = vadd.f32 %v2273, %v2436
        %v2512 = vadd.f32 %v2275, %v2438
        %v2513 = vadd.f32 %v2344, %v2507
        %v2514 = vadd.f32 %v2346, %v2509
        %2515 = vrot.lane.b32.xlu0 %v2019, 1
        %v2516 = vpop.permute.xlu0 %2515
        %2517 = vrot.lane.b32.xlu0 %v2020, 1
        %v2518 = vpop.permute.xlu0 %2517
        %2519 = vrot.lane.b32.xlu0 %v2021, 1
        %v2520 = vpop.permute.xlu0 %2519
        %2521 = vrot.lane.b32.xlu0 %v2022, 1
        %v2522 = vpop.permute.xlu0 %2521
        %v2523 = vsel %vm921, %v2520, %v2522
        %v2524 = vsel %vm921, %v2518, %v2520
        %v2525 = vsel %vm921, %v2516, %v2518
        %v2526 = vsel %vm921, %v2522, %v2516
        %v2527 = vmul.f32 %v2526, %v930
        %v2528 = vmul.f32 %v2525, %v934
        %v2529 = vmul.f32 %v2524, %v938
        %v2530 = vmul.f32 %v2523, %v942
        %s2531 = scalar_lea.vmem %s3, 24
        %v2532 = vld [vmem:[%s2531] sm:$0xff]
        %v2534 = vsel %vm433, %v2532, 0
        %2536 = vmatprep.subr.mxu0 %v2528
        %2537 = vmatpush1.msra.mxu0 %v2527
        %2538 = vmatprep.subr.mxu0 0.0
        %2539 = vmatpush1.msra.mxu0 0.0
        %2540 = vmatprep.subr.mxu0 0.0
        %2541 = vmatpush1.msra.mxu0 0.0
        %2542 = vmatprep.subr.mxu0 0.0
        %2543 = vmatpush1.msra.mxu0 0.0
        %2544 = vmatprep.subr.mxu0 0.0
        %2545 = vmatpush1.msra.mxu0 0.0
        %2546 = vmatprep.subr.mxu0 0.0
        %2547 = vmatpush1.msra.mxu0 0.0
        %2548 = vmatprep.subr.mxu0 0.0
        %2549 = vmatpush1.msra.mxu0 0.0
        %2550 = vmatprep.subr.mxu0 0.0
        %2551 = vmatpush1.msra.mxu0 0.0
        %2552 = vmatprep.subr.mxu0 0.0
        %2553 = vmatpush1.msra.mxu0 0.0
        %2554 = vmatprep.subr.mxu0 0.0
        %2555 = vmatpush1.msra.mxu0 0.0
        %2556 = vmatprep.subr.mxu0 0.0
        %2557 = vmatpush1.msra.mxu0 0.0
        %2558 = vmatprep.subr.mxu0 0.0
        %2559 = vmatpush1.msra.mxu0 0.0
        %2560 = vmatprep.subr.mxu0 0.0
        %2561 = vmatpush1.msra.mxu0 0.0
        %2562 = vmatprep.subr.mxu0 0.0
        %2563 = vmatpush1.msra.mxu0 0.0
        %2564 = vmatprep.subr.mxu0 0.0
        %2565 = vmatpush1.msra.mxu0 0.0
        %2566 = vmatprep.subr.mxu0 0.0
        %2567 = vmatpush1.msra.mxu0 0.0
        %2568 = vmatprep.subr.mxu0 0.0
        %2569 = vmatpush1.msra.mxu0 0.0
        %2570 = vmatprep.subr.mxu0 0.0
        %2571 = vmatpush1.msra.mxu0 0.0
        %2572 = vmatprep.subr.mxu0 0.0
        %2573 = vmatpush1.msra.mxu0 0.0
        %2574 = vmatprep.subr.mxu0 0.0
        %2575 = vmatpush1.msra.mxu0 0.0
        %2576 = vmatprep.subr.mxu0 0.0
        %2577 = vmatpush1.msra.mxu0 0.0
        %2578 = vmatprep.subr.mxu0 0.0
        %2579 = vmatpush1.msra.mxu0 0.0
        %2580 = vmatprep.subr.mxu0 0.0
        %2581 = vmatpush1.msra.mxu0 0.0
        %2582 = vmatprep.subr.mxu0 0.0
        %2583 = vmatpush1.msra.mxu0 0.0
        %2584 = vmatprep.subr.mxu0 0.0
        %2585 = vmatpush1.msra.mxu0 0.0
        %2586 = vmatprep.subr.mxu0 0.0
        %2587 = vmatpush1.msra.mxu0 0.0
        %2588 = vmatprep.subr.mxu0 0.0
        %2589 = vmatpush1.msra.mxu0 0.0
        %2590 = vmatprep.subr.mxu0 0.0
        %2591 = vmatpush1.msra.mxu0 0.0
        %2592 = vmatprep.subr.mxu0 0.0
        %2593 = vmatpush1.msra.mxu0 0.0
        %2594 = vmatprep.subr.mxu0 0.0
        %2595 = vmatpush1.msra.mxu0 0.0
        %2596 = vmatprep.subr.mxu0 0.0
        %2597 = vmatpush1.msra.mxu0 0.0
        %2598 = vmatprep.subr.mxu0 0.0
        %2599 = vmatpush1.msra.mxu0 0.0
        %2600 = vmatprep.mubr.f32.mxu0 0.0
        %2601 = vmatmul.mubr.f32.gmra.mrb[0].mxu0 %v2534
        %v2602 = vpop.f32.mrb[0].mxu0
        %v2603 = vadd.f32 0.0, %v2602
        %v2604 = vpop.f32.mrb[0].mxu0
        %v2605 = vadd.f32 0.0, %v2604
        %2606 = vdwg.mxu0
        %2607 = vmatprep.subr.mxu0 %v2530
        %2608 = vmatpush1.msra.mxu0 %v2529
        %2609 = vmatprep.subr.mxu0 0.0
        %2610 = vmatpush1.msra.mxu0 0.0
        %2611 = vmatprep.subr.mxu0 0.0
        %2612 = vmatpush1.msra.mxu0 0.0
        %2613 = vmatprep.subr.mxu0 0.0
        %2614 = vmatpush1.msra.mxu0 0.0
        %2615 = vmatprep.subr.mxu0 0.0
        %2616 = vmatpush1.msra.mxu0 0.0
        %2617 = vmatprep.subr.mxu0 0.0
        %2618 = vmatpush1.msra.mxu0 0.0
        %2619 = vmatprep.subr.mxu0 0.0
        %2620 = vmatpush1.msra.mxu0 0.0
        %2621 = vmatprep.subr.mxu0 0.0
        %2622 = vmatpush1.msra.mxu0 0.0
        %2623 = vmatprep.subr.mxu0 0.0
        %2624 = vmatpush1.msra.mxu0 0.0
        %2625 = vmatprep.subr.mxu0 0.0
        %2626 = vmatpush1.msra.mxu0 0.0
        %2627 = vmatprep.subr.mxu0 0.0
        %2628 = vmatpush1.msra.mxu0 0.0
        %2629 = vmatprep.subr.mxu0 0.0
        %2630 = vmatpush1.msra.mxu0 0.0
        %2631 = vmatprep.subr.mxu0 0.0
        %2632 = vmatpush1.msra.mxu0 0.0
        %2633 = vmatprep.subr.mxu0 0.0
        %2634 = vmatpush1.msra.mxu0 0.0
        %2635 = vmatprep.subr.mxu0 0.0
        %2636 = vmatpush1.msra.mxu0 0.0
        %2637 = vmatprep.subr.mxu0 0.0
        %2638 = vmatpush1.msra.mxu0 0.0
        %2639 = vmatprep.subr.mxu0 0.0
        %2640 = vmatpush1.msra.mxu0 0.0
        %2641 = vmatprep.subr.mxu0 0.0
        %2642 = vmatpush1.msra.mxu0 0.0
        %2643 = vmatprep.subr.mxu0 0.0
        %2644 = vmatpush1.msra.mxu0 0.0
        %2645 = vmatprep.subr.mxu0 0.0
        %2646 = vmatpush1.msra.mxu0 0.0
        %2647 = vmatprep.subr.mxu0 0.0
        %2648 = vmatpush1.msra.mxu0 0.0
        %2649 = vmatprep.subr.mxu0 0.0
        %2650 = vmatpush1.msra.mxu0 0.0
        %2651 = vmatprep.subr.mxu0 0.0
        %2652 = vmatpush1.msra.mxu0 0.0
        %2653 = vmatprep.subr.mxu0 0.0
        %2654 = vmatpush1.msra.mxu0 0.0
        %2655 = vmatprep.subr.mxu0 0.0
        %2656 = vmatpush1.msra.mxu0 0.0
        %2657 = vmatprep.subr.mxu0 0.0
        %2658 = vmatpush1.msra.mxu0 0.0
        %2659 = vmatprep.subr.mxu0 0.0
        %2660 = vmatpush1.msra.mxu0 0.0
        %2661 = vmatprep.subr.mxu0 0.0
        %2662 = vmatpush1.msra.mxu0 0.0
        %2663 = vmatprep.subr.mxu0 0.0
        %2664 = vmatpush1.msra.mxu0 0.0
        %2665 = vmatprep.subr.mxu0 0.0
        %2666 = vmatpush1.msra.mxu0 0.0
        %2667 = vmatprep.subr.mxu0 0.0
        %2668 = vmatpush1.msra.mxu0 0.0
        %2669 = vmatprep.subr.mxu0 0.0
        %2670 = vmatpush1.msra.mxu0 0.0
        %2671 = vmatprep.mubr.f32.mxu0 0.0
        %2672 = vmatmul.mubr.f32.gmra.mrb[0].mxu0 %v2534
        %v2673 = vpop.f32.mrb[0].mxu0
        %v2674 = vadd.f32 0.0, %v2673
        %v2675 = vpop.f32.mrb[0].mxu0
        %v2676 = vadd.f32 0.0, %v2675
        %2677 = vdwg.mxu0
        %v2678 = vadd.f32 %v2511, %v2603
        %v2679 = vadd.f32 %v2512, %v2605
        %v2680 = vadd.f32 %v2513, %v2674
        %v2681 = vadd.f32 %v2514, %v2676
        %s2682 = scalar_lea.vmem %s3, 32
        %v2683 = vld [vmem:[%s2682] sm:$0xff]
        %v2685 = vsel %vm433, %v2683, 0
        %2687 = vmatprep.subr.mxu0 %v2020
        %2688 = vmatpush1.msra.mxu0 %v2019
        %2689 = vmatprep.subr.mxu0 0.0
        %2690 = vmatpush1.msra.mxu0 0.0
        %2691 = vmatprep.subr.mxu0 0.0
        %2692 = vmatpush1.msra.mxu0 0.0
        %2693 = vmatprep.subr.mxu0 0.0
        %2694 = vmatpush1.msra.mxu0 0.0
        %2695 = vmatprep.subr.mxu0 0.0
        %2696 = vmatpush1.msra.mxu0 0.0
        %2697 = vmatprep.subr.mxu0 0.0
        %2698 = vmatpush1.msra.mxu0 0.0
        %2699 = vmatprep.subr.mxu0 0.0
        %2700 = vmatpush1.msra.mxu0 0.0
        %2701 = vmatprep.subr.mxu0 0.0
        %2702 = vmatpush1.msra.mxu0 0.0
        %2703 = vmatprep.subr.mxu0 0.0
        %2704 = vmatpush1.msra.mxu0 0.0
        %2705 = vmatprep.subr.mxu0 0.0
        %2706 = vmatpush1.msra.mxu0 0.0
        %2707 = vmatprep.subr.mxu0 0.0
        %2708 = vmatpush1.msra.mxu0 0.0
        %2709 = vmatprep.subr.mxu0 0.0
        %2710 = vmatpush1.msra.mxu0 0.0
        %2711 = vmatprep.subr.mxu0 0.0
        %2712 = vmatpush1.msra.mxu0 0.0
        %2713 = vmatprep.subr.mxu0 0.0
        %2714 = vmatpush1.msra.mxu0 0.0
        %2715 = vmatprep.subr.mxu0 0.0
        %2716 = vmatpush1.msra.mxu0 0.0
        %2717 = vmatprep.subr.mxu0 0.0
        %2718 = vmatpush1.msra.mxu0 0.0
        %2719 = vmatprep.subr.mxu0 0.0
        %2720 = vmatpush1.msra.mxu0 0.0
        %2721 = vmatprep.subr.mxu0 0.0
        %2722 = vmatpush1.msra.mxu0 0.0
        %2723 = vmatprep.subr.mxu0 0.0
        %2724 = vmatpush1.msra.mxu0 0.0
        %2725 = vmatprep.subr.mxu0 0.0
        %2726 = vmatpush1.msra.mxu0 0.0
        %2727 = vmatprep.subr.mxu0 0.0
        %2728 = vmatpush1.msra.mxu0 0.0
        %2729 = vmatprep.subr.mxu0 0.0
        %2730 = vmatpush1.msra.mxu0 0.0
        %2731 = vmatprep.subr.mxu0 0.0
        %2732 = vmatpush1.msra.mxu0 0.0
        %2733 = vmatprep.subr.mxu0 0.0
        %2734 = vmatpush1.msra.mxu0 0.0
        %2735 = vmatprep.subr.mxu0 0.0
        %2736 = vmatpush1.msra.mxu0 0.0
        %2737 = vmatprep.subr.mxu0 0.0
        %2738 = vmatpush1.msra.mxu0 0.0
        %2739 = vmatprep.subr.mxu0 0.0
        %2740 = vmatpush1.msra.mxu0 0.0
        %2741 = vmatprep.subr.mxu0 0.0
        %2742 = vmatpush1.msra.mxu0 0.0
        %2743 = vmatprep.subr.mxu0 0.0
        %2744 = vmatpush1.msra.mxu0 0.0
        %2745 = vmatprep.subr.mxu0 0.0
        %2746 = vmatpush1.msra.mxu0 0.0
        %2747 = vmatprep.subr.mxu0 0.0
        %2748 = vmatpush1.msra.mxu0 0.0
        %2749 = vmatprep.subr.mxu0 0.0
        %2750 = vmatpush1.msra.mxu0 0.0
        %2751 = vmatprep.mubr.f32.mxu0 0.0
        %2752 = vmatmul.mubr.f32.gmra.mrb[0].mxu0 %v2685
        %v2753 = vpop.f32.mrb[0].mxu0
        %v2754 = vadd.f32 0.0, %v2753
        %v2755 = vpop.f32.mrb[0].mxu0
        %v2756 = vadd.f32 0.0, %v2755
        %2757 = vdwg.mxu0
        %2758 = vmatprep.subr.mxu0 %v2022
        %2759 = vmatpush1.msra.mxu0 %v2021
        %2760 = vmatprep.subr.mxu0 0.0
        %2761 = vmatpush1.msra.mxu0 0.0
        %2762 = vmatprep.subr.mxu0 0.0
        %2763 = vmatpush1.msra.mxu0 0.0
        %2764 = vmatprep.subr.mxu0 0.0
        %2765 = vmatpush1.msra.mxu0 0.0
        %2766 = vmatprep.subr.mxu0 0.0
        %2767 = vmatpush1.msra.mxu0 0.0
        %2768 = vmatprep.subr.mxu0 0.0
        %2769 = vmatpush1.msra.mxu0 0.0
        %2770 = vmatprep.subr.mxu0 0.0
        %2771 = vmatpush1.msra.mxu0 0.0
        %2772 = vmatprep.subr.mxu0 0.0
        %2773 = vmatpush1.msra.mxu0 0.0
        %2774 = vmatprep.subr.mxu0 0.0
        %2775 = vmatpush1.msra.mxu0 0.0
        %2776 = vmatprep.subr.mxu0 0.0
        %2777 = vmatpush1.msra.mxu0 0.0
        %2778 = vmatprep.subr.mxu0 0.0
        %2779 = vmatpush1.msra.mxu0 0.0
        %2780 = vmatprep.subr.mxu0 0.0
        %2781 = vmatpush1.msra.mxu0 0.0
        %2782 = vmatprep.subr.mxu0 0.0
        %2783 = vmatpush1.msra.mxu0 0.0
        %2784 = vmatprep.subr.mxu0 0.0
        %2785 = vmatpush1.msra.mxu0 0.0
        %2786 = vmatprep.subr.mxu0 0.0
        %2787 = vmatpush1.msra.mxu0 0.0
        %2788 = vmatprep.subr.mxu0 0.0
        %2789 = vmatpush1.msra.mxu0 0.0
        %2790 = vmatprep.subr.mxu0 0.0
        %2791 = vmatpush1.msra.mxu0 0.0
        %2792 = vmatprep.subr.mxu0 0.0
        %2793 = vmatpush1.msra.mxu0 0.0
        %2794 = vmatprep.subr.mxu0 0.0
        %2795 = vmatpush1.msra.mxu0 0.0
        %2796 = vmatprep.subr.mxu0 0.0
        %2797 = vmatpush1.msra.mxu0 0.0
        %2798 = vmatprep.subr.mxu0 0.0
        %2799 = vmatpush1.msra.mxu0 0.0
        %2800 = vmatprep.subr.mxu0 0.0
        %2801 = vmatpush1.msra.mxu0 0.0
        %2802 = vmatprep.subr.mxu0 0.0
        %2803 = vmatpush1.msra.mxu0 0.0
        %2804 = vmatprep.subr.mxu0 0.0
        %2805 = vmatpush1.msra.mxu0 0.0
        %2806 = vmatprep.subr.mxu0 0.0
        %2807 = vmatpush1.msra.mxu0 0.0
        %2808 = vmatprep.subr.mxu0 0.0
        %2809 = vmatpush1.msra.mxu0 0.0
        %2810 = vmatprep.subr.mxu0 0.0
        %2811 = vmatpush1.msra.mxu0 0.0
        %2812 = vmatprep.subr.mxu0 0.0
        %2813 = vmatpush1.msra.mxu0 0.0
        %2814 = vmatprep.subr.mxu0 0.0
        %2815 = vmatpush1.msra.mxu0 0.0
        %2816 = vmatprep.subr.mxu0 0.0
        %2817 = vmatpush1.msra.mxu0 0.0
        %2818 = vmatprep.subr.mxu0 0.0
        %2819 = vmatpush1.msra.mxu0 0.0
        %2820 = vmatprep.subr.mxu0 0.0
        %2821 = vmatpush1.msra.mxu0 0.0
        %2822 = vmatprep.mubr.f32.mxu0 0.0
        %2823 = vmatmul.mubr.f32.gmra.mrb[0].mxu0 %v2685
        %v2824 = vpop.f32.mrb[0].mxu0
        %v2825 = vadd.f32 0.0, %v2824
        %v2826 = vpop.f32.mrb[0].mxu0
        %v2827 = vadd.f32 0.0, %v2826
        %2828 = vdwg.mxu0
        %v2829 = vadd.f32 %v2678, %v2754
        %v2830 = vadd.f32 %v2679, %v2756
        %v2831 = vadd.f32 %v2680, %v2825
        %v2832 = vadd.f32 %v2681, %v2827
        %2833 = vrot.lane.b32.xlu0 %v2019, 127
        %v2834 = vpop.permute.xlu0 %2833
        %2835 = vrot.lane.b32.xlu0 %v2020, 127
        %v2836 = vpop.permute.xlu0 %2835
        %2837 = vrot.lane.b32.xlu0 %v2021, 127
        %v2838 = vpop.permute.xlu0 %2837
        %2839 = vrot.lane.b32.xlu0 %v2022, 127
        %v2840 = vpop.permute.xlu0 %2839
        %v2841 = vsel %vm1261, %v2838, %v2840
        %v2842 = vsel %vm1261, %v2836, %v2838
        %v2843 = vsel %vm1261, %v2834, %v2836
        %v2844 = vsel %vm1261, %v2840, %v2834
        %v2845 = vmul.f32 %v2843, %v1270
        %v2846 = vmul.f32 %v2842, %v1274
        %v2847 = vmul.f32 %v2841, %v1278
        %v2848 = vmul.f32 %v2844, %v1282
        %s2849 = scalar_lea.vmem %s3, 40
        %v2850 = vld [vmem:[%s2849] sm:$0xff]
        %v2852 = vsel %vm433, %v2850, 0
        %2854 = vmatprep.subr.mxu0 %v2846
        %2855 = vmatpush1.msra.mxu0 %v2845
        %2856 = vmatprep.subr.mxu0 0.0
        %2857 = vmatpush1.msra.mxu0 0.0
        %2858 = vmatprep.subr.mxu0 0.0
        %2859 = vmatpush1.msra.mxu0 0.0
        %2860 = vmatprep.subr.mxu0 0.0
        %2861 = vmatpush1.msra.mxu0 0.0
        %2862 = vmatprep.subr.mxu0 0.0
        %2863 = vmatpush1.msra.mxu0 0.0
        %2864 = vmatprep.subr.mxu0 0.0
        %2865 = vmatpush1.msra.mxu0 0.0
        %2866 = vmatprep.subr.mxu0 0.0
        %2867 = vmatpush1.msra.mxu0 0.0
        %2868 = vmatprep.subr.mxu0 0.0
        %2869 = vmatpush1.msra.mxu0 0.0
        %2870 = vmatprep.subr.mxu0 0.0
        %2871 = vmatpush1.msra.mxu0 0.0
        %2872 = vmatprep.subr.mxu0 0.0
        %2873 = vmatpush1.msra.mxu0 0.0
        %2874 = vmatprep.subr.mxu0 0.0
        %2875 = vmatpush1.msra.mxu0 0.0
        %2876 = vmatprep.subr.mxu0 0.0
        %2877 = vmatpush1.msra.mxu0 0.0
        %2878 = vmatprep.subr.mxu0 0.0
        %2879 = vmatpush1.msra.mxu0 0.0
        %2880 = vmatprep.subr.mxu0 0.0
        %2881 = vmatpush1.msra.mxu0 0.0
        %2882 = vmatprep.subr.mxu0 0.0
        %2883 = vmatpush1.msra.mxu0 0.0
        %2884 = vmatprep.subr.mxu0 0.0
        %2885 = vmatpush1.msra.mxu0 0.0
        %2886 = vmatprep.subr.mxu0 0.0
        %2887 = vmatpush1.msra.mxu0 0.0
        %2888 = vmatprep.subr.mxu0 0.0
        %2889 = vmatpush1.msra.mxu0 0.0
        %2890 = vmatprep.subr.mxu0 0.0
        %2891 = vmatpush1.msra.mxu0 0.0
        %2892 = vmatprep.subr.mxu0 0.0
        %2893 = vmatpush1.msra.mxu0 0.0
        %2894 = vmatprep.subr.mxu0 0.0
        %2895 = vmatpush1.msra.mxu0 0.0
        %2896 = vmatprep.subr.mxu0 0.0
        %2897 = vmatpush1.msra.mxu0 0.0
        %2898 = vmatprep.subr.mxu0 0.0
        %2899 = vmatpush1.msra.mxu0 0.0
        %2900 = vmatprep.subr.mxu0 0.0
        %2901 = vmatpush1.msra.mxu0 0.0
        %2902 = vmatprep.subr.mxu0 0.0
        %2903 = vmatpush1.msra.mxu0 0.0
        %2904 = vmatprep.subr.mxu0 0.0
        %2905 = vmatpush1.msra.mxu0 0.0
        %2906 = vmatprep.subr.mxu0 0.0
        %2907 = vmatpush1.msra.mxu0 0.0
        %2908 = vmatprep.subr.mxu0 0.0
        %2909 = vmatpush1.msra.mxu0 0.0
        %2910 = vmatprep.subr.mxu0 0.0
        %2911 = vmatpush1.msra.mxu0 0.0
        %2912 = vmatprep.subr.mxu0 0.0
        %2913 = vmatpush1.msra.mxu0 0.0
        %2914 = vmatprep.subr.mxu0 0.0
        %2915 = vmatpush1.msra.mxu0 0.0
        %2916 = vmatprep.subr.mxu0 0.0
        %2917 = vmatpush1.msra.mxu0 0.0
        %2918 = vmatprep.mubr.f32.mxu0 0.0
        %2919 = vmatmul.mubr.f32.gmra.mrb[0].mxu0 %v2852
        %v2920 = vpop.f32.mrb[0].mxu0
        %v2921 = vadd.f32 0.0, %v2920
        %v2922 = vpop.f32.mrb[0].mxu0
        %v2923 = vadd.f32 0.0, %v2922
        %2924 = vdwg.mxu0
        %2925 = vmatprep.subr.mxu0 %v2848
        %2926 = vmatpush1.msra.mxu0 %v2847
        %2927 = vmatprep.subr.mxu0 0.0
        %2928 = vmatpush1.msra.mxu0 0.0
        %2929 = vmatprep.subr.mxu0 0.0
        %2930 = vmatpush1.msra.mxu0 0.0
        %2931 = vmatprep.subr.mxu0 0.0
        %2932 = vmatpush1.msra.mxu0 0.0
        %2933 = vmatprep.subr.mxu0 0.0
        %2934 = vmatpush1.msra.mxu0 0.0
        %2935 = vmatprep.subr.mxu0 0.0
        %2936 = vmatpush1.msra.mxu0 0.0
        %2937 = vmatprep.subr.mxu0 0.0
        %2938 = vmatpush1.msra.mxu0 0.0
        %2939 = vmatprep.subr.mxu0 0.0
        %2940 = vmatpush1.msra.mxu0 0.0
        %2941 = vmatprep.subr.mxu0 0.0
        %2942 = vmatpush1.msra.mxu0 0.0
        %2943 = vmatprep.subr.mxu0 0.0
        %2944 = vmatpush1.msra.mxu0 0.0
        %2945 = vmatprep.subr.mxu0 0.0
        %2946 = vmatpush1.msra.mxu0 0.0
        %2947 = vmatprep.subr.mxu0 0.0
        %2948 = vmatpush1.msra.mxu0 0.0
        %2949 = vmatprep.subr.mxu0 0.0
        %2950 = vmatpush1.msra.mxu0 0.0
        %2951 = vmatprep.subr.mxu0 0.0
        %2952 = vmatpush1.msra.mxu0 0.0
        %2953 = vmatprep.subr.mxu0 0.0
        %2954 = vmatpush1.msra.mxu0 0.0
        %2955 = vmatprep.subr.mxu0 0.0
        %2956 = vmatpush1.msra.mxu0 0.0
        %2957 = vmatprep.subr.mxu0 0.0
        %2958 = vmatpush1.msra.mxu0 0.0
        %2959 = vmatprep.subr.mxu0 0.0
        %2960 = vmatpush1.msra.mxu0 0.0
        %2961 = vmatprep.subr.mxu0 0.0
        %2962 = vmatpush1.msra.mxu0 0.0
        %2963 = vmatprep.subr.mxu0 0.0
        %2964 = vmatpush1.msra.mxu0 0.0
        %2965 = vmatprep.subr.mxu0 0.0
        %2966 = vmatpush1.msra.mxu0 0.0
        %2967 = vmatprep.subr.mxu0 0.0
        %2968 = vmatpush1.msra.mxu0 0.0
        %2969 = vmatprep.subr.mxu0 0.0
        %2970 = vmatpush1.msra.mxu0 0.0
        %2971 = vmatprep.subr.mxu0 0.0
        %2972 = vmatpush1.msra.mxu0 0.0
        %2973 = vmatprep.subr.mxu0 0.0
        %2974 = vmatpush1.msra.mxu0 0.0
        %2975 = vmatprep.subr.mxu0 0.0
        %2976 = vmatpush1.msra.mxu0 0.0
        %2977 = vmatprep.subr.mxu0 0.0
        %2978 = vmatpush1.msra.mxu0 0.0
        %2979 = vmatprep.subr.mxu0 0.0
        %2980 = vmatpush1.msra.mxu0 0.0
        %2981 = vmatprep.subr.mxu0 0.0
        %2982 = vmatpush1.msra.mxu0 0.0
        %2983 = vmatprep.subr.mxu0 0.0
        %2984 = vmatpush1.msra.mxu0 0.0
        %2985 = vmatprep.subr.mxu0 0.0
        %2986 = vmatpush1.msra.mxu0 0.0
        %2987 = vmatprep.subr.mxu0 0.0
        %2988 = vmatpush1.msra.mxu0 0.0
        %2989 = vmatprep.mubr.f32.mxu0 0.0
        %2990 = vmatmul.mubr.f32.gmra.mrb[0].mxu0 %v2852
        %v2991 = vpop.f32.mrb[0].mxu0
        %v2992 = vadd.f32 0.0, %v2991
        %v2993 = vpop.f32.mrb[0].mxu0
        %v2994 = vadd.f32 0.0, %v2993
        %2995 = vdwg.mxu0
        %v2996 = vadd.f32 %v2829, %v2921
        %v2997 = vadd.f32 %v2830, %v2923
        %v2998 = vadd.f32 %v2831, %v2992
        %v2999 = vadd.f32 %v2832, %v2994
        %3000 = vrot.lane.b32.xlu0 %v2019, 113
        %v3001 = vpop.permute.xlu0 %3000
        %3002 = vrot.lane.b32.xlu0 %v2020, 113
        %v3003 = vpop.permute.xlu0 %3002
        %3004 = vrot.lane.b32.xlu0 %v2021, 113
        %v3005 = vpop.permute.xlu0 %3004
        %3006 = vrot.lane.b32.xlu0 %v2022, 113
        %v3007 = vpop.permute.xlu0 %3006
        %v3008 = vsel %vm1450, %v3005, %v3007
        %v3009 = vsel %vm1450, %v3003, %v3005
        %v3010 = vsel %vm1450, %v3001, %v3003
        %v3011 = vsel %vm1450, %v3007, %v3001
        %v3012 = vmul.f32 %v3010, %v1459
        %v3013 = vmul.f32 %v3009, %v1463
        %v3014 = vmul.f32 %v3008, %v1467
        %v3015 = vmul.f32 %v3011, %v1471
        %s3016 = scalar_lea.vmem %s3, 48
        %v3017 = vld [vmem:[%s3016] sm:$0xff]
        %v3019 = vsel %vm433, %v3017, 0
        %3021 = vmatprep.subr.mxu0 %v3013
        %3022 = vmatpush1.msra.mxu0 %v3012
        %3023 = vmatprep.subr.mxu0 0.0
        %3024 = vmatpush1.msra.mxu0 0.0
        %3025 = vmatprep.subr.mxu0 0.0
        %3026 = vmatpush1.msra.mxu0 0.0
        %3027 = vmatprep.subr.mxu0 0.0
        %3028 = vmatpush1.msra.mxu0 0.0
        %3029 = vmatprep.subr.mxu0 0.0
        %3030 = vmatpush1.msra.mxu0 0.0
        %3031 = vmatprep.subr.mxu0 0.0
        %3032 = vmatpush1.msra.mxu0 0.0
        %3033 = vmatprep.subr.mxu0 0.0
        %3034 = vmatpush1.msra.mxu0 0.0
        %3035 = vmatprep.subr.mxu0 0.0
        %3036 = vmatpush1.msra.mxu0 0.0
        %3037 = vmatprep.subr.mxu0 0.0
        %3038 = vmatpush1.msra.mxu0 0.0
        %3039 = vmatprep.subr.mxu0 0.0
        %3040 = vmatpush1.msra.mxu0 0.0
        %3041 = vmatprep.subr.mxu0 0.0
        %3042 = vmatpush1.msra.mxu0 0.0
        %3043 = vmatprep.subr.mxu0 0.0
        %3044 = vmatpush1.msra.mxu0 0.0
        %3045 = vmatprep.subr.mxu0 0.0
        %3046 = vmatpush1.msra.mxu0 0.0
        %3047 = vmatprep.subr.mxu0 0.0
        %3048 = vmatpush1.msra.mxu0 0.0
        %3049 = vmatprep.subr.mxu0 0.0
        %3050 = vmatpush1.msra.mxu0 0.0
        %3051 = vmatprep.subr.mxu0 0.0
        %3052 = vmatpush1.msra.mxu0 0.0
        %3053 = vmatprep.subr.mxu0 0.0
        %3054 = vmatpush1.msra.mxu0 0.0
        %3055 = vmatprep.subr.mxu0 0.0
        %3056 = vmatpush1.msra.mxu0 0.0
        %3057 = vmatprep.subr.mxu0 0.0
        %3058 = vmatpush1.msra.mxu0 0.0
        %3059 = vmatprep.subr.mxu0 0.0
        %3060 = vmatpush1.msra.mxu0 0.0
        %3061 = vmatprep.subr.mxu0 0.0
        %3062 = vmatpush1.msra.mxu0 0.0
        %3063 = vmatprep.subr.mxu0 0.0
        %3064 = vmatpush1.msra.mxu0 0.0
        %3065 = vmatprep.subr.mxu0 0.0
        %3066 = vmatpush1.msra.mxu0 0.0
        %3067 = vmatprep.subr.mxu0 0.0
        %3068 = vmatpush1.msra.mxu0 0.0
        %3069 = vmatprep.subr.mxu0 0.0
        %3070 = vmatpush1.msra.mxu0 0.0
        %3071 = vmatprep.subr.mxu0 0.0
        %3072 = vmatpush1.msra.mxu0 0.0
        %3073 = vmatprep.subr.mxu0 0.0
        %3074 = vmatpush1.msra.mxu0 0.0
        %3075 = vmatprep.subr.mxu0 0.0
        %3076 = vmatpush1.msra.mxu0 0.0
        %3077 = vmatprep.subr.mxu0 0.0
        %3078 = vmatpush1.msra.mxu0 0.0
        %3079 = vmatprep.subr.mxu0 0.0
        %3080 = vmatpush1.msra.mxu0 0.0
        %3081 = vmatprep.subr.mxu0 0.0
        %3082 = vmatpush1.msra.mxu0 0.0
        %3083 = vmatprep.subr.mxu0 0.0
        %3084 = vmatpush1.msra.mxu0 0.0
        %3085 = vmatprep.mubr.f32.mxu0 0.0
        %3086 = vmatmul.mubr.f32.gmra.mrb[0].mxu0 %v3019
        %v3087 = vpop.f32.mrb[0].mxu0
        %v3088 = vadd.f32 0.0, %v3087
        %v3089 = vpop.f32.mrb[0].mxu0
        %v3090 = vadd.f32 0.0, %v3089
        %3091 = vdwg.mxu0
        %3092 = vmatprep.subr.mxu0 %v3015
        %3093 = vmatpush1.msra.mxu0 %v3014
        %3094 = vmatprep.subr.mxu0 0.0
        %3095 = vmatpush1.msra.mxu0 0.0
        %3096 = vmatprep.subr.mxu0 0.0
        %3097 = vmatpush1.msra.mxu0 0.0
        %3098 = vmatprep.subr.mxu0 0.0
        %3099 = vmatpush1.msra.mxu0 0.0
        %3100 = vmatprep.subr.mxu0 0.0
        %3101 = vmatpush1.msra.mxu0 0.0
        %3102 = vmatprep.subr.mxu0 0.0
        %3103 = vmatpush1.msra.mxu0 0.0
        %3104 = vmatprep.subr.mxu0 0.0
        %3105 = vmatpush1.msra.mxu0 0.0
        %3106 = vmatprep.subr.mxu0 0.0
        %3107 = vmatpush1.msra.mxu0 0.0
        %3108 = vmatprep.subr.mxu0 0.0
        %3109 = vmatpush1.msra.mxu0 0.0
        %3110 = vmatprep.subr.mxu0 0.0
        %3111 = vmatpush1.msra.mxu0 0.0
        %3112 = vmatprep.subr.mxu0 0.0
        %3113 = vmatpush1.msra.mxu0 0.0
        %3114 = vmatprep.subr.mxu0 0.0
        %3115 = vmatpush1.msra.mxu0 0.0
        %3116 = vmatprep.subr.mxu0 0.0
        %3117 = vmatpush1.msra.mxu0 0.0
        %3118 = vmatprep.subr.mxu0 0.0
        %3119 = vmatpush1.msra.mxu0 0.0
        %3120 = vmatprep.subr.mxu0 0.0
        %3121 = vmatpush1.msra.mxu0 0.0
        %3122 = vmatprep.subr.mxu0 0.0
        %3123 = vmatpush1.msra.mxu0 0.0
        %3124 = vmatprep.subr.mxu0 0.0
        %3125 = vmatpush1.msra.mxu0 0.0
        %3126 = vmatprep.subr.mxu0 0.0
        %3127 = vmatpush1.msra.mxu0 0.0
        %3128 = vmatprep.subr.mxu0 0.0
        %3129 = vmatpush1.msra.mxu0 0.0
        %3130 = vmatprep.subr.mxu0 0.0
        %3131 = vmatpush1.msra.mxu0 0.0
        %3132 = vmatprep.subr.mxu0 0.0
        %3133 = vmatpush1.msra.mxu0 0.0
        %3134 = vmatprep.subr.mxu0 0.0
        %3135 = vmatpush1.msra.mxu0 0.0
        %3136 = vmatprep.subr.mxu0 0.0
        %3137 = vmatpush1.msra.mxu0 0.0
        %3138 = vmatprep.subr.mxu0 0.0
        %3139 = vmatpush1.msra.mxu0 0.0
        %3140 = vmatprep.subr.mxu0 0.0
        %3141 = vmatpush1.msra.mxu0 0.0
        %3142 = vmatprep.subr.mxu0 0.0
        %3143 = vmatpush1.msra.mxu0 0.0
        %3144 = vmatprep.subr.mxu0 0.0
        %3145 = vmatpush1.msra.mxu0 0.0
        %3146 = vmatprep.subr.mxu0 0.0
        %3147 = vmatpush1.msra.mxu0 0.0
        %3148 = vmatprep.subr.mxu0 0.0
        %3149 = vmatpush1.msra.mxu0 0.0
        %3150 = vmatprep.subr.mxu0 0.0
        %3151 = vmatpush1.msra.mxu0 0.0
        %3152 = vmatprep.subr.mxu0 0.0
        %3153 = vmatpush1.msra.mxu0 0.0
        %3154 = vmatprep.subr.mxu0 0.0
        %3155 = vmatpush1.msra.mxu0 0.0
        %3156 = vmatprep.mubr.f32.mxu0 0.0
        %3157 = vmatmul.mubr.f32.gmra.mrb[0].mxu0 %v3019
        %v3158 = vpop.f32.mrb[0].mxu0
        %v3159 = vadd.f32 0.0, %v3158
        %v3160 = vpop.f32.mrb[0].mxu0
        %v3161 = vadd.f32 0.0, %v3160
        %3162 = vdwg.mxu0
        %v3163 = vadd.f32 %v2996, %v3088
        %v3164 = vadd.f32 %v2997, %v3090
        %v3165 = vadd.f32 %v2998, %v3159
        %v3166 = vadd.f32 %v2999, %v3161
        %3167 = vrot.lane.b32.xlu0 %v2019, 112
        %v3168 = vpop.permute.xlu0 %3167
        %3169 = vrot.lane.b32.xlu0 %v2020, 112
        %v3170 = vpop.permute.xlu0 %3169
        %3171 = vrot.lane.b32.xlu0 %v2021, 112
        %v3172 = vpop.permute.xlu0 %3171
        %3173 = vrot.lane.b32.xlu0 %v2022, 112
        %v3174 = vpop.permute.xlu0 %3173
        %v3175 = vsel %vm1639, %v3172, %v3174
        %v3176 = vsel %vm1639, %v3170, %v3172
        %v3177 = vsel %vm1639, %v3168, %v3170
        %v3178 = vsel %vm1639, %v3174, %v3168
        %v3179 = vmul.f32 %v3177, %v1648
        %v3180 = vmul.f32 %v3176, %v1652
        %v3181 = vmul.f32 %v3175, %v1656
        %v3182 = vmul.f32 %v3178, %v1660
        %s3183 = scalar_lea.vmem %s3, 56
        %v3184 = vld [vmem:[%s3183] sm:$0xff]
        %v3186 = vsel %vm433, %v3184, 0
        %3188 = vmatprep.subr.mxu0 %v3180
        %3189 = vmatpush1.msra.mxu0 %v3179
        %3190 = vmatprep.subr.mxu0 0.0
        %3191 = vmatpush1.msra.mxu0 0.0
        %3192 = vmatprep.subr.mxu0 0.0
        %3193 = vmatpush1.msra.mxu0 0.0
        %3194 = vmatprep.subr.mxu0 0.0
        %3195 = vmatpush1.msra.mxu0 0.0
        %3196 = vmatprep.subr.mxu0 0.0
        %3197 = vmatpush1.msra.mxu0 0.0
        %3198 = vmatprep.subr.mxu0 0.0
        %3199 = vmatpush1.msra.mxu0 0.0
        %3200 = vmatprep.subr.mxu0 0.0
        %3201 = vmatpush1.msra.mxu0 0.0
        %3202 = vmatprep.subr.mxu0 0.0
        %3203 = vmatpush1.msra.mxu0 0.0
        %3204 = vmatprep.subr.mxu0 0.0
        %3205 = vmatpush1.msra.mxu0 0.0
        %3206 = vmatprep.subr.mxu0 0.0
        %3207 = vmatpush1.msra.mxu0 0.0
        %3208 = vmatprep.subr.mxu0 0.0
        %3209 = vmatpush1.msra.mxu0 0.0
        %3210 = vmatprep.subr.mxu0 0.0
        %3211 = vmatpush1.msra.mxu0 0.0
        %3212 = vmatprep.subr.mxu0 0.0
        %3213 = vmatpush1.msra.mxu0 0.0
        %3214 = vmatprep.subr.mxu0 0.0
        %3215 = vmatpush1.msra.mxu0 0.0
        %3216 = vmatprep.subr.mxu0 0.0
        %3217 = vmatpush1.msra.mxu0 0.0
        %3218 = vmatprep.subr.mxu0 0.0
        %3219 = vmatpush1.msra.mxu0 0.0
        %3220 = vmatprep.subr.mxu0 0.0
        %3221 = vmatpush1.msra.mxu0 0.0
        %3222 = vmatprep.subr.mxu0 0.0
        %3223 = vmatpush1.msra.mxu0 0.0
        %3224 = vmatprep.subr.mxu0 0.0
        %3225 = vmatpush1.msra.mxu0 0.0
        %3226 = vmatprep.subr.mxu0 0.0
        %3227 = vmatpush1.msra.mxu0 0.0
        %3228 = vmatprep.subr.mxu0 0.0
        %3229 = vmatpush1.msra.mxu0 0.0
        %3230 = vmatprep.subr.mxu0 0.0
        %3231 = vmatpush1.msra.mxu0 0.0
        %3232 = vmatprep.subr.mxu0 0.0
        %3233 = vmatpush1.msra.mxu0 0.0
        %3234 = vmatprep.subr.mxu0 0.0
        %3235 = vmatpush1.msra.mxu0 0.0
        %3236 = vmatprep.subr.mxu0 0.0
        %3237 = vmatpush1.msra.mxu0 0.0
        %3238 = vmatprep.subr.mxu0 0.0
        %3239 = vmatpush1.msra.mxu0 0.0
        %3240 = vmatprep.subr.mxu0 0.0
        %3241 = vmatpush1.msra.mxu0 0.0
        %3242 = vmatprep.subr.mxu0 0.0
        %3243 = vmatpush1.msra.mxu0 0.0
        %3244 = vmatprep.subr.mxu0 0.0
        %3245 = vmatpush1.msra.mxu0 0.0
        %3246 = vmatprep.subr.mxu0 0.0
        %3247 = vmatpush1.msra.mxu0 0.0
        %3248 = vmatprep.subr.mxu0 0.0
        %3249 = vmatpush1.msra.mxu0 0.0
        %3250 = vmatprep.subr.mxu0 0.0
        %3251 = vmatpush1.msra.mxu0 0.0
        %3252 = vmatprep.mubr.f32.mxu0 0.0
        %3253 = vmatmul.mubr.f32.gmra.mrb[0].mxu0 %v3186
        %v3254 = vpop.f32.mrb[0].mxu0
        %v3255 = vadd.f32 0.0, %v3254
        %v3256 = vpop.f32.mrb[0].mxu0
        %v3257 = vadd.f32 0.0, %v3256
        %3258 = vdwg.mxu0
        %3259 = vmatprep.subr.mxu0 %v3182
        %3260 = vmatpush1.msra.mxu0 %v3181
        %3261 = vmatprep.subr.mxu0 0.0
        %3262 = vmatpush1.msra.mxu0 0.0
        %3263 = vmatprep.subr.mxu0 0.0
        %3264 = vmatpush1.msra.mxu0 0.0
        %3265 = vmatprep.subr.mxu0 0.0
        %3266 = vmatpush1.msra.mxu0 0.0
        %3267 = vmatprep.subr.mxu0 0.0
        %3268 = vmatpush1.msra.mxu0 0.0
        %3269 = vmatprep.subr.mxu0 0.0
        %3270 = vmatpush1.msra.mxu0 0.0
        %3271 = vmatprep.subr.mxu0 0.0
        %3272 = vmatpush1.msra.mxu0 0.0
        %3273 = vmatprep.subr.mxu0 0.0
        %3274 = vmatpush1.msra.mxu0 0.0
        %3275 = vmatprep.subr.mxu0 0.0
        %3276 = vmatpush1.msra.mxu0 0.0
        %3277 = vmatprep.subr.mxu0 0.0
        %3278 = vmatpush1.msra.mxu0 0.0
        %3279 = vmatprep.subr.mxu0 0.0
        %3280 = vmatpush1.msra.mxu0 0.0
        %3281 = vmatprep.subr.mxu0 0.0
        %3282 = vmatpush1.msra.mxu0 0.0
        %3283 = vmatprep.subr.mxu0 0.0
        %3284 = vmatpush1.msra.mxu0 0.0
        %3285 = vmatprep.subr.mxu0 0.0
        %3286 = vmatpush1.msra.mxu0 0.0
        %3287 = vmatprep.subr.mxu0 0.0
        %3288 = vmatpush1.msra.mxu0 0.0
        %3289 = vmatprep.subr.mxu0 0.0
        %3290 = vmatpush1.msra.mxu0 0.0
        %3291 = vmatprep.subr.mxu0 0.0
        %3292 = vmatpush1.msra.mxu0 0.0
        %3293 = vmatprep.subr.mxu0 0.0
        %3294 = vmatpush1.msra.mxu0 0.0
        %3295 = vmatprep.subr.mxu0 0.0
        %3296 = vmatpush1.msra.mxu0 0.0
        %3297 = vmatprep.subr.mxu0 0.0
        %3298 = vmatpush1.msra.mxu0 0.0
        %3299 = vmatprep.subr.mxu0 0.0
        %3300 = vmatpush1.msra.mxu0 0.0
        %3301 = vmatprep.subr.mxu0 0.0
        %3302 = vmatpush1.msra.mxu0 0.0
        %3303 = vmatprep.subr.mxu0 0.0
        %3304 = vmatpush1.msra.mxu0 0.0
        %3305 = vmatprep.subr.mxu0 0.0
        %3306 = vmatpush1.msra.mxu0 0.0
        %3307 = vmatprep.subr.mxu0 0.0
        %3308 = vmatpush1.msra.mxu0 0.0
        %3309 = vmatprep.subr.mxu0 0.0
        %3310 = vmatpush1.msra.mxu0 0.0
        %3311 = vmatprep.subr.mxu0 0.0
        %3312 = vmatpush1.msra.mxu0 0.0
        %3313 = vmatprep.subr.mxu0 0.0
        %3314 = vmatpush1.msra.mxu0 0.0
        %3315 = vmatprep.subr.mxu0 0.0
        %3316 = vmatpush1.msra.mxu0 0.0
        %3317 = vmatprep.subr.mxu0 0.0
        %3318 = vmatpush1.msra.mxu0 0.0
        %3319 = vmatprep.subr.mxu0 0.0
        %3320 = vmatpush1.msra.mxu0 0.0
        %3321 = vmatprep.subr.mxu0 0.0
        %3322 = vmatpush1.msra.mxu0 0.0
        %3323 = vmatprep.mubr.f32.mxu0 0.0
        %3324 = vmatmul.mubr.f32.gmra.mrb[0].mxu0 %v3186
        %v3325 = vpop.f32.mrb[0].mxu0
        %v3326 = vadd.f32 0.0, %v3325
        %v3327 = vpop.f32.mrb[0].mxu0
        %v3328 = vadd.f32 0.0, %v3327
        %3329 = vdwg.mxu0
        %v3330 = vadd.f32 %v3163, %v3255
        %v3331 = vadd.f32 %v3164, %v3257
        %v3332 = vadd.f32 %v3165, %v3326
        %v3333 = vadd.f32 %v3166, %v3328
        %3334 = vrot.lane.b32.xlu0 %v2019, 111
        %v3335 = vpop.permute.xlu0 %3334
        %3336 = vrot.lane.b32.xlu0 %v2020, 111
        %v3337 = vpop.permute.xlu0 %3336
        %3338 = vrot.lane.b32.xlu0 %v2021, 111
        %v3339 = vpop.permute.xlu0 %3338
        %3340 = vrot.lane.b32.xlu0 %v2022, 111
        %v3341 = vpop.permute.xlu0 %3340
        %v3342 = vsel %vm1828, %v3339, %v3341
        %v3343 = vsel %vm1828, %v3337, %v3339
        %v3344 = vsel %vm1828, %v3335, %v3337
        %v3345 = vsel %vm1828, %v3341, %v3335
        %v3346 = vmul.f32 %v3344, %v1837
        %v3347 = vmul.f32 %v3343, %v1841
        %v3348 = vmul.f32 %v3342, %v1845
        %v3349 = vmul.f32 %v3345, %v1849
        %s3350 = scalar_lea.vmem %s3, 64
        %v3351 = vld [vmem:[%s3350] sm:$0xff]
        %v3353 = vsel %vm433, %v3351, 0
        %3355 = vmatprep.subr.mxu0 %v3347
        %3356 = vmatpush1.msra.mxu0 %v3346
        %3357 = vmatprep.subr.mxu0 0.0
        %3358 = vmatpush1.msra.mxu0 0.0
        %3359 = vmatprep.subr.mxu0 0.0
        %3360 = vmatpush1.msra.mxu0 0.0
        %3361 = vmatprep.subr.mxu0 0.0
        %3362 = vmatpush1.msra.mxu0 0.0
        %3363 = vmatprep.subr.mxu0 0.0
        %3364 = vmatpush1.msra.mxu0 0.0
        %3365 = vmatprep.subr.mxu0 0.0
        %3366 = vmatpush1.msra.mxu0 0.0
        %3367 = vmatprep.subr.mxu0 0.0
        %3368 = vmatpush1.msra.mxu0 0.0
        %3369 = vmatprep.subr.mxu0 0.0
        %3370 = vmatpush1.msra.mxu0 0.0
        %3371 = vmatprep.subr.mxu0 0.0
        %3372 = vmatpush1.msra.mxu0 0.0
        %3373 = vmatprep.subr.mxu0 0.0
        %3374 = vmatpush1.msra.mxu0 0.0
        %3375 = vmatprep.subr.mxu0 0.0
        %3376 = vmatpush1.msra.mxu0 0.0
        %3377 = vmatprep.subr.mxu0 0.0
        %3378 = vmatpush1.msra.mxu0 0.0
        %3379 = vmatprep.subr.mxu0 0.0
        %3380 = vmatpush1.msra.mxu0 0.0
        %3381 = vmatprep.subr.mxu0 0.0
        %3382 = vmatpush1.msra.mxu0 0.0
        %3383 = vmatprep.subr.mxu0 0.0
        %3384 = vmatpush1.msra.mxu0 0.0
        %3385 = vmatprep.subr.mxu0 0.0
        %3386 = vmatpush1.msra.mxu0 0.0
        %3387 = vmatprep.subr.mxu0 0.0
        %3388 = vmatpush1.msra.mxu0 0.0
        %3389 = vmatprep.subr.mxu0 0.0
        %3390 = vmatpush1.msra.mxu0 0.0
        %3391 = vmatprep.subr.mxu0 0.0
        %3392 = vmatpush1.msra.mxu0 0.0
        %3393 = vmatprep.subr.mxu0 0.0
        %3394 = vmatpush1.msra.mxu0 0.0
        %3395 = vmatprep.subr.mxu0 0.0
        %3396 = vmatpush1.msra.mxu0 0.0
        %3397 = vmatprep.subr.mxu0 0.0
        %3398 = vmatpush1.msra.mxu0 0.0
        %3399 = vmatprep.subr.mxu0 0.0
        %3400 = vmatpush1.msra.mxu0 0.0
        %3401 = vmatprep.subr.mxu0 0.0
        %3402 = vmatpush1.msra.mxu0 0.0
        %3403 = vmatprep.subr.mxu0 0.0
        %3404 = vmatpush1.msra.mxu0 0.0
        %3405 = vmatprep.subr.mxu0 0.0
        %3406 = vmatpush1.msra.mxu0 0.0
        %3407 = vmatprep.subr.mxu0 0.0
        %3408 = vmatpush1.msra.mxu0 0.0
        %3409 = vmatprep.subr.mxu0 0.0
        %3410 = vmatpush1.msra.mxu0 0.0
        %3411 = vmatprep.subr.mxu0 0.0
        %3412 = vmatpush1.msra.mxu0 0.0
        %3413 = vmatprep.subr.mxu0 0.0
        %3414 = vmatpush1.msra.mxu0 0.0
        %3415 = vmatprep.subr.mxu0 0.0
        %3416 = vmatpush1.msra.mxu0 0.0
        %3417 = vmatprep.subr.mxu0 0.0
        %3418 = vmatpush1.msra.mxu0 0.0
        %3419 = vmatprep.mubr.f32.mxu0 0.0
        %3420 = vmatmul.mubr.f32.gmra.mrb[0].mxu0 %v3353
        %v3421 = vpop.f32.mrb[0].mxu0
        %v3422 = vadd.f32 0.0, %v3421
        %v3423 = vpop.f32.mrb[0].mxu0
        %v3424 = vadd.f32 0.0, %v3423
        %3425 = vdwg.mxu0
        %3426 = vmatprep.subr.mxu0 %v3349
        %3427 = vmatpush1.msra.mxu0 %v3348
        %3428 = vmatprep.subr.mxu0 0.0
        %3429 = vmatpush1.msra.mxu0 0.0
        %3430 = vmatprep.subr.mxu0 0.0
        %3431 = vmatpush1.msra.mxu0 0.0
        %3432 = vmatprep.subr.mxu0 0.0
        %3433 = vmatpush1.msra.mxu0 0.0
        %3434 = vmatprep.subr.mxu0 0.0
        %3435 = vmatpush1.msra.mxu0 0.0
        %3436 = vmatprep.subr.mxu0 0.0
        %3437 = vmatpush1.msra.mxu0 0.0
        %3438 = vmatprep.subr.mxu0 0.0
        %3439 = vmatpush1.msra.mxu0 0.0
        %3440 = vmatprep.subr.mxu0 0.0
        %3441 = vmatpush1.msra.mxu0 0.0
        %3442 = vmatprep.subr.mxu0 0.0
        %3443 = vmatpush1.msra.mxu0 0.0
        %3444 = vmatprep.subr.mxu0 0.0
        %3445 = vmatpush1.msra.mxu0 0.0
        %3446 = vmatprep.subr.mxu0 0.0
        %3447 = vmatpush1.msra.mxu0 0.0
        %3448 = vmatprep.subr.mxu0 0.0
        %3449 = vmatpush1.msra.mxu0 0.0
        %3450 = vmatprep.subr.mxu0 0.0
        %3451 = vmatpush1.msra.mxu0 0.0
        %3452 = vmatprep.subr.mxu0 0.0
        %3453 = vmatpush1.msra.mxu0 0.0
        %3454 = vmatprep.subr.mxu0 0.0
        %3455 = vmatpush1.msra.mxu0 0.0
        %3456 = vmatprep.subr.mxu0 0.0
        %3457 = vmatpush1.msra.mxu0 0.0
        %3458 = vmatprep.subr.mxu0 0.0
        %3459 = vmatpush1.msra.mxu0 0.0
        %3460 = vmatprep.subr.mxu0 0.0
        %3461 = vmatpush1.msra.mxu0 0.0
        %3462 = vmatprep.subr.mxu0 0.0
        %3463 = vmatpush1.msra.mxu0 0.0
        %3464 = vmatprep.subr.mxu0 0.0
        %3465 = vmatpush1.msra.mxu0 0.0
        %3466 = vmatprep.subr.mxu0 0.0
        %3467 = vmatpush1.msra.mxu0 0.0
        %3468 = vmatprep.subr.mxu0 0.0
        %3469 = vmatpush1.msra.mxu0 0.0
        %3470 = vmatprep.subr.mxu0 0.0
        %3471 = vmatpush1.msra.mxu0 0.0
        %3472 = vmatprep.subr.mxu0 0.0
        %3473 = vmatpush1.msra.mxu0 0.0
        %3474 = vmatprep.subr.mxu0 0.0
        %3475 = vmatpush1.msra.mxu0 0.0
        %3476 = vmatprep.subr.mxu0 0.0
        %3477 = vmatpush1.msra.mxu0 0.0
        %3478 = vmatprep.subr.mxu0 0.0
        %3479 = vmatpush1.msra.mxu0 0.0
        %3480 = vmatprep.subr.mxu0 0.0
        %3481 = vmatpush1.msra.mxu0 0.0
        %3482 = vmatprep.subr.mxu0 0.0
        %3483 = vmatpush1.msra.mxu0 0.0
        %3484 = vmatprep.subr.mxu0 0.0
        %3485 = vmatpush1.msra.mxu0 0.0
        %3486 = vmatprep.subr.mxu0 0.0
        %3487 = vmatpush1.msra.mxu0 0.0
        %3488 = vmatprep.subr.mxu0 0.0
        %3489 = vmatpush1.msra.mxu0 0.0
        %3490 = vmatprep.mubr.f32.mxu0 0.0
        %3491 = vmatmul.mubr.f32.gmra.mrb[0].mxu0 %v3353
        %v3492 = vpop.f32.mrb[0].mxu0
        %v3493 = vadd.f32 0.0, %v3492
        %v3494 = vpop.f32.mrb[0].mxu0
        %v3495 = vadd.f32 0.0, %v3494
        %3496 = vdwg.mxu0
        %v3497 = vadd.f32 %v3330, %v3422
        %v3498 = vadd.f32 %v3331, %v3424
        %v3499 = vadd.f32 %v3332, %v3493
        %v3500 = vadd.f32 %v3333, %v3495
        %v3501 = vld [vmem:[%s4] sm:$0xff]
        %3503 = vset.pattern.permute.xlu0 0
        %3504 = vperm.xlu0 %3503, %v3501
        %v3505 = vpop.permute.xlu0 %3504
        %v3507 = vadd.f32 %v3497, %v3505
        %v3508 = vadd.f32 %v3498, %v3505
        %v3509 = vadd.f32 %v3499, %v3505
        %v3510 = vadd.f32 %v3500, %v3505
        %v3511 = vmax.f32 %v3507, 0.0
        %v3512 = vmax.f32 %v3508, 0.0
        %v3513 = vmax.f32 %v3509, 0.0
        %v3514 = vmax.f32 %v3510, 0.0
        %3515 = vrot.lane.b32.xlu0 %v3511, 17
        %v3516 = vpop.permute.xlu0 %3515
        %3517 = vrot.lane.b32.xlu0 %v3512, 17
        %v3518 = vpop.permute.xlu0 %3517
        %3519 = vrot.lane.b32.xlu0 %v3513, 17
        %v3520 = vpop.permute.xlu0 %3519
        %3521 = vrot.lane.b32.xlu0 %v3514, 17
        %v3522 = vpop.permute.xlu0 %3521
        %v3523 = vsel %vm362, %v3520, %v3522
        %v3524 = vsel %vm362, %v3518, %v3520
        %v3525 = vsel %vm362, %v3516, %v3518
        %v3526 = vsel %vm362, %v3522, %v3516
        %v3527 = vmul.f32 %v3526, %v371
        %v3528 = vmul.f32 %v3525, %v375
        %v3529 = vmul.f32 %v3524, %v379
        %v3530 = vmul.f32 %v3523, %v383
        %v3531 = vld [vmem:[%s5] sm:$0xff]
        %3532 = vrot.lane.b32.xlu0 %v3511, 16
        %v3533 = vpop.permute.xlu0 %3532
        %3534 = vrot.lane.b32.xlu0 %v3512, 16
        %v3535 = vpop.permute.xlu0 %3534
        %3536 = vrot.lane.b32.xlu0 %v3513, 16
        %v3537 = vpop.permute.xlu0 %3536
        %3538 = vrot.lane.b32.xlu0 %v3514, 16
        %v3539 = vpop.permute.xlu0 %3538
        %v3540 = vsel %vm401, %v3537, %v3539
        %v3541 = vsel %vm401, %v3535, %v3537
        %v3542 = vsel %vm401, %v3533, %v3535
        %v3543 = vsel %vm401, %v3539, %v3533
        %v3544 = vmul.f32 %v3543, %v410
        %v3545 = vmul.f32 %v3542, %v414
        %v3546 = vmul.f32 %v3541, %v418
        %v3547 = vmul.f32 %v3540, %v422
        %s3548 = scalar_lea.vmem %s5, 8
        %v3549 = vld [vmem:[%s3548] sm:$0xff]
        %v3551 = vsel %vm433, %v3549, 0
        %3553 = vmatprep.subr.mxu0 %v3545
        %3554 = vmatpush1.msra.mxu0 %v3544
        %3555 = vmatprep.subr.mxu0 0.0
        %3556 = vmatpush1.msra.mxu0 0.0
        %3557 = vmatprep.subr.mxu0 0.0
        %3558 = vmatpush1.msra.mxu0 0.0
        %3559 = vmatprep.subr.mxu0 0.0
        %3560 = vmatpush1.msra.mxu0 0.0
        %3561 = vmatprep.subr.mxu0 0.0
        %3562 = vmatpush1.msra.mxu0 0.0
        %3563 = vmatprep.subr.mxu0 0.0
        %3564 = vmatpush1.msra.mxu0 0.0
        %3565 = vmatprep.subr.mxu0 0.0
        %3566 = vmatpush1.msra.mxu0 0.0
        %3567 = vmatprep.subr.mxu0 0.0
        %3568 = vmatpush1.msra.mxu0 0.0
        %3569 = vmatprep.subr.mxu0 0.0
        %3570 = vmatpush1.msra.mxu0 0.0
        %3571 = vmatprep.subr.mxu0 0.0
        %3572 = vmatpush1.msra.mxu0 0.0
        %3573 = vmatprep.subr.mxu0 0.0
        %3574 = vmatpush1.msra.mxu0 0.0
        %3575 = vmatprep.subr.mxu0 0.0
        %3576 = vmatpush1.msra.mxu0 0.0
        %3577 = vmatprep.subr.mxu0 0.0
        %3578 = vmatpush1.msra.mxu0 0.0
        %3579 = vmatprep.subr.mxu0 0.0
        %3580 = vmatpush1.msra.mxu0 0.0
        %3581 = vmatprep.subr.mxu0 0.0
        %3582 = vmatpush1.msra.mxu0 0.0
        %3583 = vmatprep.subr.mxu0 0.0
        %3584 = vmatpush1.msra.mxu0 0.0
        %3585 = vmatprep.subr.mxu0 0.0
        %3586 = vmatpush1.msra.mxu0 0.0
        %3587 = vmatprep.subr.mxu0 0.0
        %3588 = vmatpush1.msra.mxu0 0.0
        %3589 = vmatprep.subr.mxu0 0.0
        %3590 = vmatpush1.msra.mxu0 0.0
        %3591 = vmatprep.subr.mxu0 0.0
        %3592 = vmatpush1.msra.mxu0 0.0
        %3593 = vmatprep.subr.mxu0 0.0
        %3594 = vmatpush1.msra.mxu0 0.0
        %3595 = vmatprep.subr.mxu0 0.0
        %3596 = vmatpush1.msra.mxu0 0.0
        %3597 = vmatprep.subr.mxu0 0.0
        %3598 = vmatpush1.msra.mxu0 0.0
        %3599 = vmatprep.subr.mxu0 0.0
        %3600 = vmatpush1.msra.mxu0 0.0
        %3601 = vmatprep.subr.mxu0 0.0
        %3602 = vmatpush1.msra.mxu0 0.0
        %3603 = vmatprep.subr.mxu0 0.0
        %3604 = vmatpush1.msra.mxu0 0.0
        %3605 = vmatprep.subr.mxu0 0.0
        %3606 = vmatpush1.msra.mxu0 0.0
        %3607 = vmatprep.subr.mxu0 0.0
        %3608 = vmatpush1.msra.mxu0 0.0
        %3609 = vmatprep.subr.mxu0 0.0
        %3610 = vmatpush1.msra.mxu0 0.0
        %3611 = vmatprep.subr.mxu0 0.0
        %3612 = vmatpush1.msra.mxu0 0.0
        %3613 = vmatprep.subr.mxu0 0.0
        %3614 = vmatpush1.msra.mxu0 0.0
        %3615 = vmatprep.subr.mxu0 0.0
        %3616 = vmatpush1.msra.mxu0 0.0
        %3617 = vmatprep.mubr.f32.mxu0 0.0
        %3618 = vmatmul.mubr.f32.gmra.mrb[0].mxu0 %v3551
        %v3619 = vpop.f32.mrb[0].mxu0
        %v3620 = vadd.f32 0.0, %v3619
        %v3621 = vpop.f32.mrb[0].mxu0
        %v3622 = vadd.f32 0.0, %v3621
        %3623 = vdwg.mxu0
        %3624 = vmatprep.subr.mxu0 %v3547
        %3625 = vmatpush1.msra.mxu0 %v3546
        %3626 = vmatprep.subr.mxu0 0.0
        %3627 = vmatpush1.msra.mxu0 0.0
        %3628 = vmatprep.subr.mxu0 0.0
        %3629 = vmatpush1.msra.mxu0 0.0
        %3630 = vmatprep.subr.mxu0 0.0
        %3631 = vmatpush1.msra.mxu0 0.0
        %3632 = vmatprep.subr.mxu0 0.0
        %3633 = vmatpush1.msra.mxu0 0.0
        %3634 = vmatprep.subr.mxu0 0.0
        %3635 = vmatpush1.msra.mxu0 0.0
        %3636 = vmatprep.subr.mxu0 0.0
        %3637 = vmatpush1.msra.mxu0 0.0
        %3638 = vmatprep.subr.mxu0 0.0
        %3639 = vmatpush1.msra.mxu0 0.0
        %3640 = vmatprep.subr.mxu0 0.0
        %3641 = vmatpush1.msra.mxu0 0.0
        %3642 = vmatprep.subr.mxu0 0.0
        %3643 = vmatpush1.msra.mxu0 0.0
        %3644 = vmatprep.subr.mxu0 0.0
        %3645 = vmatpush1.msra.mxu0 0.0
        %3646 = vmatprep.subr.mxu0 0.0
        %3647 = vmatpush1.msra.mxu0 0.0
        %3648 = vmatprep.subr.mxu0 0.0
        %3649 = vmatpush1.msra.mxu0 0.0
        %3650 = vmatprep.subr.mxu0 0.0
        %3651 = vmatpush1.msra.mxu0 0.0
        %3652 = vmatprep.subr.mxu0 0.0
        %3653 = vmatpush1.msra.mxu0 0.0
        %3654 = vmatprep.subr.mxu0 0.0
        %3655 = vmatpush1.msra.mxu0 0.0
        %3656 = vmatprep.subr.mxu0 0.0
        %3657 = vmatpush1.msra.mxu0 0.0
        %3658 = vmatprep.subr.mxu0 0.0
        %3659 = vmatpush1.msra.mxu0 0.0
        %3660 = vmatprep.subr.mxu0 0.0
        %3661 = vmatpush1.msra.mxu0 0.0
        %3662 = vmatprep.subr.mxu0 0.0
        %3663 = vmatpush1.msra.mxu0 0.0
        %3664 = vmatprep.subr.mxu0 0.0
        %3665 = vmatpush1.msra.mxu0 0.0
        %3666 = vmatprep.subr.mxu0 0.0
        %3667 = vmatpush1.msra.mxu0 0.0
        %3668 = vmatprep.subr.mxu0 0.0
        %3669 = vmatpush1.msra.mxu0 0.0
        %3670 = vmatprep.subr.mxu0 0.0
        %3671 = vmatpush1.msra.mxu0 0.0
        %3672 = vmatprep.subr.mxu0 0.0
        %3673 = vmatpush1.msra.mxu0 0.0
        %3674 = vmatprep.subr.mxu0 0.0
        %3675 = vmatpush1.msra.mxu0 0.0
        %3676 = vmatprep.subr.mxu0 0.0
        %3677 = vmatpush1.msra.mxu0 0.0
        %3678 = vmatprep.subr.mxu0 0.0
        %3679 = vmatpush1.msra.mxu0 0.0
        %3680 = vmatprep.subr.mxu0 0.0
        %3681 = vmatpush1.msra.mxu0 0.0
        %3682 = vmatprep.subr.mxu0 0.0
        %3683 = vmatpush1.msra.mxu0 0.0
        %3684 = vmatprep.subr.mxu0 0.0
        %3685 = vmatpush1.msra.mxu0 0.0
        %3686 = vmatprep.subr.mxu0 0.0
        %3687 = vmatpush1.msra.mxu0 0.0
        %3688 = vmatprep.mubr.f32.mxu0 0.0
        %3689 = vmatmul.mubr.f32.gmra.mrb[0].mxu0 %v3551
        %v3690 = vpop.f32.mrb[0].mxu0
        %v3691 = vadd.f32 0.0, %v3690
        %v3692 = vpop.f32.mrb[0].mxu0
        %v3693 = vadd.f32 0.0, %v3692
        %3694 = vdwg.mxu0
        %v3696 = vsel %vm433, %v3531, 0
        %3698 = vmatprep.subr.mxu0 %v3528
        %3699 = vmatpush1.msra.mxu0 %v3527
        %3700 = vmatprep.subr.mxu0 0.0
        %3701 = vmatpush1.msra.mxu0 0.0
        %3702 = vmatprep.subr.mxu0 0.0
        %3703 = vmatpush1.msra.mxu0 0.0
        %3704 = vmatprep.subr.mxu0 0.0
        %3705 = vmatpush1.msra.mxu0 0.0
        %3706 = vmatprep.subr.mxu0 0.0
        %3707 = vmatpush1.msra.mxu0 0.0
        %3708 = vmatprep.subr.mxu0 0.0
        %3709 = vmatpush1.msra.mxu0 0.0
        %3710 = vmatprep.subr.mxu0 0.0
        %3711 = vmatpush1.msra.mxu0 0.0
        %3712 = vmatprep.subr.mxu0 0.0
        %3713 = vmatpush1.msra.mxu0 0.0
        %3714 = vmatprep.subr.mxu0 0.0
        %3715 = vmatpush1.msra.mxu0 0.0
        %3716 = vmatprep.subr.mxu0 0.0
        %3717 = vmatpush1.msra.mxu0 0.0
        %3718 = vmatprep.subr.mxu0 0.0
        %3719 = vmatpush1.msra.mxu0 0.0
        %3720 = vmatprep.subr.mxu0 0.0
        %3721 = vmatpush1.msra.mxu0 0.0
        %3722 = vmatprep.subr.mxu0 0.0
        %3723 = vmatpush1.msra.mxu0 0.0
        %3724 = vmatprep.subr.mxu0 0.0
        %3725 = vmatpush1.msra.mxu0 0.0
        %3726 = vmatprep.subr.mxu0 0.0
        %3727 = vmatpush1.msra.mxu0 0.0
        %3728 = vmatprep.subr.mxu0 0.0
        %3729 = vmatpush1.msra.mxu0 0.0
        %3730 = vmatprep.subr.mxu0 0.0
        %3731 = vmatpush1.msra.mxu0 0.0
        %3732 = vmatprep.subr.mxu0 0.0
        %3733 = vmatpush1.msra.mxu0 0.0
        %3734 = vmatprep.subr.mxu0 0.0
        %3735 = vmatpush1.msra.mxu0 0.0
        %3736 = vmatprep.subr.mxu0 0.0
        %3737 = vmatpush1.msra.mxu0 0.0
        %3738 = vmatprep.subr.mxu0 0.0
        %3739 = vmatpush1.msra.mxu0 0.0
        %3740 = vmatprep.subr.mxu0 0.0
        %3741 = vmatpush1.msra.mxu0 0.0
        %3742 = vmatprep.subr.mxu0 0.0
        %3743 = vmatpush1.msra.mxu0 0.0
        %3744 = vmatprep.subr.mxu0 0.0
        %3745 = vmatpush1.msra.mxu0 0.0
        %3746 = vmatprep.subr.mxu0 0.0
        %3747 = vmatpush1.msra.mxu0 0.0
        %3748 = vmatprep.subr.mxu0 0.0
        %3749 = vmatpush1.msra.mxu0 0.0
        %3750 = vmatprep.subr.mxu0 0.0
        %3751 = vmatpush1.msra.mxu0 0.0
        %3752 = vmatprep.subr.mxu0 0.0
        %3753 = vmatpush1.msra.mxu0 0.0
        %3754 = vmatprep.subr.mxu0 0.0
        %3755 = vmatpush1.msra.mxu0 0.0
        %3756 = vmatprep.subr.mxu0 0.0
        %3757 = vmatpush1.msra.mxu0 0.0
        %3758 = vmatprep.subr.mxu0 0.0
        %3759 = vmatpush1.msra.mxu0 0.0
        %3760 = vmatprep.subr.mxu0 0.0
        %3761 = vmatpush1.msra.mxu0 0.0
        %3762 = vmatprep.mubr.f32.mxu0 0.0
        %3763 = vmatmul.mubr.f32.gmra.mrb[0].mxu0 %v3696
        %v3764 = vpop.f32.mrb[0].mxu0
        %v3765 = vadd.f32 %v3620, %v3764
        %v3766 = vpop.f32.mrb[0].mxu0
        %v3767 = vadd.f32 %v3622, %v3766
        %3768 = vdwg.mxu0
        %3769 = vmatprep.subr.mxu0 %v3530
        %3770 = vmatpush1.msra.mxu0 %v3529
        %3771 = vmatprep.subr.mxu0 0.0
        %3772 = vmatpush1.msra.mxu0 0.0
        %3773 = vmatprep.subr.mxu0 0.0
        %3774 = vmatpush1.msra.mxu0 0.0
        %3775 = vmatprep.subr.mxu0 0.0
        %3776 = vmatpush1.msra.mxu0 0.0
        %3777 = vmatprep.subr.mxu0 0.0
        %3778 = vmatpush1.msra.mxu0 0.0
        %3779 = vmatprep.subr.mxu0 0.0
        %3780 = vmatpush1.msra.mxu0 0.0
        %3781 = vmatprep.subr.mxu0 0.0
        %3782 = vmatpush1.msra.mxu0 0.0
        %3783 = vmatprep.subr.mxu0 0.0
        %3784 = vmatpush1.msra.mxu0 0.0
        %3785 = vmatprep.subr.mxu0 0.0
        %3786 = vmatpush1.msra.mxu0 0.0
        %3787 = vmatprep.subr.mxu0 0.0
        %3788 = vmatpush1.msra.mxu0 0.0
        %3789 = vmatprep.subr.mxu0 0.0
        %3790 = vmatpush1.msra.mxu0 0.0
        %3791 = vmatprep.subr.mxu0 0.0
        %3792 = vmatpush1.msra.mxu0 0.0
        %3793 = vmatprep.subr.mxu0 0.0
        %3794 = vmatpush1.msra.mxu0 0.0
        %3795 = vmatprep.subr.mxu0 0.0
        %3796 = vmatpush1.msra.mxu0 0.0
        %3797 = vmatprep.subr.mxu0 0.0
        %3798 = vmatpush1.msra.mxu0 0.0
        %3799 = vmatprep.subr.mxu0 0.0
        %3800 = vmatpush1.msra.mxu0 0.0
        %3801 = vmatprep.subr.mxu0 0.0
        %3802 = vmatpush1.msra.mxu0 0.0
        %3803 = vmatprep.subr.mxu0 0.0
        %3804 = vmatpush1.msra.mxu0 0.0
        %3805 = vmatprep.subr.mxu0 0.0
        %3806 = vmatpush1.msra.mxu0 0.0
        %3807 = vmatprep.subr.mxu0 0.0
        %3808 = vmatpush1.msra.mxu0 0.0
        %3809 = vmatprep.subr.mxu0 0.0
        %3810 = vmatpush1.msra.mxu0 0.0
        %3811 = vmatprep.subr.mxu0 0.0
        %3812 = vmatpush1.msra.mxu0 0.0
        %3813 = vmatprep.subr.mxu0 0.0
        %3814 = vmatpush1.msra.mxu0 0.0
        %3815 = vmatprep.subr.mxu0 0.0
        %3816 = vmatpush1.msra.mxu0 0.0
        %3817 = vmatprep.subr.mxu0 0.0
        %3818 = vmatpush1.msra.mxu0 0.0
        %3819 = vmatprep.subr.mxu0 0.0
        %3820 = vmatpush1.msra.mxu0 0.0
        %3821 = vmatprep.subr.mxu0 0.0
        %3822 = vmatpush1.msra.mxu0 0.0
        %3823 = vmatprep.subr.mxu0 0.0
        %3824 = vmatpush1.msra.mxu0 0.0
        %3825 = vmatprep.subr.mxu0 0.0
        %3826 = vmatpush1.msra.mxu0 0.0
        %3827 = vmatprep.subr.mxu0 0.0
        %3828 = vmatpush1.msra.mxu0 0.0
        %3829 = vmatprep.subr.mxu0 0.0
        %3830 = vmatpush1.msra.mxu0 0.0
        %3831 = vmatprep.subr.mxu0 0.0
        %3832 = vmatpush1.msra.mxu0 0.0
        %3833 = vmatprep.mubr.f32.mxu0 0.0
        %3834 = vmatmul.mubr.f32.gmra.mrb[0].mxu0 %v3696
        %v3835 = vpop.f32.mrb[0].mxu0
        %v3836 = vadd.f32 %v3691, %v3835
        %v3837 = vpop.f32.mrb[0].mxu0
        %v3838 = vadd.f32 %v3693, %v3837
        %3839 = vdwg.mxu0
        %3840 = vrot.lane.b32.xlu0 %v3511, 15
        %v3841 = vpop.permute.xlu0 %3840
        %3842 = vrot.lane.b32.xlu0 %v3512, 15
        %v3843 = vpop.permute.xlu0 %3842
        %3844 = vrot.lane.b32.xlu0 %v3513, 15
        %v3845 = vpop.permute.xlu0 %3844
        %3846 = vrot.lane.b32.xlu0 %v3514, 15
        %v3847 = vpop.permute.xlu0 %3846
        %v3848 = vsel %vm732, %v3845, %v3847
        %v3849 = vsel %vm732, %v3843, %v3845
        %v3850 = vsel %vm732, %v3841, %v3843
        %v3851 = vsel %vm732, %v3847, %v3841
        %v3852 = vmul.f32 %v3851, %v741
        %v3853 = vmul.f32 %v3850, %v745
        %v3854 = vmul.f32 %v3849, %v749
        %v3855 = vmul.f32 %v3848, %v753
        %s3856 = scalar_lea.vmem %s5, 16
        %v3857 = vld [vmem:[%s3856] sm:$0xff]
        %v3859 = vsel %vm433, %v3857, 0
        %3861 = vmatprep.subr.mxu0 %v3853
        %3862 = vmatpush1.msra.mxu0 %v3852
        %3863 = vmatprep.subr.mxu0 0.0
        %3864 = vmatpush1.msra.mxu0 0.0
        %3865 = vmatprep.subr.mxu0 0.0
        %3866 = vmatpush1.msra.mxu0 0.0
        %3867 = vmatprep.subr.mxu0 0.0
        %3868 = vmatpush1.msra.mxu0 0.0
        %3869 = vmatprep.subr.mxu0 0.0
        %3870 = vmatpush1.msra.mxu0 0.0
        %3871 = vmatprep.subr.mxu0 0.0
        %3872 = vmatpush1.msra.mxu0 0.0
        %3873 = vmatprep.subr.mxu0 0.0
        %3874 = vmatpush1.msra.mxu0 0.0
        %3875 = vmatprep.subr.mxu0 0.0
        %3876 = vmatpush1.msra.mxu0 0.0
        %3877 = vmatprep.subr.mxu0 0.0
        %3878 = vmatpush1.msra.mxu0 0.0
        %3879 = vmatprep.subr.mxu0 0.0
        %3880 = vmatpush1.msra.mxu0 0.0
        %3881 = vmatprep.subr.mxu0 0.0
        %3882 = vmatpush1.msra.mxu0 0.0
        %3883 = vmatprep.subr.mxu0 0.0
        %3884 = vmatpush1.msra.mxu0 0.0
        %3885 = vmatprep.subr.mxu0 0.0
        %3886 = vmatpush1.msra.mxu0 0.0
        %3887 = vmatprep.subr.mxu0 0.0
        %3888 = vmatpush1.msra.mxu0 0.0
        %3889 = vmatprep.subr.mxu0 0.0
        %3890 = vmatpush1.msra.mxu0 0.0
        %3891 = vmatprep.subr.mxu0 0.0
        %3892 = vmatpush1.msra.mxu0 0.0
        %3893 = vmatprep.subr.mxu0 0.0
        %3894 = vmatpush1.msra.mxu0 0.0
        %3895 = vmatprep.subr.mxu0 0.0
        %3896 = vmatpush1.msra.mxu0 0.0
        %3897 = vmatprep.subr.mxu0 0.0
        %3898 = vmatpush1.msra.mxu0 0.0
        %3899 = vmatprep.subr.mxu0 0.0
        %3900 = vmatpush1.msra.mxu0 0.0
        %3901 = vmatprep.subr.mxu0 0.0
        %3902 = vmatpush1.msra.mxu0 0.0
        %3903 = vmatprep.subr.mxu0 0.0
        %3904 = vmatpush1.msra.mxu0 0.0
        %3905 = vmatprep.subr.mxu0 0.0
        %3906 = vmatpush1.msra.mxu0 0.0
        %3907 = vmatprep.subr.mxu0 0.0
        %3908 = vmatpush1.msra.mxu0 0.0
        %3909 = vmatprep.subr.mxu0 0.0
        %3910 = vmatpush1.msra.mxu0 0.0
        %3911 = vmatprep.subr.mxu0 0.0
        %3912 = vmatpush1.msra.mxu0 0.0
        %3913 = vmatprep.subr.mxu0 0.0
        %3914 = vmatpush1.msra.mxu0 0.0
        %3915 = vmatprep.subr.mxu0 0.0
        %3916 = vmatpush1.msra.mxu0 0.0
        %3917 = vmatprep.subr.mxu0 0.0
        %3918 = vmatpush1.msra.mxu0 0.0
        %3919 = vmatprep.subr.mxu0 0.0
        %3920 = vmatpush1.msra.mxu0 0.0
        %3921 = vmatprep.subr.mxu0 0.0
        %3922 = vmatpush1.msra.mxu0 0.0
        %3923 = vmatprep.subr.mxu0 0.0
        %3924 = vmatpush1.msra.mxu0 0.0
        %3925 = vmatprep.mubr.f32.mxu0 0.0
        %3926 = vmatmul.mubr.f32.gmra.mrb[0].mxu0 %v3859
        %v3927 = vpop.f32.mrb[0].mxu0
        %v3928 = vadd.f32 0.0, %v3927
        %v3929 = vpop.f32.mrb[0].mxu0
        %v3930 = vadd.f32 0.0, %v3929
        %3931 = vdwg.mxu0
        %3932 = vmatprep.subr.mxu0 %v3855
        %3933 = vmatpush1.msra.mxu0 %v3854
        %3934 = vmatprep.subr.mxu0 0.0
        %3935 = vmatpush1.msra.mxu0 0.0
        %3936 = vmatprep.subr.mxu0 0.0
        %3937 = vmatpush1.msra.mxu0 0.0
        %3938 = vmatprep.subr.mxu0 0.0
        %3939 = vmatpush1.msra.mxu0 0.0
        %3940 = vmatprep.subr.mxu0 0.0
        %3941 = vmatpush1.msra.mxu0 0.0
        %3942 = vmatprep.subr.mxu0 0.0
        %3943 = vmatpush1.msra.mxu0 0.0
        %3944 = vmatprep.subr.mxu0 0.0
        %3945 = vmatpush1.msra.mxu0 0.0
        %3946 = vmatprep.subr.mxu0 0.0
        %3947 = vmatpush1.msra.mxu0 0.0
        %3948 = vmatprep.subr.mxu0 0.0
        %3949 = vmatpush1.msra.mxu0 0.0
        %3950 = vmatprep.subr.mxu0 0.0
        %3951 = vmatpush1.msra.mxu0 0.0
        %3952 = vmatprep.subr.mxu0 0.0
        %3953 = vmatpush1.msra.mxu0 0.0
        %3954 = vmatprep.subr.mxu0 0.0
        %3955 = vmatpush1.msra.mxu0 0.0
        %3956 = vmatprep.subr.mxu0 0.0
        %3957 = vmatpush1.msra.mxu0 0.0
        %3958 = vmatprep.subr.mxu0 0.0
        %3959 = vmatpush1.msra.mxu0 0.0
        %3960 = vmatprep.subr.mxu0 0.0
        %3961 = vmatpush1.msra.mxu0 0.0
        %3962 = vmatprep.subr.mxu0 0.0
        %3963 = vmatpush1.msra.mxu0 0.0
        %3964 = vmatprep.subr.mxu0 0.0
        %3965 = vmatpush1.msra.mxu0 0.0
        %3966 = vmatprep.subr.mxu0 0.0
        %3967 = vmatpush1.msra.mxu0 0.0
        %3968 = vmatprep.subr.mxu0 0.0
        %3969 = vmatpush1.msra.mxu0 0.0
        %3970 = vmatprep.subr.mxu0 0.0
        %3971 = vmatpush1.msra.mxu0 0.0
        %3972 = vmatprep.subr.mxu0 0.0
        %3973 = vmatpush1.msra.mxu0 0.0
        %3974 = vmatprep.subr.mxu0 0.0
        %3975 = vmatpush1.msra.mxu0 0.0
        %3976 = vmatprep.subr.mxu0 0.0
        %3977 = vmatpush1.msra.mxu0 0.0
        %3978 = vmatprep.subr.mxu0 0.0
        %3979 = vmatpush1.msra.mxu0 0.0
        %3980 = vmatprep.subr.mxu0 0.0
        %3981 = vmatpush1.msra.mxu0 0.0
        %3982 = vmatprep.subr.mxu0 0.0
        %3983 = vmatpush1.msra.mxu0 0.0
        %3984 = vmatprep.subr.mxu0 0.0
        %3985 = vmatpush1.msra.mxu0 0.0
        %3986 = vmatprep.subr.mxu0 0.0
        %3987 = vmatpush1.msra.mxu0 0.0
        %3988 = vmatprep.subr.mxu0 0.0
        %3989 = vmatpush1.msra.mxu0 0.0
        %3990 = vmatprep.subr.mxu0 0.0
        %3991 = vmatpush1.msra.mxu0 0.0
        %3992 = vmatprep.subr.mxu0 0.0
        %3993 = vmatpush1.msra.mxu0 0.0
        %3994 = vmatprep.subr.mxu0 0.0
        %3995 = vmatpush1.msra.mxu0 0.0
        %3996 = vmatprep.mubr.f32.mxu0 0.0
        %3997 = vmatmul.mubr.f32.gmra.mrb[0].mxu0 %v3859
        %v3998 = vpop.f32.mrb[0].mxu0
        %v3999 = vadd.f32 0.0, %v3998
        %v4000 = vpop.f32.mrb[0].mxu0
        %v4001 = vadd.f32 0.0, %v4000
        %4002 = vdwg.mxu0
        %v4003 = vadd.f32 %v3765, %v3928
        %v4004 = vadd.f32 %v3767, %v3930
        %v4005 = vadd.f32 %v3836, %v3999
        %v4006 = vadd.f32 %v3838, %v4001
        %4007 = vrot.lane.b32.xlu0 %v3511, 1
        %v4008 = vpop.permute.xlu0 %4007
        %4009 = vrot.lane.b32.xlu0 %v3512, 1
        %v4010 = vpop.permute.xlu0 %4009
        %4011 = vrot.lane.b32.xlu0 %v3513, 1
        %v4012 = vpop.permute.xlu0 %4011
        %4013 = vrot.lane.b32.xlu0 %v3514, 1
        %v4014 = vpop.permute.xlu0 %4013
        %v4015 = vsel %vm921, %v4012, %v4014
        %v4016 = vsel %vm921, %v4010, %v4012
        %v4017 = vsel %vm921, %v4008, %v4010
        %v4018 = vsel %vm921, %v4014, %v4008
        %v4019 = vmul.f32 %v4018, %v930
        %v4020 = vmul.f32 %v4017, %v934
        %v4021 = vmul.f32 %v4016, %v938
        %v4022 = vmul.f32 %v4015, %v942
        %s4023 = scalar_lea.vmem %s5, 24
        %v4024 = vld [vmem:[%s4023] sm:$0xff]
        %v4026 = vsel %vm433, %v4024, 0
        %4028 = vmatprep.subr.mxu0 %v4020
        %4029 = vmatpush1.msra.mxu0 %v4019
        %4030 = vmatprep.subr.mxu0 0.0
        %4031 = vmatpush1.msra.mxu0 0.0
        %4032 = vmatprep.subr.mxu0 0.0
        %4033 = vmatpush1.msra.mxu0 0.0
        %4034 = vmatprep.subr.mxu0 0.0
        %4035 = vmatpush1.msra.mxu0 0.0
        %4036 = vmatprep.subr.mxu0 0.0
        %4037 = vmatpush1.msra.mxu0 0.0
        %4038 = vmatprep.subr.mxu0 0.0
        %4039 = vmatpush1.msra.mxu0 0.0
        %4040 = vmatprep.subr.mxu0 0.0
        %4041 = vmatpush1.msra.mxu0 0.0
        %4042 = vmatprep.subr.mxu0 0.0
        %4043 = vmatpush1.msra.mxu0 0.0
        %4044 = vmatprep.subr.mxu0 0.0
        %4045 = vmatpush1.msra.mxu0 0.0
        %4046 = vmatprep.subr.mxu0 0.0
        %4047 = vmatpush1.msra.mxu0 0.0
        %4048 = vmatprep.subr.mxu0 0.0
        %4049 = vmatpush1.msra.mxu0 0.0
        %4050 = vmatprep.subr.mxu0 0.0
        %4051 = vmatpush1.msra.mxu0 0.0
        %4052 = vmatprep.subr.mxu0 0.0
        %4053 = vmatpush1.msra.mxu0 0.0
        %4054 = vmatprep.subr.mxu0 0.0
        %4055 = vmatpush1.msra.mxu0 0.0
        %4056 = vmatprep.subr.mxu0 0.0
        %4057 = vmatpush1.msra.mxu0 0.0
        %4058 = vmatprep.subr.mxu0 0.0
        %4059 = vmatpush1.msra.mxu0 0.0
        %4060 = vmatprep.subr.mxu0 0.0
        %4061 = vmatpush1.msra.mxu0 0.0
        %4062 = vmatprep.subr.mxu0 0.0
        %4063 = vmatpush1.msra.mxu0 0.0
        %4064 = vmatprep.subr.mxu0 0.0
        %4065 = vmatpush1.msra.mxu0 0.0
        %4066 = vmatprep.subr.mxu0 0.0
        %4067 = vmatpush1.msra.mxu0 0.0
        %4068 = vmatprep.subr.mxu0 0.0
        %4069 = vmatpush1.msra.mxu0 0.0
        %4070 = vmatprep.subr.mxu0 0.0
        %4071 = vmatpush1.msra.mxu0 0.0
        %4072 = vmatprep.subr.mxu0 0.0
        %4073 = vmatpush1.msra.mxu0 0.0
        %4074 = vmatprep.subr.mxu0 0.0
        %4075 = vmatpush1.msra.mxu0 0.0
        %4076 = vmatprep.subr.mxu0 0.0
        %4077 = vmatpush1.msra.mxu0 0.0
        %4078 = vmatprep.subr.mxu0 0.0
        %4079 = vmatpush1.msra.mxu0 0.0
        %4080 = vmatprep.subr.mxu0 0.0
        %4081 = vmatpush1.msra.mxu0 0.0
        %4082 = vmatprep.subr.mxu0 0.0
        %4083 = vmatpush1.msra.mxu0 0.0
        %4084 = vmatprep.subr.mxu0 0.0
        %4085 = vmatpush1.msra.mxu0 0.0
        %4086 = vmatprep.subr.mxu0 0.0
        %4087 = vmatpush1.msra.mxu0 0.0
        %4088 = vmatprep.subr.mxu0 0.0
        %4089 = vmatpush1.msra.mxu0 0.0
        %4090 = vmatprep.subr.mxu0 0.0
        %4091 = vmatpush1.msra.mxu0 0.0
        %4092 = vmatprep.mubr.f32.mxu0 0.0
        %4093 = vmatmul.mubr.f32.gmra.mrb[0].mxu0 %v4026
        %v4094 = vpop.f32.mrb[0].mxu0
        %v4095 = vadd.f32 0.0, %v4094
        %v4096 = vpop.f32.mrb[0].mxu0
        %v4097 = vadd.f32 0.0, %v4096
        %4098 = vdwg.mxu0
        %4099 = vmatprep.subr.mxu0 %v4022
        %4100 = vmatpush1.msra.mxu0 %v4021
        %4101 = vmatprep.subr.mxu0 0.0
        %4102 = vmatpush1.msra.mxu0 0.0
        %4103 = vmatprep.subr.mxu0 0.0
        %4104 = vmatpush1.msra.mxu0 0.0
        %4105 = vmatprep.subr.mxu0 0.0
        %4106 = vmatpush1.msra.mxu0 0.0
        %4107 = vmatprep.subr.mxu0 0.0
        %4108 = vmatpush1.msra.mxu0 0.0
        %4109 = vmatprep.subr.mxu0 0.0
        %4110 = vmatpush1.msra.mxu0 0.0
        %4111 = vmatprep.subr.mxu0 0.0
        %4112 = vmatpush1.msra.mxu0 0.0
        %4113 = vmatprep.subr.mxu0 0.0
        %4114 = vmatpush1.msra.mxu0 0.0
        %4115 = vmatprep.subr.mxu0 0.0
        %4116 = vmatpush1.msra.mxu0 0.0
        %4117 = vmatprep.subr.mxu0 0.0
        %4118 = vmatpush1.msra.mxu0 0.0
        %4119 = vmatprep.subr.mxu0 0.0
        %4120 = vmatpush1.msra.mxu0 0.0
        %4121 = vmatprep.subr.mxu0 0.0
        %4122 = vmatpush1.msra.mxu0 0.0
        %4123 = vmatprep.subr.mxu0 0.0
        %4124 = vmatpush1.msra.mxu0 0.0
        %4125 = vmatprep.subr.mxu0 0.0
        %4126 = vmatpush1.msra.mxu0 0.0
        %4127 = vmatprep.subr.mxu0 0.0
        %4128 = vmatpush1.msra.mxu0 0.0
        %4129 = vmatprep.subr.mxu0 0.0
        %4130 = vmatpush1.msra.mxu0 0.0
        %4131 = vmatprep.subr.mxu0 0.0
        %4132 = vmatpush1.msra.mxu0 0.0
        %4133 = vmatprep.subr.mxu0 0.0
        %4134 = vmatpush1.msra.mxu0 0.0
        %4135 = vmatprep.subr.mxu0 0.0
        %4136 = vmatpush1.msra.mxu0 0.0
        %4137 = vmatprep.subr.mxu0 0.0
        %4138 = vmatpush1.msra.mxu0 0.0
        %4139 = vmatprep.subr.mxu0 0.0
        %4140 = vmatpush1.msra.mxu0 0.0
        %4141 = vmatprep.subr.mxu0 0.0
        %4142 = vmatpush1.msra.mxu0 0.0
        %4143 = vmatprep.subr.mxu0 0.0
        %4144 = vmatpush1.msra.mxu0 0.0
        %4145 = vmatprep.subr.mxu0 0.0
        %4146 = vmatpush1.msra.mxu0 0.0
        %4147 = vmatprep.subr.mxu0 0.0
        %4148 = vmatpush1.msra.mxu0 0.0
        %4149 = vmatprep.subr.mxu0 0.0
        %4150 = vmatpush1.msra.mxu0 0.0
        %4151 = vmatprep.subr.mxu0 0.0
        %4152 = vmatpush1.msra.mxu0 0.0
        %4153 = vmatprep.subr.mxu0 0.0
        %4154 = vmatpush1.msra.mxu0 0.0
        %4155 = vmatprep.subr.mxu0 0.0
        %4156 = vmatpush1.msra.mxu0 0.0
        %4157 = vmatprep.subr.mxu0 0.0
        %4158 = vmatpush1.msra.mxu0 0.0
        %4159 = vmatprep.subr.mxu0 0.0
        %4160 = vmatpush1.msra.mxu0 0.0
        %4161 = vmatprep.subr.mxu0 0.0
        %4162 = vmatpush1.msra.mxu0 0.0
        %4163 = vmatprep.mubr.f32.mxu0 0.0
        %4164 = vmatmul.mubr.f32.gmra.mrb[0].mxu0 %v4026
        %v4165 = vpop.f32.mrb[0].mxu0
        %v4166 = vadd.f32 0.0, %v4165
        %v4167 = vpop.f32.mrb[0].mxu0
        %v4168 = vadd.f32 0.0, %v4167
        %4169 = vdwg.mxu0
        %v4170 = vadd.f32 %v4003, %v4095
        %v4171 = vadd.f32 %v4004, %v4097
        %v4172 = vadd.f32 %v4005, %v4166
        %v4173 = vadd.f32 %v4006, %v4168
        %s4174 = scalar_lea.vmem %s5, 32
        %v4175 = vld [vmem:[%s4174] sm:$0xff]
        %v4177 = vsel %vm433, %v4175, 0
        %4179 = vmatprep.subr.mxu0 %v3512
        %4180 = vmatpush1.msra.mxu0 %v3511
        %4181 = vmatprep.subr.mxu0 0.0
        %4182 = vmatpush1.msra.mxu0 0.0
        %4183 = vmatprep.subr.mxu0 0.0
        %4184 = vmatpush1.msra.mxu0 0.0
        %4185 = vmatprep.subr.mxu0 0.0
        %4186 = vmatpush1.msra.mxu0 0.0
        %4187 = vmatprep.subr.mxu0 0.0
        %4188 = vmatpush1.msra.mxu0 0.0
        %4189 = vmatprep.subr.mxu0 0.0
        %4190 = vmatpush1.msra.mxu0 0.0
        %4191 = vmatprep.subr.mxu0 0.0
        %4192 = vmatpush1.msra.mxu0 0.0
        %4193 = vmatprep.subr.mxu0 0.0
        %4194 = vmatpush1.msra.mxu0 0.0
        %4195 = vmatprep.subr.mxu0 0.0
        %4196 = vmatpush1.msra.mxu0 0.0
        %4197 = vmatprep.subr.mxu0 0.0
        %4198 = vmatpush1.msra.mxu0 0.0
        %4199 = vmatprep.subr.mxu0 0.0
        %4200 = vmatpush1.msra.mxu0 0.0
        %4201 = vmatprep.subr.mxu0 0.0
        %4202 = vmatpush1.msra.mxu0 0.0
        %4203 = vmatprep.subr.mxu0 0.0
        %4204 = vmatpush1.msra.mxu0 0.0
        %4205 = vmatprep.subr.mxu0 0.0
        %4206 = vmatpush1.msra.mxu0 0.0
        %4207 = vmatprep.subr.mxu0 0.0
        %4208 = vmatpush1.msra.mxu0 0.0
        %4209 = vmatprep.subr.mxu0 0.0
        %4210 = vmatpush1.msra.mxu0 0.0
        %4211 = vmatprep.subr.mxu0 0.0
        %4212 = vmatpush1.msra.mxu0 0.0
        %4213 = vmatprep.subr.mxu0 0.0
        %4214 = vmatpush1.msra.mxu0 0.0
        %4215 = vmatprep.subr.mxu0 0.0
        %4216 = vmatpush1.msra.mxu0 0.0
        %4217 = vmatprep.subr.mxu0 0.0
        %4218 = vmatpush1.msra.mxu0 0.0
        %4219 = vmatprep.subr.mxu0 0.0
        %4220 = vmatpush1.msra.mxu0 0.0
        %4221 = vmatprep.subr.mxu0 0.0
        %4222 = vmatpush1.msra.mxu0 0.0
        %4223 = vmatprep.subr.mxu0 0.0
        %4224 = vmatpush1.msra.mxu0 0.0
        %4225 = vmatprep.subr.mxu0 0.0
        %4226 = vmatpush1.msra.mxu0 0.0
        %4227 = vmatprep.subr.mxu0 0.0
        %4228 = vmatpush1.msra.mxu0 0.0
        %4229 = vmatprep.subr.mxu0 0.0
        %4230 = vmatpush1.msra.mxu0 0.0
        %4231 = vmatprep.subr.mxu0 0.0
        %4232 = vmatpush1.msra.mxu0 0.0
        %4233 = vmatprep.subr.mxu0 0.0
        %4234 = vmatpush1.msra.mxu0 0.0
        %4235 = vmatprep.subr.mxu0 0.0
        %4236 = vmatpush1.msra.mxu0 0.0
        %4237 = vmatprep.subr.mxu0 0.0
        %4238 = vmatpush1.msra.mxu0 0.0
        %4239 = vmatprep.subr.mxu0 0.0
        %4240 = vmatpush1.msra.mxu0 0.0
        %4241 = vmatprep.subr.mxu0 0.0
        %4242 = vmatpush1.msra.mxu0 0.0
        %4243 = vmatprep.mubr.f32.mxu0 0.0
        %4244 = vmatmul.mubr.f32.gmra.mrb[0].mxu0 %v4177
        %v4245 = vpop.f32.mrb[0].mxu0
        %v4246 = vadd.f32 0.0, %v4245
        %v4247 = vpop.f32.mrb[0].mxu0
        %v4248 = vadd.f32 0.0, %v4247
        %4249 = vdwg.mxu0
        %4250 = vmatprep.subr.mxu0 %v3514
        %4251 = vmatpush1.msra.mxu0 %v3513
        %4252 = vmatprep.subr.mxu0 0.0
        %4253 = vmatpush1.msra.mxu0 0.0
        %4254 = vmatprep.subr.mxu0 0.0
        %4255 = vmatpush1.msra.mxu0 0.0
        %4256 = vmatprep.subr.mxu0 0.0
        %4257 = vmatpush1.msra.mxu0 0.0
        %4258 = vmatprep.subr.mxu0 0.0
        %4259 = vmatpush1.msra.mxu0 0.0
        %4260 = vmatprep.subr.mxu0 0.0
        %4261 = vmatpush1.msra.mxu0 0.0
        %4262 = vmatprep.subr.mxu0 0.0
        %4263 = vmatpush1.msra.mxu0 0.0
        %4264 = vmatprep.subr.mxu0 0.0
        %4265 = vmatpush1.msra.mxu0 0.0
        %4266 = vmatprep.subr.mxu0 0.0
        %4267 = vmatpush1.msra.mxu0 0.0
        %4268 = vmatprep.subr.mxu0 0.0
        %4269 = vmatpush1.msra.mxu0 0.0
        %4270 = vmatprep.subr.mxu0 0.0
        %4271 = vmatpush1.msra.mxu0 0.0
        %4272 = vmatprep.subr.mxu0 0.0
        %4273 = vmatpush1.msra.mxu0 0.0
        %4274 = vmatprep.subr.mxu0 0.0
        %4275 = vmatpush1.msra.mxu0 0.0
        %4276 = vmatprep.subr.mxu0 0.0
        %4277 = vmatpush1.msra.mxu0 0.0
        %4278 = vmatprep.subr.mxu0 0.0
        %4279 = vmatpush1.msra.mxu0 0.0
        %4280 = vmatprep.subr.mxu0 0.0
        %4281 = vmatpush1.msra.mxu0 0.0
        %4282 = vmatprep.subr.mxu0 0.0
        %4283 = vmatpush1.msra.mxu0 0.0
        %4284 = vmatprep.subr.mxu0 0.0
        %4285 = vmatpush1.msra.mxu0 0.0
        %4286 = vmatprep.subr.mxu0 0.0
        %4287 = vmatpush1.msra.mxu0 0.0
        %4288 = vmatprep.subr.mxu0 0.0
        %4289 = vmatpush1.msra.mxu0 0.0
        %4290 = vmatprep.subr.mxu0 0.0
        %4291 = vmatpush1.msra.mxu0 0.0
        %4292 = vmatprep.subr.mxu0 0.0
        %4293 = vmatpush1.msra.mxu0 0.0
        %4294 = vmatprep.subr.mxu0 0.0
        %4295 = vmatpush1.msra.mxu0 0.0
        %4296 = vmatprep.subr.mxu0 0.0
        %4297 = vmatpush1.msra.mxu0 0.0
        %4298 = vmatprep.subr.mxu0 0.0
        %4299 = vmatpush1.msra.mxu0 0.0
        %4300 = vmatprep.subr.mxu0 0.0
        %4301 = vmatpush1.msra.mxu0 0.0
        %4302 = vmatprep.subr.mxu0 0.0
        %4303 = vmatpush1.msra.mxu0 0.0
        %4304 = vmatprep.subr.mxu0 0.0
        %4305 = vmatpush1.msra.mxu0 0.0
        %4306 = vmatprep.subr.mxu0 0.0
        %4307 = vmatpush1.msra.mxu0 0.0
        %4308 = vmatprep.subr.mxu0 0.0
        %4309 = vmatpush1.msra.mxu0 0.0
        %4310 = vmatprep.subr.mxu0 0.0
        %4311 = vmatpush1.msra.mxu0 0.0
        %4312 = vmatprep.subr.mxu0 0.0
        %4313 = vmatpush1.msra.mxu0 0.0
        %4314 = vmatprep.mubr.f32.mxu0 0.0
        %4315 = vmatmul.mubr.f32.gmra.mrb[0].mxu0 %v4177
        %v4316 = vpop.f32.mrb[0].mxu0
        %v4317 = vadd.f32 0.0, %v4316
        %v4318 = vpop.f32.mrb[0].mxu0
        %v4319 = vadd.f32 0.0, %v4318
        %4320 = vdwg.mxu0
        %v4321 = vadd.f32 %v4170, %v4246
        %v4322 = vadd.f32 %v4171, %v4248
        %v4323 = vadd.f32 %v4172, %v4317
        %v4324 = vadd.f32 %v4173, %v4319
        %4325 = vrot.lane.b32.xlu0 %v3511, 127
        %v4326 = vpop.permute.xlu0 %4325
        %4327 = vrot.lane.b32.xlu0 %v3512, 127
        %v4328 = vpop.permute.xlu0 %4327
        %4329 = vrot.lane.b32.xlu0 %v3513, 127
        %v4330 = vpop.permute.xlu0 %4329
        %4331 = vrot.lane.b32.xlu0 %v3514, 127
        %v4332 = vpop.permute.xlu0 %4331
        %v4333 = vsel %vm1261, %v4330, %v4332
        %v4334 = vsel %vm1261, %v4328, %v4330
        %v4335 = vsel %vm1261, %v4326, %v4328
        %v4336 = vsel %vm1261, %v4332, %v4326
        %v4337 = vmul.f32 %v4335, %v1270
        %v4338 = vmul.f32 %v4334, %v1274
        %v4339 = vmul.f32 %v4333, %v1278
        %v4340 = vmul.f32 %v4336, %v1282
        %s4341 = scalar_lea.vmem %s5, 40
        %v4342 = vld [vmem:[%s4341] sm:$0xff]
        %v4344 = vsel %vm433, %v4342, 0
        %4346 = vmatprep.subr.mxu0 %v4338
        %4347 = vmatpush1.msra.mxu0 %v4337
        %4348 = vmatprep.subr.mxu0 0.0
        %4349 = vmatpush1.msra.mxu0 0.0
        %4350 = vmatprep.subr.mxu0 0.0
        %4351 = vmatpush1.msra.mxu0 0.0
        %4352 = vmatprep.subr.mxu0 0.0
        %4353 = vmatpush1.msra.mxu0 0.0
        %4354 = vmatprep.subr.mxu0 0.0
        %4355 = vmatpush1.msra.mxu0 0.0
        %4356 = vmatprep.subr.mxu0 0.0
        %4357 = vmatpush1.msra.mxu0 0.0
        %4358 = vmatprep.subr.mxu0 0.0
        %4359 = vmatpush1.msra.mxu0 0.0
        %4360 = vmatprep.subr.mxu0 0.0
        %4361 = vmatpush1.msra.mxu0 0.0
        %4362 = vmatprep.subr.mxu0 0.0
        %4363 = vmatpush1.msra.mxu0 0.0
        %4364 = vmatprep.subr.mxu0 0.0
        %4365 = vmatpush1.msra.mxu0 0.0
        %4366 = vmatprep.subr.mxu0 0.0
        %4367 = vmatpush1.msra.mxu0 0.0
        %4368 = vmatprep.subr.mxu0 0.0
        %4369 = vmatpush1.msra.mxu0 0.0
        %4370 = vmatprep.subr.mxu0 0.0
        %4371 = vmatpush1.msra.mxu0 0.0
        %4372 = vmatprep.subr.mxu0 0.0
        %4373 = vmatpush1.msra.mxu0 0.0
        %4374 = vmatprep.subr.mxu0 0.0
        %4375 = vmatpush1.msra.mxu0 0.0
        %4376 = vmatprep.subr.mxu0 0.0
        %4377 = vmatpush1.msra.mxu0 0.0
        %4378 = vmatprep.subr.mxu0 0.0
        %4379 = vmatpush1.msra.mxu0 0.0
        %4380 = vmatprep.subr.mxu0 0.0
        %4381 = vmatpush1.msra.mxu0 0.0
        %4382 = vmatprep.subr.mxu0 0.0
        %4383 = vmatpush1.msra.mxu0 0.0
        %4384 = vmatprep.subr.mxu0 0.0
        %4385 = vmatpush1.msra.mxu0 0.0
        %4386 = vmatprep.subr.mxu0 0.0
        %4387 = vmatpush1.msra.mxu0 0.0
        %4388 = vmatprep.subr.mxu0 0.0
        %4389 = vmatpush1.msra.mxu0 0.0
        %4390 = vmatprep.subr.mxu0 0.0
        %4391 = vmatpush1.msra.mxu0 0.0
        %4392 = vmatprep.subr.mxu0 0.0
        %4393 = vmatpush1.msra.mxu0 0.0
        %4394 = vmatprep.subr.mxu0 0.0
        %4395 = vmatpush1.msra.mxu0 0.0
        %4396 = vmatprep.subr.mxu0 0.0
        %4397 = vmatpush1.msra.mxu0 0.0
        %4398 = vmatprep.subr.mxu0 0.0
        %4399 = vmatpush1.msra.mxu0 0.0
        %4400 = vmatprep.subr.mxu0 0.0
        %4401 = vmatpush1.msra.mxu0 0.0
        %4402 = vmatprep.subr.mxu0 0.0
        %4403 = vmatpush1.msra.mxu0 0.0
        %4404 = vmatprep.subr.mxu0 0.0
        %4405 = vmatpush1.msra.mxu0 0.0
        %4406 = vmatprep.subr.mxu0 0.0
        %4407 = vmatpush1.msra.mxu0 0.0
        %4408 = vmatprep.subr.mxu0 0.0
        %4409 = vmatpush1.msra.mxu0 0.0
        %4410 = vmatprep.mubr.f32.mxu0 0.0
        %4411 = vmatmul.mubr.f32.gmra.mrb[0].mxu0 %v4344
        %v4412 = vpop.f32.mrb[0].mxu0
        %v4413 = vadd.f32 0.0, %v4412
        %v4414 = vpop.f32.mrb[0].mxu0
        %v4415 = vadd.f32 0.0, %v4414
        %4416 = vdwg.mxu0
        %4417 = vmatprep.subr.mxu0 %v4340
        %4418 = vmatpush1.msra.mxu0 %v4339
        %4419 = vmatprep.subr.mxu0 0.0
        %4420 = vmatpush1.msra.mxu0 0.0
        %4421 = vmatprep.subr.mxu0 0.0
        %4422 = vmatpush1.msra.mxu0 0.0
        %4423 = vmatprep.subr.mxu0 0.0
        %4424 = vmatpush1.msra.mxu0 0.0
        %4425 = vmatprep.subr.mxu0 0.0
        %4426 = vmatpush1.msra.mxu0 0.0
        %4427 = vmatprep.subr.mxu0 0.0
        %4428 = vmatpush1.msra.mxu0 0.0
        %4429 = vmatprep.subr.mxu0 0.0
        %4430 = vmatpush1.msra.mxu0 0.0
        %4431 = vmatprep.subr.mxu0 0.0
        %4432 = vmatpush1.msra.mxu0 0.0
        %4433 = vmatprep.subr.mxu0 0.0
        %4434 = vmatpush1.msra.mxu0 0.0
        %4435 = vmatprep.subr.mxu0 0.0
        %4436 = vmatpush1.msra.mxu0 0.0
        %4437 = vmatprep.subr.mxu0 0.0
        %4438 = vmatpush1.msra.mxu0 0.0
        %4439 = vmatprep.subr.mxu0 0.0
        %4440 = vmatpush1.msra.mxu0 0.0
        %4441 = vmatprep.subr.mxu0 0.0
        %4442 = vmatpush1.msra.mxu0 0.0
        %4443 = vmatprep.subr.mxu0 0.0
        %4444 = vmatpush1.msra.mxu0 0.0
        %4445 = vmatprep.subr.mxu0 0.0
        %4446 = vmatpush1.msra.mxu0 0.0
        %4447 = vmatprep.subr.mxu0 0.0
        %4448 = vmatpush1.msra.mxu0 0.0
        %4449 = vmatprep.subr.mxu0 0.0
        %4450 = vmatpush1.msra.mxu0 0.0
        %4451 = vmatprep.subr.mxu0 0.0
        %4452 = vmatpush1.msra.mxu0 0.0
        %4453 = vmatprep.subr.mxu0 0.0
        %4454 = vmatpush1.msra.mxu0 0.0
        %4455 = vmatprep.subr.mxu0 0.0
        %4456 = vmatpush1.msra.mxu0 0.0
        %4457 = vmatprep.subr.mxu0 0.0
        %4458 = vmatpush1.msra.mxu0 0.0
        %4459 = vmatprep.subr.mxu0 0.0
        %4460 = vmatpush1.msra.mxu0 0.0
        %4461 = vmatprep.subr.mxu0 0.0
        %4462 = vmatpush1.msra.mxu0 0.0
        %4463 = vmatprep.subr.mxu0 0.0
        %4464 = vmatpush1.msra.mxu0 0.0
        %4465 = vmatprep.subr.mxu0 0.0
        %4466 = vmatpush1.msra.mxu0 0.0
        %4467 = vmatprep.subr.mxu0 0.0
        %4468 = vmatpush1.msra.mxu0 0.0
        %4469 = vmatprep.subr.mxu0 0.0
        %4470 = vmatpush1.msra.mxu0 0.0
        %4471 = vmatprep.subr.mxu0 0.0
        %4472 = vmatpush1.msra.mxu0 0.0
        %4473 = vmatprep.subr.mxu0 0.0
        %4474 = vmatpush1.msra.mxu0 0.0
        %4475 = vmatprep.subr.mxu0 0.0
        %4476 = vmatpush1.msra.mxu0 0.0
        %4477 = vmatprep.subr.mxu0 0.0
        %4478 = vmatpush1.msra.mxu0 0.0
        %4479 = vmatprep.subr.mxu0 0.0
        %4480 = vmatpush1.msra.mxu0 0.0
        %4481 = vmatprep.mubr.f32.mxu0 0.0
        %4482 = vmatmul.mubr.f32.gmra.mrb[0].mxu0 %v4344
        %v4483 = vpop.f32.mrb[0].mxu0
        %v4484 = vadd.f32 0.0, %v4483
        %v4485 = vpop.f32.mrb[0].mxu0
        %v4486 = vadd.f32 0.0, %v4485
        %4487 = vdwg.mxu0
        %v4488 = vadd.f32 %v4321, %v4413
        %v4489 = vadd.f32 %v4322, %v4415
        %v4490 = vadd.f32 %v4323, %v4484
        %v4491 = vadd.f32 %v4324, %v4486
        %4492 = vrot.lane.b32.xlu0 %v3511, 113
        %v4493 = vpop.permute.xlu0 %4492
        %4494 = vrot.lane.b32.xlu0 %v3512, 113
        %v4495 = vpop.permute.xlu0 %4494
        %4496 = vrot.lane.b32.xlu0 %v3513, 113
        %v4497 = vpop.permute.xlu0 %4496
        %4498 = vrot.lane.b32.xlu0 %v3514, 113
        %v4499 = vpop.permute.xlu0 %4498
        %v4500 = vsel %vm1450, %v4497, %v4499
        %v4501 = vsel %vm1450, %v4495, %v4497
        %v4502 = vsel %vm1450, %v4493, %v4495
        %v4503 = vsel %vm1450, %v4499, %v4493
        %v4504 = vmul.f32 %v4502, %v1459
        %v4505 = vmul.f32 %v4501, %v1463
        %v4506 = vmul.f32 %v4500, %v1467
        %v4507 = vmul.f32 %v4503, %v1471
        %s4508 = scalar_lea.vmem %s5, 48
        %v4509 = vld [vmem:[%s4508] sm:$0xff]
        %v4511 = vsel %vm433, %v4509, 0
        %4513 = vmatprep.subr.mxu0 %v4505
        %4514 = vmatpush1.msra.mxu0 %v4504
        %4515 = vmatprep.subr.mxu0 0.0
        %4516 = vmatpush1.msra.mxu0 0.0
        %4517 = vmatprep.subr.mxu0 0.0
        %4518 = vmatpush1.msra.mxu0 0.0
        %4519 = vmatprep.subr.mxu0 0.0
        %4520 = vmatpush1.msra.mxu0 0.0
        %4521 = vmatprep.subr.mxu0 0.0
        %4522 = vmatpush1.msra.mxu0 0.0
        %4523 = vmatprep.subr.mxu0 0.0
        %4524 = vmatpush1.msra.mxu0 0.0
        %4525 = vmatprep.subr.mxu0 0.0
        %4526 = vmatpush1.msra.mxu0 0.0
        %4527 = vmatprep.subr.mxu0 0.0
        %4528 = vmatpush1.msra.mxu0 0.0
        %4529 = vmatprep.subr.mxu0 0.0
        %4530 = vmatpush1.msra.mxu0 0.0
        %4531 = vmatprep.subr.mxu0 0.0
        %4532 = vmatpush1.msra.mxu0 0.0
        %4533 = vmatprep.subr.mxu0 0.0
        %4534 = vmatpush1.msra.mxu0 0.0
        %4535 = vmatprep.subr.mxu0 0.0
        %4536 = vmatpush1.msra.mxu0 0.0
        %4537 = vmatprep.subr.mxu0 0.0
        %4538 = vmatpush1.msra.mxu0 0.0
        %4539 = vmatprep.subr.mxu0 0.0
        %4540 = vmatpush1.msra.mxu0 0.0
        %4541 = vmatprep.subr.mxu0 0.0
        %4542 = vmatpush1.msra.mxu0 0.0
        %4543 = vmatprep.subr.mxu0 0.0
        %4544 = vmatpush1.msra.mxu0 0.0
        %4545 = vmatprep.subr.mxu0 0.0
        %4546 = vmatpush1.msra.mxu0 0.0
        %4547 = vmatprep.subr.mxu0 0.0
        %4548 = vmatpush1.msra.mxu0 0.0
        %4549 = vmatprep.subr.mxu0 0.0
        %4550 = vmatpush1.msra.mxu0 0.0
        %4551 = vmatprep.subr.mxu0 0.0
        %4552 = vmatpush1.msra.mxu0 0.0
        %4553 = vmatprep.subr.mxu0 0.0
        %4554 = vmatpush1.msra.mxu0 0.0
        %4555 = vmatprep.subr.mxu0 0.0
        %4556 = vmatpush1.msra.mxu0 0.0
        %4557 = vmatprep.subr.mxu0 0.0
        %4558 = vmatpush1.msra.mxu0 0.0
        %4559 = vmatprep.subr.mxu0 0.0
        %4560 = vmatpush1.msra.mxu0 0.0
        %4561 = vmatprep.subr.mxu0 0.0
        %4562 = vmatpush1.msra.mxu0 0.0
        %4563 = vmatprep.subr.mxu0 0.0
        %4564 = vmatpush1.msra.mxu0 0.0
        %4565 = vmatprep.subr.mxu0 0.0
        %4566 = vmatpush1.msra.mxu0 0.0
        %4567 = vmatprep.subr.mxu0 0.0
        %4568 = vmatpush1.msra.mxu0 0.0
        %4569 = vmatprep.subr.mxu0 0.0
        %4570 = vmatpush1.msra.mxu0 0.0
        %4571 = vmatprep.subr.mxu0 0.0
        %4572 = vmatpush1.msra.mxu0 0.0
        %4573 = vmatprep.subr.mxu0 0.0
        %4574 = vmatpush1.msra.mxu0 0.0
        %4575 = vmatprep.subr.mxu0 0.0
        %4576 = vmatpush1.msra.mxu0 0.0
        %4577 = vmatprep.mubr.f32.mxu0 0.0
        %4578 = vmatmul.mubr.f32.gmra.mrb[0].mxu0 %v4511
        %v4579 = vpop.f32.mrb[0].mxu0
        %v4580 = vadd.f32 0.0, %v4579
        %v4581 = vpop.f32.mrb[0].mxu0
        %v4582 = vadd.f32 0.0, %v4581
        %4583 = vdwg.mxu0
        %4584 = vmatprep.subr.mxu0 %v4507
        %4585 = vmatpush1.msra.mxu0 %v4506
        %4586 = vmatprep.subr.mxu0 0.0
        %4587 = vmatpush1.msra.mxu0 0.0
        %4588 = vmatprep.subr.mxu0 0.0
        %4589 = vmatpush1.msra.mxu0 0.0
        %4590 = vmatprep.subr.mxu0 0.0
        %4591 = vmatpush1.msra.mxu0 0.0
        %4592 = vmatprep.subr.mxu0 0.0
        %4593 = vmatpush1.msra.mxu0 0.0
        %4594 = vmatprep.subr.mxu0 0.0
        %4595 = vmatpush1.msra.mxu0 0.0
        %4596 = vmatprep.subr.mxu0 0.0
        %4597 = vmatpush1.msra.mxu0 0.0
        %4598 = vmatprep.subr.mxu0 0.0
        %4599 = vmatpush1.msra.mxu0 0.0
        %4600 = vmatprep.subr.mxu0 0.0
        %4601 = vmatpush1.msra.mxu0 0.0
        %4602 = vmatprep.subr.mxu0 0.0
        %4603 = vmatpush1.msra.mxu0 0.0
        %4604 = vmatprep.subr.mxu0 0.0
        %4605 = vmatpush1.msra.mxu0 0.0
        %4606 = vmatprep.subr.mxu0 0.0
        %4607 = vmatpush1.msra.mxu0 0.0
        %4608 = vmatprep.subr.mxu0 0.0
        %4609 = vmatpush1.msra.mxu0 0.0
        %4610 = vmatprep.subr.mxu0 0.0
        %4611 = vmatpush1.msra.mxu0 0.0
        %4612 = vmatprep.subr.mxu0 0.0
        %4613 = vmatpush1.msra.mxu0 0.0
        %4614 = vmatprep.subr.mxu0 0.0
        %4615 = vmatpush1.msra.mxu0 0.0
        %4616 = vmatprep.subr.mxu0 0.0
        %4617 = vmatpush1.msra.mxu0 0.0
        %4618 = vmatprep.subr.mxu0 0.0
        %4619 = vmatpush1.msra.mxu0 0.0
        %4620 = vmatprep.subr.mxu0 0.0
        %4621 = vmatpush1.msra.mxu0 0.0
        %4622 = vmatprep.subr.mxu0 0.0
        %4623 = vmatpush1.msra.mxu0 0.0
        %4624 = vmatprep.subr.mxu0 0.0
        %4625 = vmatpush1.msra.mxu0 0.0
        %4626 = vmatprep.subr.mxu0 0.0
        %4627 = vmatpush1.msra.mxu0 0.0
        %4628 = vmatprep.subr.mxu0 0.0
        %4629 = vmatpush1.msra.mxu0 0.0
        %4630 = vmatprep.subr.mxu0 0.0
        %4631 = vmatpush1.msra.mxu0 0.0
        %4632 = vmatprep.subr.mxu0 0.0
        %4633 = vmatpush1.msra.mxu0 0.0
        %4634 = vmatprep.subr.mxu0 0.0
        %4635 = vmatpush1.msra.mxu0 0.0
        %4636 = vmatprep.subr.mxu0 0.0
        %4637 = vmatpush1.msra.mxu0 0.0
        %4638 = vmatprep.subr.mxu0 0.0
        %4639 = vmatpush1.msra.mxu0 0.0
        %4640 = vmatprep.subr.mxu0 0.0
        %4641 = vmatpush1.msra.mxu0 0.0
        %4642 = vmatprep.subr.mxu0 0.0
        %4643 = vmatpush1.msra.mxu0 0.0
        %4644 = vmatprep.subr.mxu0 0.0
        %4645 = vmatpush1.msra.mxu0 0.0
        %4646 = vmatprep.subr.mxu0 0.0
        %4647 = vmatpush1.msra.mxu0 0.0
        %4648 = vmatprep.mubr.f32.mxu0 0.0
        %4649 = vmatmul.mubr.f32.gmra.mrb[0].mxu0 %v4511
        %v4650 = vpop.f32.mrb[0].mxu0
        %v4651 = vadd.f32 0.0, %v4650
        %v4652 = vpop.f32.mrb[0].mxu0
        %v4653 = vadd.f32 0.0, %v4652
        %4654 = vdwg.mxu0
        %v4655 = vadd.f32 %v4488, %v4580
        %v4656 = vadd.f32 %v4489, %v4582
        %v4657 = vadd.f32 %v4490, %v4651
        %v4658 = vadd.f32 %v4491, %v4653
        %4659 = vrot.lane.b32.xlu0 %v3511, 112
        %v4660 = vpop.permute.xlu0 %4659
        %4661 = vrot.lane.b32.xlu0 %v3512, 112
        %v4662 = vpop.permute.xlu0 %4661
        %4663 = vrot.lane.b32.xlu0 %v3513, 112
        %v4664 = vpop.permute.xlu0 %4663
        %4665 = vrot.lane.b32.xlu0 %v3514, 112
        %v4666 = vpop.permute.xlu0 %4665
        %v4667 = vsel %vm1639, %v4664, %v4666
        %v4668 = vsel %vm1639, %v4662, %v4664
        %v4669 = vsel %vm1639, %v4660, %v4662
        %v4670 = vsel %vm1639, %v4666, %v4660
        %v4671 = vmul.f32 %v4669, %v1648
        %v4672 = vmul.f32 %v4668, %v1652
        %v4673 = vmul.f32 %v4667, %v1656
        %v4674 = vmul.f32 %v4670, %v1660
        %s4675 = scalar_lea.vmem %s5, 56
        %v4676 = vld [vmem:[%s4675] sm:$0xff]
        %v4678 = vsel %vm433, %v4676, 0
        %4680 = vmatprep.subr.mxu0 %v4672
        %4681 = vmatpush1.msra.mxu0 %v4671
        %4682 = vmatprep.subr.mxu0 0.0
        %4683 = vmatpush1.msra.mxu0 0.0
        %4684 = vmatprep.subr.mxu0 0.0
        %4685 = vmatpush1.msra.mxu0 0.0
        %4686 = vmatprep.subr.mxu0 0.0
        %4687 = vmatpush1.msra.mxu0 0.0
        %4688 = vmatprep.subr.mxu0 0.0
        %4689 = vmatpush1.msra.mxu0 0.0
        %4690 = vmatprep.subr.mxu0 0.0
        %4691 = vmatpush1.msra.mxu0 0.0
        %4692 = vmatprep.subr.mxu0 0.0
        %4693 = vmatpush1.msra.mxu0 0.0
        %4694 = vmatprep.subr.mxu0 0.0
        %4695 = vmatpush1.msra.mxu0 0.0
        %4696 = vmatprep.subr.mxu0 0.0
        %4697 = vmatpush1.msra.mxu0 0.0
        %4698 = vmatprep.subr.mxu0 0.0
        %4699 = vmatpush1.msra.mxu0 0.0
        %4700 = vmatprep.subr.mxu0 0.0
        %4701 = vmatpush1.msra.mxu0 0.0
        %4702 = vmatprep.subr.mxu0 0.0
        %4703 = vmatpush1.msra.mxu0 0.0
        %4704 = vmatprep.subr.mxu0 0.0
        %4705 = vmatpush1.msra.mxu0 0.0
        %4706 = vmatprep.subr.mxu0 0.0
        %4707 = vmatpush1.msra.mxu0 0.0
        %4708 = vmatprep.subr.mxu0 0.0
        %4709 = vmatpush1.msra.mxu0 0.0
        %4710 = vmatprep.subr.mxu0 0.0
        %4711 = vmatpush1.msra.mxu0 0.0
        %4712 = vmatprep.subr.mxu0 0.0
        %4713 = vmatpush1.msra.mxu0 0.0
        %4714 = vmatprep.subr.mxu0 0.0
        %4715 = vmatpush1.msra.mxu0 0.0
        %4716 = vmatprep.subr.mxu0 0.0
        %4717 = vmatpush1.msra.mxu0 0.0
        %4718 = vmatprep.subr.mxu0 0.0
        %4719 = vmatpush1.msra.mxu0 0.0
        %4720 = vmatprep.subr.mxu0 0.0
        %4721 = vmatpush1.msra.mxu0 0.0
        %4722 = vmatprep.subr.mxu0 0.0
        %4723 = vmatpush1.msra.mxu0 0.0
        %4724 = vmatprep.subr.mxu0 0.0
        %4725 = vmatpush1.msra.mxu0 0.0
        %4726 = vmatprep.subr.mxu0 0.0
        %4727 = vmatpush1.msra.mxu0 0.0
        %4728 = vmatprep.subr.mxu0 0.0
        %4729 = vmatpush1.msra.mxu0 0.0
        %4730 = vmatprep.subr.mxu0 0.0
        %4731 = vmatpush1.msra.mxu0 0.0
        %4732 = vmatprep.subr.mxu0 0.0
        %4733 = vmatpush1.msra.mxu0 0.0
        %4734 = vmatprep.subr.mxu0 0.0
        %4735 = vmatpush1.msra.mxu0 0.0
        %4736 = vmatprep.subr.mxu0 0.0
        %4737 = vmatpush1.msra.mxu0 0.0
        %4738 = vmatprep.subr.mxu0 0.0
        %4739 = vmatpush1.msra.mxu0 0.0
        %4740 = vmatprep.subr.mxu0 0.0
        %4741 = vmatpush1.msra.mxu0 0.0
        %4742 = vmatprep.subr.mxu0 0.0
        %4743 = vmatpush1.msra.mxu0 0.0
        %4744 = vmatprep.mubr.f32.mxu0 0.0
        %4745 = vmatmul.mubr.f32.gmra.mrb[0].mxu0 %v4678
        %v4746 = vpop.f32.mrb[0].mxu0
        %v4747 = vadd.f32 0.0, %v4746
        %v4748 = vpop.f32.mrb[0].mxu0
        %v4749 = vadd.f32 0.0, %v4748
        %4750 = vdwg.mxu0
        %4751 = vmatprep.subr.mxu0 %v4674
        %4752 = vmatpush1.msra.mxu0 %v4673
        %4753 = vmatprep.subr.mxu0 0.0
        %4754 = vmatpush1.msra.mxu0 0.0
        %4755 = vmatprep.subr.mxu0 0.0
        %4756 = vmatpush1.msra.mxu0 0.0
        %4757 = vmatprep.subr.mxu0 0.0
        %4758 = vmatpush1.msra.mxu0 0.0
        %4759 = vmatprep.subr.mxu0 0.0
        %4760 = vmatpush1.msra.mxu0 0.0
        %4761 = vmatprep.subr.mxu0 0.0
        %4762 = vmatpush1.msra.mxu0 0.0
        %4763 = vmatprep.subr.mxu0 0.0
        %4764 = vmatpush1.msra.mxu0 0.0
        %4765 = vmatprep.subr.mxu0 0.0
        %4766 = vmatpush1.msra.mxu0 0.0
        %4767 = vmatprep.subr.mxu0 0.0
        %4768 = vmatpush1.msra.mxu0 0.0
        %4769 = vmatprep.subr.mxu0 0.0
        %4770 = vmatpush1.msra.mxu0 0.0
        %4771 = vmatprep.subr.mxu0 0.0
        %4772 = vmatpush1.msra.mxu0 0.0
        %4773 = vmatprep.subr.mxu0 0.0
        %4774 = vmatpush1.msra.mxu0 0.0
        %4775 = vmatprep.subr.mxu0 0.0
        %4776 = vmatpush1.msra.mxu0 0.0
        %4777 = vmatprep.subr.mxu0 0.0
        %4778 = vmatpush1.msra.mxu0 0.0
        %4779 = vmatprep.subr.mxu0 0.0
        %4780 = vmatpush1.msra.mxu0 0.0
        %4781 = vmatprep.subr.mxu0 0.0
        %4782 = vmatpush1.msra.mxu0 0.0
        %4783 = vmatprep.subr.mxu0 0.0
        %4784 = vmatpush1.msra.mxu0 0.0
        %4785 = vmatprep.subr.mxu0 0.0
        %4786 = vmatpush1.msra.mxu0 0.0
        %4787 = vmatprep.subr.mxu0 0.0
        %4788 = vmatpush1.msra.mxu0 0.0
        %4789 = vmatprep.subr.mxu0 0.0
        %4790 = vmatpush1.msra.mxu0 0.0
        %4791 = vmatprep.subr.mxu0 0.0
        %4792 = vmatpush1.msra.mxu0 0.0
        %4793 = vmatprep.subr.mxu0 0.0
        %4794 = vmatpush1.msra.mxu0 0.0
        %4795 = vmatprep.subr.mxu0 0.0
        %4796 = vmatpush1.msra.mxu0 0.0
        %4797 = vmatprep.subr.mxu0 0.0
        %4798 = vmatpush1.msra.mxu0 0.0
        %4799 = vmatprep.subr.mxu0 0.0
        %4800 = vmatpush1.msra.mxu0 0.0
        %4801 = vmatprep.subr.mxu0 0.0
        %4802 = vmatpush1.msra.mxu0 0.0
        %4803 = vmatprep.subr.mxu0 0.0
        %4804 = vmatpush1.msra.mxu0 0.0
        %4805 = vmatprep.subr.mxu0 0.0
        %4806 = vmatpush1.msra.mxu0 0.0
        %4807 = vmatprep.subr.mxu0 0.0
        %4808 = vmatpush1.msra.mxu0 0.0
        %4809 = vmatprep.subr.mxu0 0.0
        %4810 = vmatpush1.msra.mxu0 0.0
        %4811 = vmatprep.subr.mxu0 0.0
        %4812 = vmatpush1.msra.mxu0 0.0
        %4813 = vmatprep.subr.mxu0 0.0
        %4814 = vmatpush1.msra.mxu0 0.0
        %4815 = vmatprep.mubr.f32.mxu0 0.0
        %4816 = vmatmul.mubr.f32.gmra.mrb[0].mxu0 %v4678
        %v4817 = vpop.f32.mrb[0].mxu0
        %v4818 = vadd.f32 0.0, %v4817
        %v4819 = vpop.f32.mrb[0].mxu0
        %v4820 = vadd.f32 0.0, %v4819
        %4821 = vdwg.mxu0
        %v4822 = vadd.f32 %v4655, %v4747
        %v4823 = vadd.f32 %v4656, %v4749
        %v4824 = vadd.f32 %v4657, %v4818
        %v4825 = vadd.f32 %v4658, %v4820
        %4826 = vrot.lane.b32.xlu0 %v3511, 111
        %v4827 = vpop.permute.xlu0 %4826
        %4828 = vrot.lane.b32.xlu0 %v3512, 111
        %v4829 = vpop.permute.xlu0 %4828
        %4830 = vrot.lane.b32.xlu0 %v3513, 111
        %v4831 = vpop.permute.xlu0 %4830
        %4832 = vrot.lane.b32.xlu0 %v3514, 111
        %v4833 = vpop.permute.xlu0 %4832
        %v4834 = vsel %vm1828, %v4831, %v4833
        %v4835 = vsel %vm1828, %v4829, %v4831
        %v4836 = vsel %vm1828, %v4827, %v4829
        %v4837 = vsel %vm1828, %v4833, %v4827
        %v4838 = vmul.f32 %v4836, %v1837
        %v4839 = vmul.f32 %v4835, %v1841
        %v4840 = vmul.f32 %v4834, %v1845
        %v4841 = vmul.f32 %v4837, %v1849
        %s4842 = scalar_lea.vmem %s5, 64
        %v4843 = vld [vmem:[%s4842] sm:$0xff]
        %v4845 = vsel %vm433, %v4843, 0
        %4847 = vmatprep.subr.mxu0 %v4839
        %4848 = vmatpush1.msra.mxu0 %v4838
        %4849 = vmatprep.subr.mxu0 0.0
        %4850 = vmatpush1.msra.mxu0 0.0
        %4851 = vmatprep.subr.mxu0 0.0
        %4852 = vmatpush1.msra.mxu0 0.0
        %4853 = vmatprep.subr.mxu0 0.0
        %4854 = vmatpush1.msra.mxu0 0.0
        %4855 = vmatprep.subr.mxu0 0.0
        %4856 = vmatpush1.msra.mxu0 0.0
        %4857 = vmatprep.subr.mxu0 0.0
        %4858 = vmatpush1.msra.mxu0 0.0
        %4859 = vmatprep.subr.mxu0 0.0
        %4860 = vmatpush1.msra.mxu0 0.0
        %4861 = vmatprep.subr.mxu0 0.0
        %4862 = vmatpush1.msra.mxu0 0.0
        %4863 = vmatprep.subr.mxu0 0.0
        %4864 = vmatpush1.msra.mxu0 0.0
        %4865 = vmatprep.subr.mxu0 0.0
        %4866 = vmatpush1.msra.mxu0 0.0
        %4867 = vmatprep.subr.mxu0 0.0
        %4868 = vmatpush1.msra.mxu0 0.0
        %4869 = vmatprep.subr.mxu0 0.0
        %4870 = vmatpush1.msra.mxu0 0.0
        %4871 = vmatprep.subr.mxu0 0.0
        %4872 = vmatpush1.msra.mxu0 0.0
        %4873 = vmatprep.subr.mxu0 0.0
        %4874 = vmatpush1.msra.mxu0 0.0
        %4875 = vmatprep.subr.mxu0 0.0
        %4876 = vmatpush1.msra.mxu0 0.0
        %4877 = vmatprep.subr.mxu0 0.0
        %4878 = vmatpush1.msra.mxu0 0.0
        %4879 = vmatprep.subr.mxu0 0.0
        %4880 = vmatpush1.msra.mxu0 0.0
        %4881 = vmatprep.subr.mxu0 0.0
        %4882 = vmatpush1.msra.mxu0 0.0
        %4883 = vmatprep.subr.mxu0 0.0
        %4884 = vmatpush1.msra.mxu0 0.0
        %4885 = vmatprep.subr.mxu0 0.0
        %4886 = vmatpush1.msra.mxu0 0.0
        %4887 = vmatprep.subr.mxu0 0.0
        %4888 = vmatpush1.msra.mxu0 0.0
        %4889 = vmatprep.subr.mxu0 0.0
        %4890 = vmatpush1.msra.mxu0 0.0
        %4891 = vmatprep.subr.mxu0 0.0
        %4892 = vmatpush1.msra.mxu0 0.0
        %4893 = vmatprep.subr.mxu0 0.0
        %4894 = vmatpush1.msra.mxu0 0.0
        %4895 = vmatprep.subr.mxu0 0.0
        %4896 = vmatpush1.msra.mxu0 0.0
        %4897 = vmatprep.subr.mxu0 0.0
        %4898 = vmatpush1.msra.mxu0 0.0
        %4899 = vmatprep.subr.mxu0 0.0
        %4900 = vmatpush1.msra.mxu0 0.0
        %4901 = vmatprep.subr.mxu0 0.0
        %4902 = vmatpush1.msra.mxu0 0.0
        %4903 = vmatprep.subr.mxu0 0.0
        %4904 = vmatpush1.msra.mxu0 0.0
        %4905 = vmatprep.subr.mxu0 0.0
        %4906 = vmatpush1.msra.mxu0 0.0
        %4907 = vmatprep.subr.mxu0 0.0
        %4908 = vmatpush1.msra.mxu0 0.0
        %4909 = vmatprep.subr.mxu0 0.0
        %4910 = vmatpush1.msra.mxu0 0.0
        %4911 = vmatprep.mubr.f32.mxu0 0.0
        %4912 = vmatmul.mubr.f32.gmra.mrb[0].mxu0 %v4845
        %v4913 = vpop.f32.mrb[0].mxu0
        %v4914 = vadd.f32 0.0, %v4913
        %v4915 = vpop.f32.mrb[0].mxu0
        %v4916 = vadd.f32 0.0, %v4915
        %4917 = vdwg.mxu0
        %4918 = vmatprep.subr.mxu0 %v4841
        %4919 = vmatpush1.msra.mxu0 %v4840
        %4920 = vmatprep.subr.mxu0 0.0
        %4921 = vmatpush1.msra.mxu0 0.0
        %4922 = vmatprep.subr.mxu0 0.0
        %4923 = vmatpush1.msra.mxu0 0.0
        %4924 = vmatprep.subr.mxu0 0.0
        %4925 = vmatpush1.msra.mxu0 0.0
        %4926 = vmatprep.subr.mxu0 0.0
        %4927 = vmatpush1.msra.mxu0 0.0
        %4928 = vmatprep.subr.mxu0 0.0
        %4929 = vmatpush1.msra.mxu0 0.0
        %4930 = vmatprep.subr.mxu0 0.0
        %4931 = vmatpush1.msra.mxu0 0.0
        %4932 = vmatprep.subr.mxu0 0.0
        %4933 = vmatpush1.msra.mxu0 0.0
        %4934 = vmatprep.subr.mxu0 0.0
        %4935 = vmatpush1.msra.mxu0 0.0
        %4936 = vmatprep.subr.mxu0 0.0
        %4937 = vmatpush1.msra.mxu0 0.0
        %4938 = vmatprep.subr.mxu0 0.0
        %4939 = vmatpush1.msra.mxu0 0.0
        %4940 = vmatprep.subr.mxu0 0.0
        %4941 = vmatpush1.msra.mxu0 0.0
        %4942 = vmatprep.subr.mxu0 0.0
        %4943 = vmatpush1.msra.mxu0 0.0
        %4944 = vmatprep.subr.mxu0 0.0
        %4945 = vmatpush1.msra.mxu0 0.0
        %4946 = vmatprep.subr.mxu0 0.0
        %4947 = vmatpush1.msra.mxu0 0.0
        %4948 = vmatprep.subr.mxu0 0.0
        %4949 = vmatpush1.msra.mxu0 0.0
        %4950 = vmatprep.subr.mxu0 0.0
        %4951 = vmatpush1.msra.mxu0 0.0
        %4952 = vmatprep.subr.mxu0 0.0
        %4953 = vmatpush1.msra.mxu0 0.0
        %4954 = vmatprep.subr.mxu0 0.0
        %4955 = vmatpush1.msra.mxu0 0.0
        %4956 = vmatprep.subr.mxu0 0.0
        %4957 = vmatpush1.msra.mxu0 0.0
        %4958 = vmatprep.subr.mxu0 0.0
        %4959 = vmatpush1.msra.mxu0 0.0
        %4960 = vmatprep.subr.mxu0 0.0
        %4961 = vmatpush1.msra.mxu0 0.0
        %4962 = vmatprep.subr.mxu0 0.0
        %4963 = vmatpush1.msra.mxu0 0.0
        %4964 = vmatprep.subr.mxu0 0.0
        %4965 = vmatpush1.msra.mxu0 0.0
        %4966 = vmatprep.subr.mxu0 0.0
        %4967 = vmatpush1.msra.mxu0 0.0
        %4968 = vmatprep.subr.mxu0 0.0
        %4969 = vmatpush1.msra.mxu0 0.0
        %4970 = vmatprep.subr.mxu0 0.0
        %4971 = vmatpush1.msra.mxu0 0.0
        %4972 = vmatprep.subr.mxu0 0.0
        %4973 = vmatpush1.msra.mxu0 0.0
        %4974 = vmatprep.subr.mxu0 0.0
        %4975 = vmatpush1.msra.mxu0 0.0
        %4976 = vmatprep.subr.mxu0 0.0
        %4977 = vmatpush1.msra.mxu0 0.0
        %4978 = vmatprep.subr.mxu0 0.0
        %4979 = vmatpush1.msra.mxu0 0.0
        %4980 = vmatprep.subr.mxu0 0.0
        %4981 = vmatpush1.msra.mxu0 0.0
        %4982 = vmatprep.mubr.f32.mxu0 0.0
        %4983 = vmatmul.mubr.f32.gmra.mrb[0].mxu0 %v4845
        %v4984 = vpop.f32.mrb[0].mxu0
        %v4985 = vadd.f32 0.0, %v4984
        %v4986 = vpop.f32.mrb[0].mxu0
        %v4987 = vadd.f32 0.0, %v4986
        %4988 = vdwg.mxu0
        %v4989 = vadd.f32 %v4822, %v4914
        %v4990 = vadd.f32 %v4823, %v4916
        %v4991 = vadd.f32 %v4824, %v4985
        %v4992 = vadd.f32 %v4825, %v4987
        %v4993 = vld [vmem:[%s6] sm:$0xff]
        %4995 = vset.pattern.permute.xlu0 0
        %4996 = vperm.xlu0 %4995, %v4993
        %v4997 = vpop.permute.xlu0 %4996
        %v4999 = vadd.f32 %v4989, %v4997
        %v5000 = vadd.f32 %v4990, %v4997
        %v5001 = vadd.f32 %v4991, %v4997
        %v5002 = vadd.f32 %v4992, %v4997
        %v5003 = vmax.f32 %v4999, 0.0
        %v5004 = vmax.f32 %v5000, 0.0
        %v5005 = vmax.f32 %v5001, 0.0
        %v5006 = vmax.f32 %v5002, 0.0
        %5007 = vrot.lane.b32.xlu0 %v5003, 127
        %v5008 = vpop.permute.xlu0 %5007
        %5009 = vrot.lane.b32.xlu0 %v5004, 127
        %v5010 = vpop.permute.xlu0 %5009
        %5011 = vrot.lane.b32.xlu0 %v5005, 127
        %v5012 = vpop.permute.xlu0 %5011
        %5013 = vrot.lane.b32.xlu0 %v5006, 127
        %v5014 = vpop.permute.xlu0 %5013
        %v5015 = vsel %vm1261, %v5012, %v5014
        %v5016 = vsel %vm1261, %v5010, %v5012
        %v5017 = vsel %vm1261, %v5008, %v5010
        %v5018 = vsel %vm1261, %v5014, %v5008
        %v5019 = vmax.f32 %v5003, %v5017
        %v5020 = vmax.f32 %v5004, %v5016
        %v5021 = vmax.f32 %v5005, %v5015
        %v5022 = vmax.f32 %v5006, %v5018
        %5023 = vrot.lane.b32.xlu0 %v5019, 112
        %v5024 = vpop.permute.xlu0 %5023
        %5025 = vrot.lane.b32.xlu0 %v5020, 112
        %v5026 = vpop.permute.xlu0 %5025
        %5027 = vrot.lane.b32.xlu0 %v5021, 112
        %v5028 = vpop.permute.xlu0 %5027
        %5029 = vrot.lane.b32.xlu0 %v5022, 112
        %v5030 = vpop.permute.xlu0 %5029
        %v5031 = vsel %vm1639, %v5028, %v5030
        %v5032 = vsel %vm1639, %v5026, %v5028
        %v5033 = vsel %vm1639, %v5024, %v5026
        %v5034 = vsel %vm1639, %v5030, %v5024
        %v5035 = vmax.f32 %v5019, %v5033
        %v5036 = vmax.f32 %v5020, %v5032
        %v5037 = vmax.f32 %v5021, %v5031
        %v5038 = vmax.f32 %v5022, %v5034
        %v5039 = vld [vmem:[%s8] sm:$0xff]
        %v5040 = vld [vmem:[%s8 + $0x8] sm:$0xff]
        %v5041 = vld [vmem:[%s8 + $0x10] sm:$0xff]
        %v5042 = vld [vmem:[%s8 + $0x18] sm:$0xff]
        %v5043 = vld [vmem:[%s8 + $0x20] sm:$0xff]
        %v5044 = vld [vmem:[%s8 + $0x28] sm:$0xff]
        %v5045 = vld [vmem:[%s8 + $0x30] sm:$0xff]
        %v5046 = vld [vmem:[%s8 + $0x38] sm:$0xff]
        %v5047 = vld [vmem:[%s8 + $0x40] sm:$0xff]
        %v5048 = vld [vmem:[%s8 + $0x48] sm:$0xff]
        %v5049 = vld [vmem:[%s8 + $0x50] sm:$0xff]
        %v5050 = vld [vmem:[%s8 + $0x58] sm:$0xff]
        %v5051 = vld [vmem:[%s8 + $0x60] sm:$0xff]
        %v5052 = vld [vmem:[%s8 + $0x68] sm:$0xff]
        %v5053 = vld [vmem:[%s8 + $0x70] sm:$0xff]
        %v5054 = vld [vmem:[%s8 + $0x78] sm:$0xff]
        %v5055 = vld [vmem:[%s8 + $0x80] sm:$0xff]
        %v5056 = vld [vmem:[%s8 + $0x88] sm:$0xff]
        %v5057 = vld [vmem:[%s8 + $0x90] sm:$0xff]
        %v5058 = vld [vmem:[%s8 + $0x98] sm:$0xff]
        %v5059 = vld [vmem:[%s8 + $0xa0] sm:$0xff]
        %v5060 = vld [vmem:[%s8 + $0xa8] sm:$0xff]
        %v5061 = vld [vmem:[%s8 + $0xb0] sm:$0xff]
        %v5062 = vld [vmem:[%s8 + $0xb8] sm:$0xff]
        %v5063 = vld [vmem:[%s8 + $0xc0] sm:$0xff]
        %v5064 = vld [vmem:[%s8 + $0xc8] sm:$0xff]
        %v5065 = vld [vmem:[%s8 + $0xd0] sm:$0xff]
        %v5066 = vld [vmem:[%s8 + $0xd8] sm:$0xff]
        %v5067 = vld [vmem:[%s8 + $0xe0] sm:$0xff]
        %v5068 = vld [vmem:[%s8 + $0xe8] sm:$0xff]
        %v5069 = vld [vmem:[%s8 + $0xf0] sm:$0xff]
        %v5070 = vld [vmem:[%s8 + $0xf8] sm:$0xff]
        %5071 = vmatprep.subr.mxu0 0.0
        %5072 = vmatpush1.msra.mxu0 %v5039
        %5073 = vmatprep.subr.mxu0 0.0
        %5074 = vmatpush1.msra.mxu0 %v5040
        %5075 = vmatprep.subr.mxu0 0.0
        %5076 = vmatpush1.msra.mxu0 %v5041
        %5077 = vmatprep.subr.mxu0 0.0
        %5078 = vmatpush1.msra.mxu0 %v5042
        %5079 = vmatprep.subr.mxu0 0.0
        %5080 = vmatpush1.msra.mxu0 %v5043
        %5081 = vmatprep.subr.mxu0 0.0
        %5082 = vmatpush1.msra.mxu0 %v5044
        %5083 = vmatprep.subr.mxu0 0.0
        %5084 = vmatpush1.msra.mxu0 %v5045
        %5085 = vmatprep.subr.mxu0 0.0
        %5086 = vmatpush1.msra.mxu0 %v5046
        %5087 = vmatprep.subr.mxu0 0.0
        %5088 = vmatpush1.msra.mxu0 %v5047
        %5089 = vmatprep.subr.mxu0 0.0
        %5090 = vmatpush1.msra.mxu0 %v5048
        %5091 = vmatprep.subr.mxu0 0.0
        %5092 = vmatpush1.msra.mxu0 %v5049
        %5093 = vmatprep.subr.mxu0 0.0
        %5094 = vmatpush1.msra.mxu0 %v5050
        %5095 = vmatprep.subr.mxu0 0.0
        %5096 = vmatpush1.msra.mxu0 %v5051
        %5097 = vmatprep.subr.mxu0 0.0
        %5098 = vmatpush1.msra.mxu0 %v5052
        %5099 = vmatprep.subr.mxu0 0.0
        %5100 = vmatpush1.msra.mxu0 %v5053
        %5101 = vmatprep.subr.mxu0 0.0
        %5102 = vmatpush1.msra.mxu0 %v5054
        %5103 = vmatprep.subr.mxu0 0.0
        %5104 = vmatpush1.msra.mxu0 %v5055
        %5105 = vmatprep.subr.mxu0 0.0
        %5106 = vmatpush1.msra.mxu0 %v5056
        %5107 = vmatprep.subr.mxu0 0.0
        %5108 = vmatpush1.msra.mxu0 %v5057
        %5109 = vmatprep.subr.mxu0 0.0
        %5110 = vmatpush1.msra.mxu0 %v5058
        %5111 = vmatprep.subr.mxu0 0.0
        %5112 = vmatpush1.msra.mxu0 %v5059
        %5113 = vmatprep.subr.mxu0 0.0
        %5114 = vmatpush1.msra.mxu0 %v5060
        %5115 = vmatprep.subr.mxu0 0.0
        %5116 = vmatpush1.msra.mxu0 %v5061
        %5117 = vmatprep.subr.mxu0 0.0
        %5118 = vmatpush1.msra.mxu0 %v5062
        %5119 = vmatprep.subr.mxu0 0.0
        %5120 = vmatpush1.msra.mxu0 %v5063
        %5121 = vmatprep.subr.mxu0 0.0
        %5122 = vmatpush1.msra.mxu0 %v5064
        %5123 = vmatprep.subr.mxu0 0.0
        %5124 = vmatpush1.msra.mxu0 %v5065
        %5125 = vmatprep.subr.mxu0 0.0
        %5126 = vmatpush1.msra.mxu0 %v5066
        %5127 = vmatprep.subr.mxu0 0.0
        %5128 = vmatpush1.msra.mxu0 %v5067
        %5129 = vmatprep.subr.mxu0 0.0
        %5130 = vmatpush1.msra.mxu0 %v5068
        %5131 = vmatprep.subr.mxu0 0.0
        %5132 = vmatpush1.msra.mxu0 %v5069
        %5133 = vmatprep.subr.mxu0 0.0
        %5134 = vmatpush1.msra.mxu0 %v5070
        %5135 = vmatprep.mubr.f32.mxu0 %v5036
        %5136 = vmatmul.mubr.f32.gmra.mrb[0].mxu0 %v5035
        %v5137 = vpop.f32.mrb[0].mxu0
        %v5138 = vadd.f32 0.0, %v5137
        %v5139 = vpop.f32.mrb[0].mxu0
        %5140 = vdwg.mxu0
        %5141 = vmatprep.subr.mxu0 0.0
        %5142 = vmatpush1.msra.mxu0 %v5039
        %5143 = vmatprep.subr.mxu0 0.0
        %5144 = vmatpush1.msra.mxu0 %v5040
        %5145 = vmatprep.subr.mxu0 0.0
        %5146 = vmatpush1.msra.mxu0 %v5041
        %5147 = vmatprep.subr.mxu0 0.0
        %5148 = vmatpush1.msra.mxu0 %v5042
        %5149 = vmatprep.subr.mxu0 0.0
        %5150 = vmatpush1.msra.mxu0 %v5043
        %5151 = vmatprep.subr.mxu0 0.0
        %5152 = vmatpush1.msra.mxu0 %v5044
        %5153 = vmatprep.subr.mxu0 0.0
        %5154 = vmatpush1.msra.mxu0 %v5045
        %5155 = vmatprep.subr.mxu0 0.0
        %5156 = vmatpush1.msra.mxu0 %v5046
        %5157 = vmatprep.subr.mxu0 0.0
        %5158 = vmatpush1.msra.mxu0 %v5047
        %5159 = vmatprep.subr.mxu0 0.0
        %5160 = vmatpush1.msra.mxu0 %v5048
        %5161 = vmatprep.subr.mxu0 0.0
        %5162 = vmatpush1.msra.mxu0 %v5049
        %5163 = vmatprep.subr.mxu0 0.0
        %5164 = vmatpush1.msra.mxu0 %v5050
        %5165 = vmatprep.subr.mxu0 0.0
        %5166 = vmatpush1.msra.mxu0 %v5051
        %5167 = vmatprep.subr.mxu0 0.0
        %5168 = vmatpush1.msra.mxu0 %v5052
        %5169 = vmatprep.subr.mxu0 0.0
        %5170 = vmatpush1.msra.mxu0 %v5053
        %5171 = vmatprep.subr.mxu0 0.0
        %5172 = vmatpush1.msra.mxu0 %v5054
        %5173 = vmatprep.subr.mxu0 0.0
        %5174 = vmatpush1.msra.mxu0 %v5055
        %5175 = vmatprep.subr.mxu0 0.0
        %5176 = vmatpush1.msra.mxu0 %v5056
        %5177 = vmatprep.subr.mxu0 0.0
        %5178 = vmatpush1.msra.mxu0 %v5057
        %5179 = vmatprep.subr.mxu0 0.0
        %5180 = vmatpush1.msra.mxu0 %v5058
        %5181 = vmatprep.subr.mxu0 0.0
        %5182 = vmatpush1.msra.mxu0 %v5059
        %5183 = vmatprep.subr.mxu0 0.0
        %5184 = vmatpush1.msra.mxu0 %v5060
        %5185 = vmatprep.subr.mxu0 0.0
        %5186 = vmatpush1.msra.mxu0 %v5061
        %5187 = vmatprep.subr.mxu0 0.0
        %5188 = vmatpush1.msra.mxu0 %v5062
        %5189 = vmatprep.subr.mxu0 0.0
        %5190 = vmatpush1.msra.mxu0 %v5063
        %5191 = vmatprep.subr.mxu0 0.0
        %5192 = vmatpush1.msra.mxu0 %v5064
        %5193 = vmatprep.subr.mxu0 0.0
        %5194 = vmatpush1.msra.mxu0 %v5065
        %5195 = vmatprep.subr.mxu0 0.0
        %5196 = vmatpush1.msra.mxu0 %v5066
        %5197 = vmatprep.subr.mxu0 0.0
        %5198 = vmatpush1.msra.mxu0 %v5067
        %5199 = vmatprep.subr.mxu0 0.0
        %5200 = vmatpush1.msra.mxu0 %v5068
        %5201 = vmatprep.subr.mxu0 0.0
        %5202 = vmatpush1.msra.mxu0 %v5069
        %5203 = vmatprep.subr.mxu0 0.0
        %5204 = vmatpush1.msra.mxu0 %v5070
        %5205 = vmatprep.mubr.f32.mxu0 %v5038
        %5206 = vmatmul.mubr.f32.gmra.mrb[0].mxu0 %v5037
        %v5207 = vpop.f32.mrb[0].mxu0
        %v5208 = vadd.f32 0.0, %v5207
        %v5209 = vpop.f32.mrb[0].mxu0
        %5210 = vdwg.mxu0
        %5212 = vrot.lane.b32.xlu0 %v5208, 64
        %v5213 = vpop.permute.xlu0 %5212
        %vm5215 = vcmask 523264
        %v5216 = vsel %vm5215, %v5138, %v5213
        %5217 = vst [vmem:[%s326] sm:$0xff] %v5216
        %s5218 = sand.u32 %s225, 1
        %s5219 = scalar_lea.sflag [#allocation3], %s5218
        %s5220 = sand.u32 %s225, 1
        %s5221 = smul.addr %s5220, 8
        %s5222 = scalar_lea.vmem [#allocation2], %s5221
        // Predicated region
        $region57: #{tpu_custom_call.1} parent=55 // pred_check
          %p5223 = pneg %p235
        $region58: #{tpu_custom_call.1} parent=55 // pred_check_branch
          %5225 = sbr.rel (%p5223) target = $region60
        $region59: #{tpu_custom_call.1} parent=55 // pred_region
          %s5227 = ssub.s32 128, 128
          %5228 = vsyncadd %s5219, %s5227
          %s5229 = smul.addr %s23, 128
          %s5230 = scalar_lea.hbm %s9, %s5229
          %s5232 = sshll.u32 %s5222, 4
          %s5233 = int_to_ptr.vmem [resolvable:$true] %s5232
          %5235 = dma.vmem_to_hbm [thread:$0]  %s5233, 128, %s5230, %s5219
        $region60: #{tpu_custom_call.1} parent=55 // pred_fallthru
          _
      $region56: #{tpu_custom_call.1} parent=5 // pred_fallthru
        _
      %p5236 = scmp.le.s32.totalorder 2, %s18
      // Predicated region
      $region61: #{tpu_custom_call.1} parent=5 // pred_check
        %p5237 = pneg %p5236
      $region62: #{tpu_custom_call.1} parent=5 // pred_check_branch
        %5239 = sbr.rel (%p5237) target = $region64
      $region63: #{tpu_custom_call.1} parent=5 // pred_region
        %s5240 = ssub.s32 %s18, 2
        // Predicated region
        $region65: #{tpu_custom_call.1} parent=63 // pred_check
          %p5241 = pneg %p241
        $region66: #{tpu_custom_call.1} parent=63 // pred_check_branch
          %5243 = sbr.rel (%p5241) target = $region68
        $region67: #{tpu_custom_call.1} parent=63 // pred_region
          %s5244 = sand.u32 %s226, 1
          %s5245 = scalar_lea.sflag [#allocation3], %s5244
          %s5246 = sand.u32 %s226, 1
          %s5247 = smul.addr %s5246, 8
          %s5248 = scalar_lea.vmem [#allocation2], %s5247
          %5249 = dma.done %s5245, 128
        $region68: #{tpu_custom_call.1} parent=63 // pred_fallthru
          _
      $region64: #{tpu_custom_call.1} parent=5 // pred_fallthru
        _
    $region6: #{tpu_custom_call.1} parent=1 // loop_footer
      %s22 = sadd.s32 1, %s18
    $region7: #{tpu_custom_call.1} parent=1 // loop_footer_branch
      %17 = sbr.rel target = $region3
    $region8: #{tpu_custom_call.1} parent=1 // loop_exit
      _
    %5250 = vsyncpa [#allocation3], 1
    %s5251 = scalar_lea.sflag [#allocation3], 1
    %5252 = vsyncpa %s5251, 1

</llo_original>
